<compile_context>
chip_gen: v6e
topology: v6e:2x2x1
jax: 0.10.0
libtpu: 0.0.40
codegen_flags: <defaults>
</compile_context>

<pallas_src>
import numpy as np
import jax
import jax.numpy as jnp
from jax.experimental import pallas as pl
from jax.experimental.pallas import tpu as pltpu

# ---------------- problem sizes (match the PyTorch module) ----------------
INPUT_SIZE = 10
HIDDEN_SIZE = 15
NUM_LAYERS = 3
NUM_CLASSES = 3

# ---------------- TPU-friendly padded sizes ----------------
B_PAD = 8        # batch padded to sublane multiple
F_PAD = 128      # feature/hidden padded to lane width (holds both 10 and 15)
G3 = 3 * F_PAD   # layer-0 gate stacking: [r | z | n]
G4 = 4 * F_PAD   # layer-1/2 fused gate stacking: [r | z | n_x | n_h]
O_PAD = 128      # fc output padded to lane width (holds 3)


def gru_fc_kernel(x_ref, wih0_ref, whh0_ref, bx0_ref, bhn0_ref,
                  w12_ref, brz12_ref, bin12_ref, bhn12_ref,
                  wfc_ref, bfc_ref, out_ref, xi_buf):
    """3-layer GRU (wavefront schedule) + Linear + ReLU, fully VMEM-resident.

    x_ref     : (seq*B_PAD, F_PAD)   bf16  padded time-major input (flattened)
    wih0_ref  : (F_PAD, G3)          bf16  layer-0 input->hidden weights [r|z|n]
    whh0_ref  : (F_PAD, G3)          bf16  layer-0 hidden->hidden weights [r|z|n]
    bx0_ref   : (1, G3)              f32   layer-0 b_ih(all) + b_hh(r,z)
    bhn0_ref  : (B_PAD, F_PAD)       f32   layer-0 b_hn (stays inside r*(...))
    w12_ref   : (2, 2*F_PAD, G4)     bf16  layers 1-2 fused [x;h] weights
    brz12_ref : (2, B_PAD, 2*F_PAD)  f32   layers 1-2 r/z biases (b_ih+b_hh)
    bin12_ref : (2, B_PAD, F_PAD)    f32   layers 1-2 b_in
    bhn12_ref : (2, B_PAD, F_PAD)    f32   layers 1-2 b_hn
    wfc_ref   : (F_PAD, O_PAD)       bf16  fc weight (transposed, padded)
    bfc_ref   : (1, O_PAD)           f32   fc bias
    out_ref   : (B_PAD, O_PAD)       f32   relu(fc(h_final of last layer))
    xi_buf    : (seq*B_PAD, G3)      f32   scratch: hoisted layer-0 projections
    """
    seq_len = x_ref.shape[0] // B_PAD
    F = F_PAD

    def sig(v):
        # sigmoid(v) = 0.5*tanh(0.5*v) + 0.5 : one EUP op, no divide on the chain
        return 0.5 * jnp.tanh(0.5 * v) + 0.5

    # ---- layer 0: hoist the whole input projection out of the recurrence ----
    xi_buf[...] = (jnp.dot(x_ref[...], wih0_ref[...],
                           preferred_element_type=jnp.float32) + bx0_ref[...])

    whh0 = whh0_ref[...]
    bhn0 = bhn0_ref[...]
    w1, w2 = w12_ref[0], w12_ref[1]
    brz1, brz2 = brz12_ref[0], brz12_ref[1]
    bin1, bin2 = bin12_ref[0], bin12_ref[1]
    bhn1, bhn2 = bhn12_ref[0], bhn12_ref[1]

    def cell0(xi, h):
        hh = jnp.dot(h.astype(jnp.bfloat16), whh0,
                     preferred_element_type=jnp.float32)        # (B, 3F)
        rz = sig(xi[:, :2 * F] + hh[:, :2 * F])
        r, z = rz[:, :F], rz[:, F:]
        n = jnp.tanh(xi[:, 2 * F:] + r * (hh[:, 2 * F:] + bhn0))
        return n + z * (h - n)

    def cell12(inp, h, w, brz, bin_, bhn):
        lhs = jnp.concatenate([inp, h], axis=-1).astype(jnp.bfloat16)  # (B, 2F)
        g = jnp.dot(lhs, w, preferred_element_type=jnp.float32)        # (B, 4F)
        rz = sig(g[:, :2 * F] + brz)
        r, z = rz[:, :F], rz[:, F:]
        n = jnp.tanh(g[:, 2 * F:3 * F] + bin_ + r * (g[:, 3 * F:] + bhn))
        return n + z * (h - n)

    zeros = jnp.zeros((B_PAD, F), jnp.float32)
    h0, h1, h2 = zeros, zeros, zeros
    out0, out1 = zeros, zeros   # never consumed before being set (wave bounds)

    # ---- wavefront: layer l processes timestep (wave - l); the 3 cell updates
    # within a wave are mutually independent, so the scheduler overlaps them ----
    for wave in range(seq_len + NUM_LAYERS - 1):   # static unroll (seq is const)
        prev0, prev1 = out0, out1
        if wave < seq_len:                                    # layer 0, t = wave
            h0 = cell0(xi_buf[wave * B_PAD:(wave + 1) * B_PAD, :], h0)
            out0 = h0
        if 1 <= wave <= seq_len:                              # layer 1, t = wave-1
            h1 = cell12(prev0, h1, w1, brz1, bin1, bhn1)
            out1 = h1
        if 2 <= wave <= seq_len + 1:                          # layer 2, t = wave-2
            h2 = cell12(prev1, h2, w2, brz2, bin2, bhn2)

    logits = (jnp.dot(h2.astype(jnp.bfloat16), wfc_ref[...],
                      preferred_element_type=jnp.float32) + bfc_ref[...])
    out_ref[...] = jnp.maximum(logits, 0.0)


# ---------------- one-time host-side weight packing ----------------
def pack_params(params):
    """Pad / transpose / gate-stack the GRU + FC weights once, off the hot path."""
    H = HIDDEN_SIZE

    # ---- layer 0: separate wih / whh (hoisted input projection) ----
    w_ih0 = np.asarray(params["w_ih"][0])      # (3H, in0), gate order r,z,n
    w_hh0 = np.asarray(params["w_hh"][0])      # (3H, H)
    b_ih0 = np.asarray(params["b_ih"][0])
    b_hh0 = np.asarray(params["b_hh"][0])
    in0 = w_ih0.shape[1]
    wih0 = np.zeros((F_PAD, G3), np.float32)
    whh0 = np.zeros((F_PAD, G3), np.float32)
    for g in range(3):
        wih0[:in0, g * F_PAD:g * F_PAD + H] = w_ih0[g * H:(g + 1) * H, :].T
        whh0[:H, g * F_PAD:g * F_PAD + H] = w_hh0[g * H:(g + 1) * H, :].T
    bx0 = np.zeros((1, G3), np.float32)
    bx0[0, 0 * F_PAD:0 * F_PAD + H] = b_ih0[0:H] + b_hh0[0:H]
    bx0[0, 1 * F_PAD:1 * F_PAD + H] = b_ih0[H:2 * H] + b_hh0[H:2 * H]
    bx0[0, 2 * F_PAD:2 * F_PAD + H] = b_ih0[2 * H:3 * H]
    bhn0 = np.zeros((B_PAD, F_PAD), np.float32)
    bhn0[:, :H] = b_hh0[2 * H:3 * H]

    # ---- layers 1..L-1: fused [x ; h] weight, gate columns [r | z | n_x | n_h] ----
    nl = NUM_LAYERS - 1
    w12 = np.zeros((nl, 2 * F_PAD, G4), np.float32)
    brz12 = np.zeros((nl, B_PAD, 2 * F_PAD), np.float32)
    bin12 = np.zeros((nl, B_PAD, F_PAD), np.float32)
    bhn12 = np.zeros((nl, B_PAD, F_PAD), np.float32)
    for l in range(1, NUM_LAYERS):
        i = l - 1
        w_ih = np.asarray(params["w_ih"][l])   # (3H, H)
        w_hh = np.asarray(params["w_hh"][l])   # (3H, H)
        b_ih = np.asarray(params["b_ih"][l])
        b_hh = np.asarray(params["b_hh"][l])
        for g in range(2):                     # r, z: x- and h-contributions summed
            w12[i, :H, g * F_PAD:g * F_PAD + H] = w_ih[g * H:(g + 1) * H, :].T
            w12[i, F_PAD:F_PAD + H, g * F_PAD:g * F_PAD + H] = w_hh[g * H:(g + 1) * H, :].T
            brz12[i, :, g * F_PAD:g * F_PAD + H] = (b_ih[g * H:(g + 1) * H]
                                                    + b_hh[g * H:(g + 1) * H])
        # n gate: x part -> cols [2F,3F), h part -> cols [3F,4F) (kept separate)
        w12[i, :H, 2 * F_PAD:2 * F_PAD + H] = w_ih[2 * H:3 * H, :].T
        w12[i, F_PAD:F_PAD + H, 3 * F_PAD:3 * F_PAD + H] = w_hh[2 * H:3 * H, :].T
        bin12[i, :, :H] = b_ih[2 * H:3 * H]
        bhn12[i, :, :H] = b_hh[2 * H:3 * H]

    wfc = np.zeros((F_PAD, O_PAD), np.float32)
    wfc[:H, :NUM_CLASSES] = np.asarray(params["w_fc"]).T
    bfc = np.zeros((1, O_PAD), np.float32)
    bfc[0, :NUM_CLASSES] = np.asarray(params["b_fc"])

    return {
        "wih0": jnp.asarray(wih0, jnp.bfloat16),
        "whh0": jnp.asarray(whh0, jnp.bfloat16),
        "bx0": jnp.asarray(bx0, jnp.float32),
        "bhn0": jnp.asarray(bhn0, jnp.float32),
        "w12": jnp.asarray(w12, jnp.bfloat16),
        "brz12": jnp.asarray(brz12, jnp.float32),
        "bin12": jnp.asarray(bin12, jnp.float32),
        "bhn12": jnp.asarray(bhn12, jnp.float32),
        "wfc": jnp.asarray(wfc, jnp.bfloat16),
        "bfc": jnp.asarray(bfc, jnp.float32),
    }


# ---------------- jitted forward wrapper ----------------
@jax.jit
def gru_forward(x, packed):
    """x: (batch, seq, input_size) f32, batch_first=True.

    Returns (batch, NUM_CLASSES) = relu(fc(h_T of last GRU layer)), h0 = 0.
    """
    batch, seq_len, in_size = x.shape

    # minimal input prep: transpose -> pad -> flatten -> cast (time-major, padded)
    x_tm = jnp.transpose(x, (1, 0, 2))
    x_pad = jnp.pad(x_tm, ((0, 0), (0, B_PAD - batch), (0, F_PAD - in_size)))
    x_flat = x_pad.reshape(seq_len * B_PAD, F_PAD).astype(jnp.bfloat16)

    vmem = pl.BlockSpec(memory_space=pltpu.MemorySpace.VMEM)
    out = pl.pallas_call(
        gru_fc_kernel,
        out_shape=jax.ShapeDtypeStruct((B_PAD, O_PAD), jnp.float32),
        in_specs=[vmem] * 11,
        out_specs=vmem,
        scratch_shapes=[
            pltpu.VMEM((seq_len * B_PAD, G3), jnp.float32),   # hoisted layer-0 proj
        ],
    )(x_flat, packed["wih0"], packed["whh0"], packed["bx0"], packed["bhn0"],
      packed["w12"], packed["brz12"], packed["bin12"], packed["bhn12"],
      packed["wfc"], packed["bfc"])

    return out[:batch, :NUM_CLASSES]


# ---------------- pure-JAX f32 reference (torch.nn.GRU semantics) ----------------
def gru_reference(x, params):
    batch, seq_len, _ = x.shape
    H = HIDDEN_SIZE
    layer_in = jnp.transpose(x, (1, 0, 2))            # (seq, batch, feat)
    h = jnp.zeros((batch, H), jnp.float32)
    for l in range(NUM_LAYERS):
        w_ih = params["w_ih"][l]
        w_hh = params["w_hh"][l]
        b_ih = params["b_ih"][l]
        b_hh = params["b_hh"][l]
        h = jnp.zeros((batch, H), jnp.float32)
        outs = []
        for t in range(seq_len):
            gi = layer_in[t] @ w_ih.T + b_ih
            gh = h @ w_hh.T + b_hh
            r = jax.nn.sigmoid(gi[:, :H] + gh[:, :H])
            z = jax.nn.sigmoid(gi[:, H:2 * H] + gh[:, H:2 * H])
            n = jnp.tanh(gi[:, 2 * H:] + r * gh[:, 2 * H:])
            h = (1.0 - z) * n + z * h
            outs.append(h)
        layer_in = jnp.stack(outs, axis=0)
    logits = h @ params["w_fc"].T + params["b_fc"]
    return jnp.maximum(logits, 0.0)


def init_params(key):
    ks = jax.random.split(key, 4 * NUM_LAYERS + 2)
    std = 1.0 / np.sqrt(HIDDEN_SIZE)
    w_ih, w_hh, b_ih, b_hh = [], [], [], []
    idx = 0
    for l in range(NUM_LAYERS):
        in_l = INPUT_SIZE if l == 0 else HIDDEN_SIZE
        w_ih.append(jax.random.uniform(ks[idx], (3 * HIDDEN_SIZE, in_l),
                                       jnp.float32, -std, std)); idx += 1
        w_hh.append(jax.random.uniform(ks[idx], (3 * HIDDEN_SIZE, HIDDEN_SIZE),
                                       jnp.float32, -std, std)); idx += 1
        b_ih.append(jax.random.uniform(ks[idx], (3 * HIDDEN_SIZE,),
                                       jnp.float32, -std, std)); idx += 1
        b_hh.append(jax.random.uniform(ks[idx], (3 * HIDDEN_SIZE,),
                                       jnp.float32, -std, std)); idx += 1
    w_fc = 0.01 * jax.random.normal(ks[idx], (NUM_CLASSES, HIDDEN_SIZE),
                                    jnp.float32); idx += 1
    b_fc = jnp.zeros((NUM_CLASSES,), jnp.float32)
    return {"w_ih": w_ih, "w_hh": w_hh, "b_ih": b_ih, "b_hh": b_hh,
            "w_fc": w_fc, "b_fc": b_fc}


if __name__ == "__main__":
    key = jax.random.PRNGKey(0)
    kp, kx = jax.random.split(key)
    params = init_params(kp)
    packed = pack_params(params)          # one-time packing, off the hot path

    batch, seq_len = 2, 8
    x = jax.random.normal(kx, (batch, seq_len, INPUT_SIZE), jnp.float32)

    out = gru_forward(x, packed)
    out = jax.block_until_ready(out)

    ref = gru_reference(x, params)
    # bf16 matmul operands (f32 accumulation / f32 hidden state) -> slightly
    # relaxed tolerance vs. the f32 reference.
    np.testing.assert_allclose(np.asarray(out), np.asarray(ref),
                               rtol=3e-2, atol=3e-3)
    assert out.shape == (batch, NUM_CLASSES)
    print("KERNEL_OK")
</pallas_src>

<mosaic_0001>
module attributes {stable_mosaic.version = 11 : i64} {
  func.func @gru_fc_kernel(%arg0: memref<64x128xbf16, #tpu.memory_space<vmem>>, %arg1: memref<128x384xbf16, #tpu.memory_space<vmem>>, %arg2: memref<128x384xbf16, #tpu.memory_space<vmem>>, %arg3: memref<1x384xf32, #tpu.memory_space<vmem>>, %arg4: memref<8x128xf32, #tpu.memory_space<vmem>>, %arg5: memref<2x256x512xbf16, #tpu.memory_space<vmem>>, %arg6: memref<2x8x256xf32, #tpu.memory_space<vmem>>, %arg7: memref<2x8x128xf32, #tpu.memory_space<vmem>>, %arg8: memref<2x8x128xf32, #tpu.memory_space<vmem>>, %arg9: memref<128x128xbf16, #tpu.memory_space<vmem>>, %arg10: memref<1x128xf32, #tpu.memory_space<vmem>>, %arg11: memref<8x128xf32, #tpu.memory_space<vmem>>, %arg12: memref<64x384xf32, #tpu.memory_space<vmem>>) attributes {dimension_semantics = [], scalar_prefetch = 0 : i64, scratch_operands = 1 : i64, tpu.core_type = #tpu.core_type<tc>} {
    %c0 = arith.constant 0 : index
    %c0_0 = arith.constant 0 : index
    %0 = vector.load %arg0[%c0, %c0_0] : memref<64x128xbf16, #tpu.memory_space<vmem>>, vector<64x128xbf16>
    %c0_1 = arith.constant 0 : index
    %c0_2 = arith.constant 0 : index
    %1 = vector.load %arg1[%c0_1, %c0_2] : memref<128x384xbf16, #tpu.memory_space<vmem>>, vector<128x384xbf16>
    %cst = arith.constant dense<0.000000e+00> : vector<64x384xf32>
    %2 = tpu.matmul %0, %1, %cst {dimension_numbers = #tpu.dot_dimension_numbers<[1], [0], [0], [1], [0, 0, 1, 1], [], []>} : vector<64x128xbf16>, vector<128x384xbf16>, vector<64x384xf32> -> vector<64x384xf32>
    %c0_3 = arith.constant 0 : index
    %c0_4 = arith.constant 0 : index
    %3 = vector.load %arg3[%c0_3, %c0_4] : memref<1x384xf32, #tpu.memory_space<vmem>>, vector<1x384xf32>
    %4 = vector.broadcast %3 : vector<1x384xf32> to vector<64x384xf32>
    %5 = arith.addf %2, %4 : vector<64x384xf32>
    %c0_5 = arith.constant 0 : index
    %c0_6 = arith.constant 0 : index
    %6 = vector.load %arg12[%c0_5, %c0_6] : memref<64x384xf32, #tpu.memory_space<vmem>>, vector<64x384xf32>
    tpu.vector_store %arg12[%c0_5, %c0_6], %5 {strides = array<i32>} : memref<64x384xf32, #tpu.memory_space<vmem>>, vector<64x384xf32>,
    %c0_7 = arith.constant 0 : index
    %c0_8 = arith.constant 0 : index
    %7 = vector.load %arg2[%c0_7, %c0_8] : memref<128x384xbf16, #tpu.memory_space<vmem>>, vector<128x384xbf16>
    %c0_9 = arith.constant 0 : index
    %c0_10 = arith.constant 0 : index
    %8 = vector.load %arg4[%c0_9, %c0_10] : memref<8x128xf32, #tpu.memory_space<vmem>>, vector<8x128xf32>
    %c0_11 = arith.constant 0 : index
    %c0_12 = arith.constant 0 : index
    %c0_13 = arith.constant 0 : index
    %9 = vector.load %arg5[%c0_11, %c0_12, %c0_13] : memref<2x256x512xbf16, #tpu.memory_space<vmem>>, vector<1x256x512xbf16>
    %10 = vector.shape_cast %9 : vector<1x256x512xbf16> to vector<256x512xbf16>
    %c1 = arith.constant 1 : index
    %c0_14 = arith.constant 0 : index
    %c0_15 = arith.constant 0 : index
    %11 = vector.load %arg5[%c1, %c0_14, %c0_15] : memref<2x256x512xbf16, #tpu.memory_space<vmem>>, vector<1x256x512xbf16>
    %12 = vector.shape_cast %11 : vector<1x256x512xbf16> to vector<256x512xbf16>
    %c0_16 = arith.constant 0 : index
    %c0_17 = arith.constant 0 : index
    %c0_18 = arith.constant 0 : index
    %13 = vector.load %arg6[%c0_16, %c0_17, %c0_18] : memref<2x8x256xf32, #tpu.memory_space<vmem>>, vector<1x8x256xf32>
    %14 = vector.shape_cast %13 : vector<1x8x256xf32> to vector<8x256xf32>
    %c1_19 = arith.constant 1 : index
    %c0_20 = arith.constant 0 : index
    %c0_21 = arith.constant 0 : index
    %15 = vector.load %arg6[%c1_19, %c0_20, %c0_21] : memref<2x8x256xf32, #tpu.memory_space<vmem>>, vector<1x8x256xf32>
    %16 = vector.shape_cast %15 : vector<1x8x256xf32> to vector<8x256xf32>
    %c0_22 = arith.constant 0 : index
    %c0_23 = arith.constant 0 : index
    %c0_24 = arith.constant 0 : index
    %17 = vector.load %arg7[%c0_22, %c0_23, %c0_24] : memref<2x8x128xf32, #tpu.memory_space<vmem>>, vector<1x8x128xf32>
    %18 = vector.shape_cast %17 : vector<1x8x128xf32> to vector<8x128xf32>
    %c1_25 = arith.constant 1 : index
    %c0_26 = arith.constant 0 : index
    %c0_27 = arith.constant 0 : index
    %19 = vector.load %arg7[%c1_25, %c0_26, %c0_27] : memref<2x8x128xf32, #tpu.memory_space<vmem>>, vector<1x8x128xf32>
    %20 = vector.shape_cast %19 : vector<1x8x128xf32> to vector<8x128xf32>
    %c0_28 = arith.constant 0 : index
    %c0_29 = arith.constant 0 : index
    %c0_30 = arith.constant 0 : index
    %21 = vector.load %arg8[%c0_28, %c0_29, %c0_30] : memref<2x8x128xf32, #tpu.memory_space<vmem>>, vector<1x8x128xf32>
    %22 = vector.shape_cast %21 : vector<1x8x128xf32> to vector<8x128xf32>
    %c1_31 = arith.constant 1 : index
    %c0_32 = arith.constant 0 : index
    %c0_33 = arith.constant 0 : index
    %23 = vector.load %arg8[%c1_31, %c0_32, %c0_33] : memref<2x8x128xf32, #tpu.memory_space<vmem>>, vector<1x8x128xf32>
    %24 = vector.shape_cast %23 : vector<1x8x128xf32> to vector<8x128xf32>
    %cst_34 = arith.constant 0.000000e+00 : f32
    %25 = vector.broadcast %cst_34 : f32 to vector<8x128xf32>
    %c0_35 = arith.constant 0 : index
    %c0_36 = arith.constant 0 : index
    %26 = vector.load %arg12[%c0_35, %c0_36] : memref<64x384xf32, #tpu.memory_space<vmem>>, vector<8x384xf32>
    %27 = arith.truncf %25 : vector<8x128xf32> to vector<8x128xbf16>
    %cst_37 = arith.constant dense<0.000000e+00> : vector<8x384xf32>
    %28 = tpu.matmul %27, %7, %cst_37 {dimension_numbers = #tpu.dot_dimension_numbers<[1], [0], [0], [1], [0, 0, 1, 1], [], []>} : vector<8x128xbf16>, vector<128x384xbf16>, vector<8x384xf32> -> vector<8x384xf32>
    %29 = vector.extract_strided_slice %26 {offsets = [0, 0], sizes = [8, 256], strides = [1, 1]} : vector<8x384xf32> to vector<8x256xf32>
    %30 = vector.extract_strided_slice %28 {offsets = [0, 0], sizes = [8, 256], strides = [1, 1]} : vector<8x384xf32> to vector<8x256xf32>
    %31 = arith.addf %29, %30 : vector<8x256xf32>
    %cst_38 = arith.constant 5.000000e-01 : f32
    %32 = vector.broadcast %cst_38 : f32 to vector<8x256xf32>
    %33 = arith.mulf %32, %31 : vector<8x256xf32>
    %34 = math.tanh %33 : vector<8x256xf32>
    %cst_39 = arith.constant 5.000000e-01 : f32
    %35 = vector.broadcast %cst_39 : f32 to vector<8x256xf32>
    %36 = arith.mulf %35, %34 : vector<8x256xf32>
    %cst_40 = arith.constant 5.000000e-01 : f32
    %37 = vector.broadcast %cst_40 : f32 to vector<8x256xf32>
    %38 = arith.addf %36, %37 : vector<8x256xf32>
    %39 = vector.extract_strided_slice %38 {offsets = [0, 0], sizes = [8, 128], strides = [1, 1]} : vector<8x256xf32> to vector<8x128xf32>
    %40 = vector.extract_strided_slice %38 {offsets = [0, 128], sizes = [8, 128], strides = [1, 1]} : vector<8x256xf32> to vector<8x128xf32>
    %41 = vector.extract_strided_slice %26 {offsets = [0, 256], sizes = [8, 128], strides = [1, 1]} : vector<8x384xf32> to vector<8x128xf32>
    %42 = vector.extract_strided_slice %28 {offsets = [0, 256], sizes = [8, 128], strides = [1, 1]} : vector<8x384xf32> to vector<8x128xf32>
    %43 = arith.addf %42, %8 : vector<8x128xf32>
    %44 = arith.mulf %39, %43 : vector<8x128xf32>
    %45 = arith.addf %41, %44 : vector<8x128xf32>
    %46 = math.tanh %45 : vector<8x128xf32>
    %47 = arith.subf %25, %46 : vector<8x128xf32>
    %48 = arith.mulf %40, %47 : vector<8x128xf32>
    %49 = arith.addf %46, %48 : vector<8x128xf32>
    %c8 = arith.constant 8 : index
    %c0_41 = arith.constant 0 : index
    %50 = vector.load %arg12[%c8, %c0_41] : memref<64x384xf32, #tpu.memory_space<vmem>>, vector<8x384xf32>
    %51 = arith.truncf %49 : vector<8x128xf32> to vector<8x128xbf16>
    %cst_42 = arith.constant dense<0.000000e+00> : vector<8x384xf32>
    %52 = tpu.matmul %51, %7, %cst_42 {dimension_numbers = #tpu.dot_dimension_numbers<[1], [0], [0], [1], [0, 0, 1, 1], [], []>} : vector<8x128xbf16>, vector<128x384xbf16>, vector<8x384xf32> -> vector<8x384xf32>
    %53 = vector.extract_strided_slice %50 {offsets = [0, 0], sizes = [8, 256], strides = [1, 1]} : vector<8x384xf32> to vector<8x256xf32>
    %54 = vector.extract_strided_slice %52 {offsets = [0, 0], sizes = [8, 256], strides = [1, 1]} : vector<8x384xf32> to vector<8x256xf32>
    %55 = arith.addf %53, %54 : vector<8x256xf32>
    %cst_43 = arith.constant 5.000000e-01 : f32
    %56 = vector.broadcast %cst_43 : f32 to vector<8x256xf32>
    %57 = arith.mulf %56, %55 : vector<8x256xf32>
    %58 = math.tanh %57 : vector<8x256xf32>
    %cst_44 = arith.constant 5.000000e-01 : f32
    %59 = vector.broadcast %cst_44 : f32 to vector<8x256xf32>
    %60 = arith.mulf %59, %58 : vector<8x256xf32>
    %cst_45 = arith.constant 5.000000e-01 : f32
    %61 = vector.broadcast %cst_45 : f32 to vector<8x256xf32>
    %62 = arith.addf %60, %61 : vector<8x256xf32>
    %63 = vector.extract_strided_slice %62 {offsets = [0, 0], sizes = [8, 128], strides = [1, 1]} : vector<8x256xf32> to vector<8x128xf32>
    %64 = vector.extract_strided_slice %62 {offsets = [0, 128], sizes = [8, 128], strides = [1, 1]} : vector<8x256xf32> to vector<8x128xf32>
    %65 = vector.extract_strided_slice %50 {offsets = [0, 256], sizes = [8, 128], strides = [1, 1]} : vector<8x384xf32> to vector<8x128xf32>
    %66 = vector.extract_strided_slice %52 {offsets = [0, 256], sizes = [8, 128], strides = [1, 1]} : vector<8x384xf32> to vector<8x128xf32>
    %67 = arith.addf %66, %8 : vector<8x128xf32>
    %68 = arith.mulf %63, %67 : vector<8x128xf32>
    %69 = arith.addf %65, %68 : vector<8x128xf32>
    %70 = math.tanh %69 : vector<8x128xf32>
    %71 = arith.subf %49, %70 : vector<8x128xf32>
    %72 = arith.mulf %64, %71 : vector<8x128xf32>
    %73 = arith.addf %70, %72 : vector<8x128xf32>
    %74 = tpu.concatenate %49, %25 in 1 : vector<8x128xf32>, vector<8x128xf32> -> vector<8x256xf32>
    %75 = arith.truncf %74 : vector<8x256xf32> to vector<8x256xbf16>
    %cst_46 = arith.constant dense<0.000000e+00> : vector<8x512xf32>
    %76 = tpu.matmul %75, %10, %cst_46 {dimension_numbers = #tpu.dot_dimension_numbers<[1], [0], [0], [1], [0, 0, 1, 1], [], []>} : vector<8x256xbf16>, vector<256x512xbf16>, vector<8x512xf32> -> vector<8x512xf32>
    %77 = vector.extract_strided_slice %76 {offsets = [0, 0], sizes = [8, 256], strides = [1, 1]} : vector<8x512xf32> to vector<8x256xf32>
    %78 = arith.addf %77, %14 : vector<8x256xf32>
    %cst_47 = arith.constant 5.000000e-01 : f32
    %79 = vector.broadcast %cst_47 : f32 to vector<8x256xf32>
    %80 = arith.mulf %79, %78 : vector<8x256xf32>
    %81 = math.tanh %80 : vector<8x256xf32>
    %cst_48 = arith.constant 5.000000e-01 : f32
    %82 = vector.broadcast %cst_48 : f32 to vector<8x256xf32>
    %83 = arith.mulf %82, %81 : vector<8x256xf32>
    %cst_49 = arith.constant 5.000000e-01 : f32
    %84 = vector.broadcast %cst_49 : f32 to vector<8x256xf32>
    %85 = arith.addf %83, %84 : vector<8x256xf32>
    %86 = vector.extract_strided_slice %85 {offsets = [0, 0], sizes = [8, 128], strides = [1, 1]} : vector<8x256xf32> to vector<8x128xf32>
    %87 = vector.extract_strided_slice %85 {offsets = [0, 128], sizes = [8, 128], strides = [1, 1]} : vector<8x256xf32> to vector<8x128xf32>
    %88 = vector.extract_strided_slice %76 {offsets = [0, 256], sizes = [8, 128], strides = [1, 1]} : vector<8x512xf32> to vector<8x128xf32>
    %89 = arith.addf %88, %18 : vector<8x128xf32>
    %90 = vector.extract_strided_slice %76 {offsets = [0, 384], sizes = [8, 128], strides = [1, 1]} : vector<8x512xf32> to vector<8x128xf32>
    %91 = arith.addf %90, %22 : vector<8x128xf32>
    %92 = arith.mulf %86, %91 : vector<8x128xf32>
    %93 = arith.addf %89, %92 : vector<8x128xf32>
    %94 = math.tanh %93 : vector<8x128xf32>
    %95 = arith.subf %25, %94 : vector<8x128xf32>
    %96 = arith.mulf %87, %95 : vector<8x128xf32>
    %97 = arith.addf %94, %96 : vector<8x128xf32>
    %c16 = arith.constant 16 : index
    %c0_50 = arith.constant 0 : index
    %98 = vector.load %arg12[%c16, %c0_50] : memref<64x384xf32, #tpu.memory_space<vmem>>, vector<8x384xf32>
    %99 = arith.truncf %73 : vector<8x128xf32> to vector<8x128xbf16>
    %cst_51 = arith.constant dense<0.000000e+00> : vector<8x384xf32>
    %100 = tpu.matmul %99, %7, %cst_51 {dimension_numbers = #tpu.dot_dimension_numbers<[1], [0], [0], [1], [0, 0, 1, 1], [], []>} : vector<8x128xbf16>, vector<128x384xbf16>, vector<8x384xf32> -> vector<8x384xf32>
    %101 = vector.extract_strided_slice %98 {offsets = [0, 0], sizes = [8, 256], strides = [1, 1]} : vector<8x384xf32> to vector<8x256xf32>
    %102 = vector.extract_strided_slice %100 {offsets = [0, 0], sizes = [8, 256], strides = [1, 1]} : vector<8x384xf32> to vector<8x256xf32>
    %103 = arith.addf %101, %102 : vector<8x256xf32>
    %cst_52 = arith.constant 5.000000e-01 : f32
    %104 = vector.broadcast %cst_52 : f32 to vector<8x256xf32>
    %105 = arith.mulf %104, %103 : vector<8x256xf32>
    %106 = math.tanh %105 : vector<8x256xf32>
    %cst_53 = arith.constant 5.000000e-01 : f32
    %107 = vector.broadcast %cst_53 : f32 to vector<8x256xf32>
    %108 = arith.mulf %107, %106 : vector<8x256xf32>
    %cst_54 = arith.constant 5.000000e-01 : f32
    %109 = vector.broadcast %cst_54 : f32 to vector<8x256xf32>
    %110 = arith.addf %108, %109 : vector<8x256xf32>
    %111 = vector.extract_strided_slice %110 {offsets = [0, 0], sizes = [8, 128], strides = [1, 1]} : vector<8x256xf32> to vector<8x128xf32>
    %112 = vector.extract_strided_slice %110 {offsets = [0, 128], sizes = [8, 128], strides = [1, 1]} : vector<8x256xf32> to vector<8x128xf32>
    %113 = vector.extract_strided_slice %98 {offsets = [0, 256], sizes = [8, 128], strides = [1, 1]} : vector<8x384xf32> to vector<8x128xf32>
    %114 = vector.extract_strided_slice %100 {offsets = [0, 256], sizes = [8, 128], strides = [1, 1]} : vector<8x384xf32> to vector<8x128xf32>
    %115 = arith.addf %114, %8 : vector<8x128xf32>
    %116 = arith.mulf %111, %115 : vector<8x128xf32>
    %117 = arith.addf %113, %116 : vector<8x128xf32>
    %118 = math.tanh %117 : vector<8x128xf32>
    %119 = arith.subf %73, %118 : vector<8x128xf32>
    %120 = arith.mulf %112, %119 : vector<8x128xf32>
    %121 = arith.addf %118, %120 : vector<8x128xf32>
    %122 = tpu.concatenate %73, %97 in 1 : vector<8x128xf32>, vector<8x128xf32> -> vector<8x256xf32>
    %123 = arith.truncf %122 : vector<8x256xf32> to vector<8x256xbf16>
    %cst_55 = arith.constant dense<0.000000e+00> : vector<8x512xf32>
    %124 = tpu.matmul %123, %10, %cst_55 {dimension_numbers = #tpu.dot_dimension_numbers<[1], [0], [0], [1], [0, 0, 1, 1], [], []>} : vector<8x256xbf16>, vector<256x512xbf16>, vector<8x512xf32> -> vector<8x512xf32>
    %125 = vector.extract_strided_slice %124 {offsets = [0, 0], sizes = [8, 256], strides = [1, 1]} : vector<8x512xf32> to vector<8x256xf32>
    %126 = arith.addf %125, %14 : vector<8x256xf32>
    %cst_56 = arith.constant 5.000000e-01 : f32
    %127 = vector.broadcast %cst_56 : f32 to vector<8x256xf32>
    %128 = arith.mulf %127, %126 : vector<8x256xf32>
    %129 = math.tanh %128 : vector<8x256xf32>
    %cst_57 = arith.constant 5.000000e-01 : f32
    %130 = vector.broadcast %cst_57 : f32 to vector<8x256xf32>
    %131 = arith.mulf %130, %129 : vector<8x256xf32>
    %cst_58 = arith.constant 5.000000e-01 : f32
    %132 = vector.broadcast %cst_58 : f32 to vector<8x256xf32>
    %133 = arith.addf %131, %132 : vector<8x256xf32>
    %134 = vector.extract_strided_slice %133 {offsets = [0, 0], sizes = [8, 128], strides = [1, 1]} : vector<8x256xf32> to vector<8x128xf32>
    %135 = vector.extract_strided_slice %133 {offsets = [0, 128], sizes = [8, 128], strides = [1, 1]} : vector<8x256xf32> to vector<8x128xf32>
    %136 = vector.extract_strided_slice %124 {offsets = [0, 256], sizes = [8, 128], strides = [1, 1]} : vector<8x512xf32> to vector<8x128xf32>
    %137 = arith.addf %136, %18 : vector<8x128xf32>
    %138 = vector.extract_strided_slice %124 {offsets = [0, 384], sizes = [8, 128], strides = [1, 1]} : vector<8x512xf32> to vector<8x128xf32>
    %139 = arith.addf %138, %22 : vector<8x128xf32>
    %140 = arith.mulf %134, %139 : vector<8x128xf32>
    %141 = arith.addf %137, %140 : vector<8x128xf32>
    %142 = math.tanh %141 : vector<8x128xf32>
    %143 = arith.subf %97, %142 : vector<8x128xf32>
    %144 = arith.mulf %135, %143 : vector<8x128xf32>
    %145 = arith.addf %142, %144 : vector<8x128xf32>
    %146 = tpu.concatenate %97, %25 in 1 : vector<8x128xf32>, vector<8x128xf32> -> vector<8x256xf32>
    %147 = arith.truncf %146 : vector<8x256xf32> to vector<8x256xbf16>
    %cst_59 = arith.constant dense<0.000000e+00> : vector<8x512xf32>
    %148 = tpu.matmul %147, %12, %cst_59 {dimension_numbers = #tpu.dot_dimension_numbers<[1], [0], [0], [1], [0, 0, 1, 1], [], []>} : vector<8x256xbf16>, vector<256x512xbf16>, vector<8x512xf32> -> vector<8x512xf32>
    %149 = vector.extract_strided_slice %148 {offsets = [0, 0], sizes = [8, 256], strides = [1, 1]} : vector<8x512xf32> to vector<8x256xf32>
    %150 = arith.addf %149, %16 : vector<8x256xf32>
    %cst_60 = arith.constant 5.000000e-01 : f32
    %151 = vector.broadcast %cst_60 : f32 to vector<8x256xf32>
    %152 = arith.mulf %151, %150 : vector<8x256xf32>
    %153 = math.tanh %152 : vector<8x256xf32>
    %cst_61 = arith.constant 5.000000e-01 : f32
    %154 = vector.broadcast %cst_61 : f32 to vector<8x256xf32>
    %155 = arith.mulf %154, %153 : vector<8x256xf32>
    %cst_62 = arith.constant 5.000000e-01 : f32
    %156 = vector.broadcast %cst_62 : f32 to vector<8x256xf32>
    %157 = arith.addf %155, %156 : vector<8x256xf32>
    %158 = vector.extract_strided_slice %157 {offsets = [0, 0], sizes = [8, 128], strides = [1, 1]} : vector<8x256xf32> to vector<8x128xf32>
    %159 = vector.extract_strided_slice %157 {offsets = [0, 128], sizes = [8, 128], strides = [1, 1]} : vector<8x256xf32> to vector<8x128xf32>
    %160 = vector.extract_strided_slice %148 {offsets = [0, 256], sizes = [8, 128], strides = [1, 1]} : vector<8x512xf32> to vector<8x128xf32>
    %161 = arith.addf %160, %20 : vector<8x128xf32>
    %162 = vector.extract_strided_slice %148 {offsets = [0, 384], sizes = [8, 128], strides = [1, 1]} : vector<8x512xf32> to vector<8x128xf32>
    %163 = arith.addf %162, %24 : vector<8x128xf32>
    %164 = arith.mulf %158, %163 : vector<8x128xf32>
    %165 = arith.addf %161, %164 : vector<8x128xf32>
    %166 = math.tanh %165 : vector<8x128xf32>
    %167 = arith.subf %25, %166 : vector<8x128xf32>
    %168 = arith.mulf %159, %167 : vector<8x128xf32>
    %169 = arith.addf %166, %168 : vector<8x128xf32>
    %c24 = arith.constant 24 : index
    %c0_63 = arith.constant 0 : index
    %170 = vector.load %arg12[%c24, %c0_63] : memref<64x384xf32, #tpu.memory_space<vmem>>, vector<8x384xf32>
    %171 = arith.truncf %121 : vector<8x128xf32> to vector<8x128xbf16>
    %cst_64 = arith.constant dense<0.000000e+00> : vector<8x384xf32>
    %172 = tpu.matmul %171, %7, %cst_64 {dimension_numbers = #tpu.dot_dimension_numbers<[1], [0], [0], [1], [0, 0, 1, 1], [], []>} : vector<8x128xbf16>, vector<128x384xbf16>, vector<8x384xf32> -> vector<8x384xf32>
    %173 = vector.extract_strided_slice %170 {offsets = [0, 0], sizes = [8, 256], strides = [1, 1]} : vector<8x384xf32> to vector<8x256xf32>
    %174 = vector.extract_strided_slice %172 {offsets = [0, 0], sizes = [8, 256], strides = [1, 1]} : vector<8x384xf32> to vector<8x256xf32>
    %175 = arith.addf %173, %174 : vector<8x256xf32>
    %cst_65 = arith.constant 5.000000e-01 : f32
    %176 = vector.broadcast %cst_65 : f32 to vector<8x256xf32>
    %177 = arith.mulf %176, %175 : vector<8x256xf32>
    %178 = math.tanh %177 : vector<8x256xf32>
    %cst_66 = arith.constant 5.000000e-01 : f32
    %179 = vector.broadcast %cst_66 : f32 to vector<8x256xf32>
    %180 = arith.mulf %179, %178 : vector<8x256xf32>
    %cst_67 = arith.constant 5.000000e-01 : f32
    %181 = vector.broadcast %cst_67 : f32 to vector<8x256xf32>
    %182 = arith.addf %180, %181 : vector<8x256xf32>
    %183 = vector.extract_strided_slice %182 {offsets = [0, 0], sizes = [8, 128], strides = [1, 1]} : vector<8x256xf32> to vector<8x128xf32>
    %184 = vector.extract_strided_slice %182 {offsets = [0, 128], sizes = [8, 128], strides = [1, 1]} : vector<8x256xf32> to vector<8x128xf32>
    %185 = vector.extract_strided_slice %170 {offsets = [0, 256], sizes = [8, 128], strides = [1, 1]} : vector<8x384xf32> to vector<8x128xf32>
    %186 = vector.extract_strided_slice %172 {offsets = [0, 256], sizes = [8, 128], strides = [1, 1]} : vector<8x384xf32> to vector<8x128xf32>
    %187 = arith.addf %186, %8 : vector<8x128xf32>
    %188 = arith.mulf %183, %187 : vector<8x128xf32>
    %189 = arith.addf %185, %188 : vector<8x128xf32>
    %190 = math.tanh %189 : vector<8x128xf32>
    %191 = arith.subf %121, %190 : vector<8x128xf32>
    %192 = arith.mulf %184, %191 : vector<8x128xf32>
    %193 = arith.addf %190, %192 : vector<8x128xf32>
    %194 = tpu.concatenate %121, %145 in 1 : vector<8x128xf32>, vector<8x128xf32> -> vector<8x256xf32>
    %195 = arith.truncf %194 : vector<8x256xf32> to vector<8x256xbf16>
    %cst_68 = arith.constant dense<0.000000e+00> : vector<8x512xf32>
    %196 = tpu.matmul %195, %10, %cst_68 {dimension_numbers = #tpu.dot_dimension_numbers<[1], [0], [0], [1], [0, 0, 1, 1], [], []>} : vector<8x256xbf16>, vector<256x512xbf16>, vector<8x512xf32> -> vector<8x512xf32>
    %197 = vector.extract_strided_slice %196 {offsets = [0, 0], sizes = [8, 256], strides = [1, 1]} : vector<8x512xf32> to vector<8x256xf32>
    %198 = arith.addf %197, %14 : vector<8x256xf32>
    %cst_69 = arith.constant 5.000000e-01 : f32
    %199 = vector.broadcast %cst_69 : f32 to vector<8x256xf32>
    %200 = arith.mulf %199, %198 : vector<8x256xf32>
    %201 = math.tanh %200 : vector<8x256xf32>
    %cst_70 = arith.constant 5.000000e-01 : f32
    %202 = vector.broadcast %cst_70 : f32 to vector<8x256xf32>
    %203 = arith.mulf %202, %201 : vector<8x256xf32>
    %cst_71 = arith.constant 5.000000e-01 : f32
    %204 = vector.broadcast %cst_71 : f32 to vector<8x256xf32>
    %205 = arith.addf %203, %204 : vector<8x256xf32>
    %206 = vector.extract_strided_slice %205 {offsets = [0, 0], sizes = [8, 128], strides = [1, 1]} : vector<8x256xf32> to vector<8x128xf32>
    %207 = vector.extract_strided_slice %205 {offsets = [0, 128], sizes = [8, 128], strides = [1, 1]} : vector<8x256xf32> to vector<8x128xf32>
    %208 = vector.extract_strided_slice %196 {offsets = [0, 256], sizes = [8, 128], strides = [1, 1]} : vector<8x512xf32> to vector<8x128xf32>
    %209 = arith.addf %208, %18 : vector<8x128xf32>
    %210 = vector.extract_strided_slice %196 {offsets = [0, 384], sizes = [8, 128], strides = [1, 1]} : vector<8x512xf32> to vector<8x128xf32>
    %211 = arith.addf %210, %22 : vector<8x128xf32>
    %212 = arith.mulf %206, %211 : vector<8x128xf32>
    %213 = arith.addf %209, %212 : vector<8x128xf32>
    %214 = math.tanh %213 : vector<8x128xf32>
    %215 = arith.subf %145, %214 : vector<8x128xf32>
    %216 = arith.mulf %207, %215 : vector<8x128xf32>
    %217 = arith.addf %214, %216 : vector<8x128xf32>
    %218 = tpu.concatenate %145, %169 in 1 : vector<8x128xf32>, vector<8x128xf32> -> vector<8x256xf32>
    %219 = arith.truncf %218 : vector<8x256xf32> to vector<8x256xbf16>
    %cst_72 = arith.constant dense<0.000000e+00> : vector<8x512xf32>
    %220 = tpu.matmul %219, %12, %cst_72 {dimension_numbers = #tpu.dot_dimension_numbers<[1], [0], [0], [1], [0, 0, 1, 1], [], []>} : vector<8x256xbf16>, vector<256x512xbf16>, vector<8x512xf32> -> vector<8x512xf32>
    %221 = vector.extract_strided_slice %220 {offsets = [0, 0], sizes = [8, 256], strides = [1, 1]} : vector<8x512xf32> to vector<8x256xf32>
    %222 = arith.addf %221, %16 : vector<8x256xf32>
    %cst_73 = arith.constant 5.000000e-01 : f32
    %223 = vector.broadcast %cst_73 : f32 to vector<8x256xf32>
    %224 = arith.mulf %223, %222 : vector<8x256xf32>
    %225 = math.tanh %224 : vector<8x256xf32>
    %cst_74 = arith.constant 5.000000e-01 : f32
    %226 = vector.broadcast %cst_74 : f32 to vector<8x256xf32>
    %227 = arith.mulf %226, %225 : vector<8x256xf32>
    %cst_75 = arith.constant 5.000000e-01 : f32
    %228 = vector.broadcast %cst_75 : f32 to vector<8x256xf32>
    %229 = arith.addf %227, %228 : vector<8x256xf32>
    %230 = vector.extract_strided_slice %229 {offsets = [0, 0], sizes = [8, 128], strides = [1, 1]} : vector<8x256xf32> to vector<8x128xf32>
    %231 = vector.extract_strided_slice %229 {offsets = [0, 128], sizes = [8, 128], strides = [1, 1]} : vector<8x256xf32> to vector<8x128xf32>
    %232 = vector.extract_strided_slice %220 {offsets = [0, 256], sizes = [8, 128], strides = [1, 1]} : vector<8x512xf32> to vector<8x128xf32>
    %233 = arith.addf %232, %20 : vector<8x128xf32>
    %234 = vector.extract_strided_slice %220 {offsets = [0, 384], sizes = [8, 128], strides = [1, 1]} : vector<8x512xf32> to vector<8x128xf32>
    %235 = arith.addf %234, %24 : vector<8x128xf32>
    %236 = arith.mulf %230, %235 : vector<8x128xf32>
    %237 = arith.addf %233, %236 : vector<8x128xf32>
    %238 = math.tanh %237 : vector<8x128xf32>
    %239 = arith.subf %169, %238 : vector<8x128xf32>
    %240 = arith.mulf %231, %239 : vector<8x128xf32>
    %241 = arith.addf %238, %240 : vector<8x128xf32>
    %c32 = arith.constant 32 : index
    %c0_76 = arith.constant 0 : index
    %242 = vector.load %arg12[%c32, %c0_76] : memref<64x384xf32, #tpu.memory_space<vmem>>, vector<8x384xf32>
    %243 = arith.truncf %193 : vector<8x128xf32> to vector<8x128xbf16>
    %cst_77 = arith.constant dense<0.000000e+00> : vector<8x384xf32>
    %244 = tpu.matmul %243, %7, %cst_77 {dimension_numbers = #tpu.dot_dimension_numbers<[1], [0], [0], [1], [0, 0, 1, 1], [], []>} : vector<8x128xbf16>, vector<128x384xbf16>, vector<8x384xf32> -> vector<8x384xf32>
    %245 = vector.extract_strided_slice %242 {offsets = [0, 0], sizes = [8, 256], strides = [1, 1]} : vector<8x384xf32> to vector<8x256xf32>
    %246 = vector.extract_strided_slice %244 {offsets = [0, 0], sizes = [8, 256], strides = [1, 1]} : vector<8x384xf32> to vector<8x256xf32>
    %247 = arith.addf %245, %246 : vector<8x256xf32>
    %cst_78 = arith.constant 5.000000e-01 : f32
    %248 = vector.broadcast %cst_78 : f32 to vector<8x256xf32>
    %249 = arith.mulf %248, %247 : vector<8x256xf32>
    %250 = math.tanh %249 : vector<8x256xf32>
    %cst_79 = arith.constant 5.000000e-01 : f32
    %251 = vector.broadcast %cst_79 : f32 to vector<8x256xf32>
    %252 = arith.mulf %251, %250 : vector<8x256xf32>
    %cst_80 = arith.constant 5.000000e-01 : f32
    %253 = vector.broadcast %cst_80 : f32 to vector<8x256xf32>
    %254 = arith.addf %252, %253 : vector<8x256xf32>
    %255 = vector.extract_strided_slice %254 {offsets = [0, 0], sizes = [8, 128], strides = [1, 1]} : vector<8x256xf32> to vector<8x128xf32>
    %256 = vector.extract_strided_slice %254 {offsets = [0, 128], sizes = [8, 128], strides = [1, 1]} : vector<8x256xf32> to vector<8x128xf32>
    %257 = vector.extract_strided_slice %242 {offsets = [0, 256], sizes = [8, 128], strides = [1, 1]} : vector<8x384xf32> to vector<8x128xf32>
    %258 = vector.extract_strided_slice %244 {offsets = [0, 256], sizes = [8, 128], strides = [1, 1]} : vector<8x384xf32> to vector<8x128xf32>
    %259 = arith.addf %258, %8 : vector<8x128xf32>
    %260 = arith.mulf %255, %259 : vector<8x128xf32>
    %261 = arith.addf %257, %260 : vector<8x128xf32>
    %262 = math.tanh %261 : vector<8x128xf32>
    %263 = arith.subf %193, %262 : vector<8x128xf32>
    %264 = arith.mulf %256, %263 : vector<8x128xf32>
    %265 = arith.addf %262, %264 : vector<8x128xf32>
    %266 = tpu.concatenate %193, %217 in 1 : vector<8x128xf32>, vector<8x128xf32> -> vector<8x256xf32>
    %267 = arith.truncf %266 : vector<8x256xf32> to vector<8x256xbf16>
    %cst_81 = arith.constant dense<0.000000e+00> : vector<8x512xf32>
    %268 = tpu.matmul %267, %10, %cst_81 {dimension_numbers = #tpu.dot_dimension_numbers<[1], [0], [0], [1], [0, 0, 1, 1], [], []>} : vector<8x256xbf16>, vector<256x512xbf16>, vector<8x512xf32> -> vector<8x512xf32>
    %269 = vector.extract_strided_slice %268 {offsets = [0, 0], sizes = [8, 256], strides = [1, 1]} : vector<8x512xf32> to vector<8x256xf32>
    %270 = arith.addf %269, %14 : vector<8x256xf32>
    %cst_82 = arith.constant 5.000000e-01 : f32
    %271 = vector.broadcast %cst_82 : f32 to vector<8x256xf32>
    %272 = arith.mulf %271, %270 : vector<8x256xf32>
    %273 = math.tanh %272 : vector<8x256xf32>
    %cst_83 = arith.constant 5.000000e-01 : f32
    %274 = vector.broadcast %cst_83 : f32 to vector<8x256xf32>
    %275 = arith.mulf %274, %273 : vector<8x256xf32>
    %cst_84 = arith.constant 5.000000e-01 : f32
    %276 = vector.broadcast %cst_84 : f32 to vector<8x256xf32>
    %277 = arith.addf %275, %276 : vector<8x256xf32>
    %278 = vector.extract_strided_slice %277 {offsets = [0, 0], sizes = [8, 128], strides = [1, 1]} : vector<8x256xf32> to vector<8x128xf32>
    %279 = vector.extract_strided_slice %277 {offsets = [0, 128], sizes = [8, 128], strides = [1, 1]} : vector<8x256xf32> to vector<8x128xf32>
    %280 = vector.extract_strided_slice %268 {offsets = [0, 256], sizes = [8, 128], strides = [1, 1]} : vector<8x512xf32> to vector<8x128xf32>
    %281 = arith.addf %280, %18 : vector<8x128xf32>
    %282 = vector.extract_strided_slice %268 {offsets = [0, 384], sizes = [8, 128], strides = [1, 1]} : vector<8x512xf32> to vector<8x128xf32>
    %283 = arith.addf %282, %22 : vector<8x128xf32>
    %284 = arith.mulf %278, %283 : vector<8x128xf32>
    %285 = arith.addf %281, %284 : vector<8x128xf32>
    %286 = math.tanh %285 : vector<8x128xf32>
    %287 = arith.subf %217, %286 : vector<8x128xf32>
    %288 = arith.mulf %279, %287 : vector<8x128xf32>
    %289 = arith.addf %286, %288 : vector<8x128xf32>
    %290 = tpu.concatenate %217, %241 in 1 : vector<8x128xf32>, vector<8x128xf32> -> vector<8x256xf32>
    %291 = arith.truncf %290 : vector<8x256xf32> to vector<8x256xbf16>
    %cst_85 = arith.constant dense<0.000000e+00> : vector<8x512xf32>
    %292 = tpu.matmul %291, %12, %cst_85 {dimension_numbers = #tpu.dot_dimension_numbers<[1], [0], [0], [1], [0, 0, 1, 1], [], []>} : vector<8x256xbf16>, vector<256x512xbf16>, vector<8x512xf32> -> vector<8x512xf32>
    %293 = vector.extract_strided_slice %292 {offsets = [0, 0], sizes = [8, 256], strides = [1, 1]} : vector<8x512xf32> to vector<8x256xf32>
    %294 = arith.addf %293, %16 : vector<8x256xf32>
    %cst_86 = arith.constant 5.000000e-01 : f32
    %295 = vector.broadcast %cst_86 : f32 to vector<8x256xf32>
    %296 = arith.mulf %295, %294 : vector<8x256xf32>
    %297 = math.tanh %296 : vector<8x256xf32>
    %cst_87 = arith.constant 5.000000e-01 : f32
    %298 = vector.broadcast %cst_87 : f32 to vector<8x256xf32>
    %299 = arith.mulf %298, %297 : vector<8x256xf32>
    %cst_88 = arith.constant 5.000000e-01 : f32
    %300 = vector.broadcast %cst_88 : f32 to vector<8x256xf32>
    %301 = arith.addf %299, %300 : vector<8x256xf32>
    %302 = vector.extract_strided_slice %301 {offsets = [0, 0], sizes = [8, 128], strides = [1, 1]} : vector<8x256xf32> to vector<8x128xf32>
    %303 = vector.extract_strided_slice %301 {offsets = [0, 128], sizes = [8, 128], strides = [1, 1]} : vector<8x256xf32> to vector<8x128xf32>
    %304 = vector.extract_strided_slice %292 {offsets = [0, 256], sizes = [8, 128], strides = [1, 1]} : vector<8x512xf32> to vector<8x128xf32>
    %305 = arith.addf %304, %20 : vector<8x128xf32>
    %306 = vector.extract_strided_slice %292 {offsets = [0, 384], sizes = [8, 128], strides = [1, 1]} : vector<8x512xf32> to vector<8x128xf32>
    %307 = arith.addf %306, %24 : vector<8x128xf32>
    %308 = arith.mulf %302, %307 : vector<8x128xf32>
    %309 = arith.addf %305, %308 : vector<8x128xf32>
    %310 = math.tanh %309 : vector<8x128xf32>
    %311 = arith.subf %241, %310 : vector<8x128xf32>
    %312 = arith.mulf %303, %311 : vector<8x128xf32>
    %313 = arith.addf %310, %312 : vector<8x128xf32>
    %c40 = arith.constant 40 : index
    %c0_89 = arith.constant 0 : index
    %314 = vector.load %arg12[%c40, %c0_89] : memref<64x384xf32, #tpu.memory_space<vmem>>, vector<8x384xf32>
    %315 = arith.truncf %265 : vector<8x128xf32> to vector<8x128xbf16>
    %cst_90 = arith.constant dense<0.000000e+00> : vector<8x384xf32>
    %316 = tpu.matmul %315, %7, %cst_90 {dimension_numbers = #tpu.dot_dimension_numbers<[1], [0], [0], [1], [0, 0, 1, 1], [], []>} : vector<8x128xbf16>, vector<128x384xbf16>, vector<8x384xf32> -> vector<8x384xf32>
    %317 = vector.extract_strided_slice %314 {offsets = [0, 0], sizes = [8, 256], strides = [1, 1]} : vector<8x384xf32> to vector<8x256xf32>
    %318 = vector.extract_strided_slice %316 {offsets = [0, 0], sizes = [8, 256], strides = [1, 1]} : vector<8x384xf32> to vector<8x256xf32>
    %319 = arith.addf %317, %318 : vector<8x256xf32>
    %cst_91 = arith.constant 5.000000e-01 : f32
    %320 = vector.broadcast %cst_91 : f32 to vector<8x256xf32>
    %321 = arith.mulf %320, %319 : vector<8x256xf32>
    %322 = math.tanh %321 : vector<8x256xf32>
    %cst_92 = arith.constant 5.000000e-01 : f32
    %323 = vector.broadcast %cst_92 : f32 to vector<8x256xf32>
    %324 = arith.mulf %323, %322 : vector<8x256xf32>
    %cst_93 = arith.constant 5.000000e-01 : f32
    %325 = vector.broadcast %cst_93 : f32 to vector<8x256xf32>
    %326 = arith.addf %324, %325 : vector<8x256xf32>
    %327 = vector.extract_strided_slice %326 {offsets = [0, 0], sizes = [8, 128], strides = [1, 1]} : vector<8x256xf32> to vector<8x128xf32>
    %328 = vector.extract_strided_slice %326 {offsets = [0, 128], sizes = [8, 128], strides = [1, 1]} : vector<8x256xf32> to vector<8x128xf32>
    %329 = vector.extract_strided_slice %314 {offsets = [0, 256], sizes = [8, 128], strides = [1, 1]} : vector<8x384xf32> to vector<8x128xf32>
    %330 = vector.extract_strided_slice %316 {offsets = [0, 256], sizes = [8, 128], strides = [1, 1]} : vector<8x384xf32> to vector<8x128xf32>
    %331 = arith.addf %330, %8 : vector<8x128xf32>
    %332 = arith.mulf %327, %331 : vector<8x128xf32>
    %333 = arith.addf %329, %332 : vector<8x128xf32>
    %334 = math.tanh %333 : vector<8x128xf32>
    %335 = arith.subf %265, %334 : vector<8x128xf32>
    %336 = arith.mulf %328, %335 : vector<8x128xf32>
    %337 = arith.addf %334, %336 : vector<8x128xf32>
    %338 = tpu.concatenate %265, %289 in 1 : vector<8x128xf32>, vector<8x128xf32> -> vector<8x256xf32>
    %339 = arith.truncf %338 : vector<8x256xf32> to vector<8x256xbf16>
    %cst_94 = arith.constant dense<0.000000e+00> : vector<8x512xf32>
    %340 = tpu.matmul %339, %10, %cst_94 {dimension_numbers = #tpu.dot_dimension_numbers<[1], [0], [0], [1], [0, 0, 1, 1], [], []>} : vector<8x256xbf16>, vector<256x512xbf16>, vector<8x512xf32> -> vector<8x512xf32>
    %341 = vector.extract_strided_slice %340 {offsets = [0, 0], sizes = [8, 256], strides = [1, 1]} : vector<8x512xf32> to vector<8x256xf32>
    %342 = arith.addf %341, %14 : vector<8x256xf32>
    %cst_95 = arith.constant 5.000000e-01 : f32
    %343 = vector.broadcast %cst_95 : f32 to vector<8x256xf32>
    %344 = arith.mulf %343, %342 : vector<8x256xf32>
    %345 = math.tanh %344 : vector<8x256xf32>
    %cst_96 = arith.constant 5.000000e-01 : f32
    %346 = vector.broadcast %cst_96 : f32 to vector<8x256xf32>
    %347 = arith.mulf %346, %345 : vector<8x256xf32>
    %cst_97 = arith.constant 5.000000e-01 : f32
    %348 = vector.broadcast %cst_97 : f32 to vector<8x256xf32>
    %349 = arith.addf %347, %348 : vector<8x256xf32>
    %350 = vector.extract_strided_slice %349 {offsets = [0, 0], sizes = [8, 128], strides = [1, 1]} : vector<8x256xf32> to vector<8x128xf32>
    %351 = vector.extract_strided_slice %349 {offsets = [0, 128], sizes = [8, 128], strides = [1, 1]} : vector<8x256xf32> to vector<8x128xf32>
    %352 = vector.extract_strided_slice %340 {offsets = [0, 256], sizes = [8, 128], strides = [1, 1]} : vector<8x512xf32> to vector<8x128xf32>
    %353 = arith.addf %352, %18 : vector<8x128xf32>
    %354 = vector.extract_strided_slice %340 {offsets = [0, 384], sizes = [8, 128], strides = [1, 1]} : vector<8x512xf32> to vector<8x128xf32>
    %355 = arith.addf %354, %22 : vector<8x128xf32>
    %356 = arith.mulf %350, %355 : vector<8x128xf32>
    %357 = arith.addf %353, %356 : vector<8x128xf32>
    %358 = math.tanh %357 : vector<8x128xf32>
    %359 = arith.subf %289, %358 : vector<8x128xf32>
    %360 = arith.mulf %351, %359 : vector<8x128xf32>
    %361 = arith.addf %358, %360 : vector<8x128xf32>
    %362 = tpu.concatenate %289, %313 in 1 : vector<8x128xf32>, vector<8x128xf32> -> vector<8x256xf32>
    %363 = arith.truncf %362 : vector<8x256xf32> to vector<8x256xbf16>
    %cst_98 = arith.constant dense<0.000000e+00> : vector<8x512xf32>
    %364 = tpu.matmul %363, %12, %cst_98 {dimension_numbers = #tpu.dot_dimension_numbers<[1], [0], [0], [1], [0, 0, 1, 1], [], []>} : vector<8x256xbf16>, vector<256x512xbf16>, vector<8x512xf32> -> vector<8x512xf32>
    %365 = vector.extract_strided_slice %364 {offsets = [0, 0], sizes = [8, 256], strides = [1, 1]} : vector<8x512xf32> to vector<8x256xf32>
    %366 = arith.addf %365, %16 : vector<8x256xf32>
    %cst_99 = arith.constant 5.000000e-01 : f32
    %367 = vector.broadcast %cst_99 : f32 to vector<8x256xf32>
    %368 = arith.mulf %367, %366 : vector<8x256xf32>
    %369 = math.tanh %368 : vector<8x256xf32>
    %cst_100 = arith.constant 5.000000e-01 : f32
    %370 = vector.broadcast %cst_100 : f32 to vector<8x256xf32>
    %371 = arith.mulf %370, %369 : vector<8x256xf32>
    %cst_101 = arith.constant 5.000000e-01 : f32
    %372 = vector.broadcast %cst_101 : f32 to vector<8x256xf32>
    %373 = arith.addf %371, %372 : vector<8x256xf32>
    %374 = vector.extract_strided_slice %373 {offsets = [0, 0], sizes = [8, 128], strides = [1, 1]} : vector<8x256xf32> to vector<8x128xf32>
    %375 = vector.extract_strided_slice %373 {offsets = [0, 128], sizes = [8, 128], strides = [1, 1]} : vector<8x256xf32> to vector<8x128xf32>
    %376 = vector.extract_strided_slice %364 {offsets = [0, 256], sizes = [8, 128], strides = [1, 1]} : vector<8x512xf32> to vector<8x128xf32>
    %377 = arith.addf %376, %20 : vector<8x128xf32>
    %378 = vector.extract_strided_slice %364 {offsets = [0, 384], sizes = [8, 128], strides = [1, 1]} : vector<8x512xf32> to vector<8x128xf32>
    %379 = arith.addf %378, %24 : vector<8x128xf32>
    %380 = arith.mulf %374, %379 : vector<8x128xf32>
    %381 = arith.addf %377, %380 : vector<8x128xf32>
    %382 = math.tanh %381 : vector<8x128xf32>
    %383 = arith.subf %313, %382 : vector<8x128xf32>
    %384 = arith.mulf %375, %383 : vector<8x128xf32>
    %385 = arith.addf %382, %384 : vector<8x128xf32>
    %c48 = arith.constant 48 : index
    %c0_102 = arith.constant 0 : index
    %386 = vector.load %arg12[%c48, %c0_102] : memref<64x384xf32, #tpu.memory_space<vmem>>, vector<8x384xf32>
    %387 = arith.truncf %337 : vector<8x128xf32> to vector<8x128xbf16>
    %cst_103 = arith.constant dense<0.000000e+00> : vector<8x384xf32>
    %388 = tpu.matmul %387, %7, %cst_103 {dimension_numbers = #tpu.dot_dimension_numbers<[1], [0], [0], [1], [0, 0, 1, 1], [], []>} : vector<8x128xbf16>, vector<128x384xbf16>, vector<8x384xf32> -> vector<8x384xf32>
    %389 = vector.extract_strided_slice %386 {offsets = [0, 0], sizes = [8, 256], strides = [1, 1]} : vector<8x384xf32> to vector<8x256xf32>
    %390 = vector.extract_strided_slice %388 {offsets = [0, 0], sizes = [8, 256], strides = [1, 1]} : vector<8x384xf32> to vector<8x256xf32>
    %391 = arith.addf %389, %390 : vector<8x256xf32>
    %cst_104 = arith.constant 5.000000e-01 : f32
    %392 = vector.broadcast %cst_104 : f32 to vector<8x256xf32>
    %393 = arith.mulf %392, %391 : vector<8x256xf32>
    %394 = math.tanh %393 : vector<8x256xf32>
    %cst_105 = arith.constant 5.000000e-01 : f32
    %395 = vector.broadcast %cst_105 : f32 to vector<8x256xf32>
    %396 = arith.mulf %395, %394 : vector<8x256xf32>
    %cst_106 = arith.constant 5.000000e-01 : f32
    %397 = vector.broadcast %cst_106 : f32 to vector<8x256xf32>
    %398 = arith.addf %396, %397 : vector<8x256xf32>
    %399 = vector.extract_strided_slice %398 {offsets = [0, 0], sizes = [8, 128], strides = [1, 1]} : vector<8x256xf32> to vector<8x128xf32>
    %400 = vector.extract_strided_slice %398 {offsets = [0, 128], sizes = [8, 128], strides = [1, 1]} : vector<8x256xf32> to vector<8x128xf32>
    %401 = vector.extract_strided_slice %386 {offsets = [0, 256], sizes = [8, 128], strides = [1, 1]} : vector<8x384xf32> to vector<8x128xf32>
    %402 = vector.extract_strided_slice %388 {offsets = [0, 256], sizes = [8, 128], strides = [1, 1]} : vector<8x384xf32> to vector<8x128xf32>
    %403 = arith.addf %402, %8 : vector<8x128xf32>
    %404 = arith.mulf %399, %403 : vector<8x128xf32>
    %405 = arith.addf %401, %404 : vector<8x128xf32>
    %406 = math.tanh %405 : vector<8x128xf32>
    %407 = arith.subf %337, %406 : vector<8x128xf32>
    %408 = arith.mulf %400, %407 : vector<8x128xf32>
    %409 = arith.addf %406, %408 : vector<8x128xf32>
    %410 = tpu.concatenate %337, %361 in 1 : vector<8x128xf32>, vector<8x128xf32> -> vector<8x256xf32>
    %411 = arith.truncf %410 : vector<8x256xf32> to vector<8x256xbf16>
    %cst_107 = arith.constant dense<0.000000e+00> : vector<8x512xf32>
    %412 = tpu.matmul %411, %10, %cst_107 {dimension_numbers = #tpu.dot_dimension_numbers<[1], [0], [0], [1], [0, 0, 1, 1], [], []>} : vector<8x256xbf16>, vector<256x512xbf16>, vector<8x512xf32> -> vector<8x512xf32>
    %413 = vector.extract_strided_slice %412 {offsets = [0, 0], sizes = [8, 256], strides = [1, 1]} : vector<8x512xf32> to vector<8x256xf32>
    %414 = arith.addf %413, %14 : vector<8x256xf32>
    %cst_108 = arith.constant 5.000000e-01 : f32
    %415 = vector.broadcast %cst_108 : f32 to vector<8x256xf32>
    %416 = arith.mulf %415, %414 : vector<8x256xf32>
    %417 = math.tanh %416 : vector<8x256xf32>
    %cst_109 = arith.constant 5.000000e-01 : f32
    %418 = vector.broadcast %cst_109 : f32 to vector<8x256xf32>
    %419 = arith.mulf %418, %417 : vector<8x256xf32>
    %cst_110 = arith.constant 5.000000e-01 : f32
    %420 = vector.broadcast %cst_110 : f32 to vector<8x256xf32>
    %421 = arith.addf %419, %420 : vector<8x256xf32>
    %422 = vector.extract_strided_slice %421 {offsets = [0, 0], sizes = [8, 128], strides = [1, 1]} : vector<8x256xf32> to vector<8x128xf32>
    %423 = vector.extract_strided_slice %421 {offsets = [0, 128], sizes = [8, 128], strides = [1, 1]} : vector<8x256xf32> to vector<8x128xf32>
    %424 = vector.extract_strided_slice %412 {offsets = [0, 256], sizes = [8, 128], strides = [1, 1]} : vector<8x512xf32> to vector<8x128xf32>
    %425 = arith.addf %424, %18 : vector<8x128xf32>
    %426 = vector.extract_strided_slice %412 {offsets = [0, 384], sizes = [8, 128], strides = [1, 1]} : vector<8x512xf32> to vector<8x128xf32>
    %427 = arith.addf %426, %22 : vector<8x128xf32>
    %428 = arith.mulf %422, %427 : vector<8x128xf32>
    %429 = arith.addf %425, %428 : vector<8x128xf32>
    %430 = math.tanh %429 : vector<8x128xf32>
    %431 = arith.subf %361, %430 : vector<8x128xf32>
    %432 = arith.mulf %423, %431 : vector<8x128xf32>
    %433 = arith.addf %430, %432 : vector<8x128xf32>
    %434 = tpu.concatenate %361, %385 in 1 : vector<8x128xf32>, vector<8x128xf32> -> vector<8x256xf32>
    %435 = arith.truncf %434 : vector<8x256xf32> to vector<8x256xbf16>
    %cst_111 = arith.constant dense<0.000000e+00> : vector<8x512xf32>
    %436 = tpu.matmul %435, %12, %cst_111 {dimension_numbers = #tpu.dot_dimension_numbers<[1], [0], [0], [1], [0, 0, 1, 1], [], []>} : vector<8x256xbf16>, vector<256x512xbf16>, vector<8x512xf32> -> vector<8x512xf32>
    %437 = vector.extract_strided_slice %436 {offsets = [0, 0], sizes = [8, 256], strides = [1, 1]} : vector<8x512xf32> to vector<8x256xf32>
    %438 = arith.addf %437, %16 : vector<8x256xf32>
    %cst_112 = arith.constant 5.000000e-01 : f32
    %439 = vector.broadcast %cst_112 : f32 to vector<8x256xf32>
    %440 = arith.mulf %439, %438 : vector<8x256xf32>
    %441 = math.tanh %440 : vector<8x256xf32>
    %cst_113 = arith.constant 5.000000e-01 : f32
    %442 = vector.broadcast %cst_113 : f32 to vector<8x256xf32>
    %443 = arith.mulf %442, %441 : vector<8x256xf32>
    %cst_114 = arith.constant 5.000000e-01 : f32
    %444 = vector.broadcast %cst_114 : f32 to vector<8x256xf32>
    %445 = arith.addf %443, %444 : vector<8x256xf32>
    %446 = vector.extract_strided_slice %445 {offsets = [0, 0], sizes = [8, 128], strides = [1, 1]} : vector<8x256xf32> to vector<8x128xf32>
    %447 = vector.extract_strided_slice %445 {offsets = [0, 128], sizes = [8, 128], strides = [1, 1]} : vector<8x256xf32> to vector<8x128xf32>
    %448 = vector.extract_strided_slice %436 {offsets = [0, 256], sizes = [8, 128], strides = [1, 1]} : vector<8x512xf32> to vector<8x128xf32>
    %449 = arith.addf %448, %20 : vector<8x128xf32>
    %450 = vector.extract_strided_slice %436 {offsets = [0, 384], sizes = [8, 128], strides = [1, 1]} : vector<8x512xf32> to vector<8x128xf32>
    %451 = arith.addf %450, %24 : vector<8x128xf32>
    %452 = arith.mulf %446, %451 : vector<8x128xf32>
    %453 = arith.addf %449, %452 : vector<8x128xf32>
    %454 = math.tanh %453 : vector<8x128xf32>
    %455 = arith.subf %385, %454 : vector<8x128xf32>
    %456 = arith.mulf %447, %455 : vector<8x128xf32>
    %457 = arith.addf %454, %456 : vector<8x128xf32>
    %c56 = arith.constant 56 : index
    %c0_115 = arith.constant 0 : index
    %458 = vector.load %arg12[%c56, %c0_115] : memref<64x384xf32, #tpu.memory_space<vmem>>, vector<8x384xf32>
    %459 = arith.truncf %409 : vector<8x128xf32> to vector<8x128xbf16>
    %cst_116 = arith.constant dense<0.000000e+00> : vector<8x384xf32>
    %460 = tpu.matmul %459, %7, %cst_116 {dimension_numbers = #tpu.dot_dimension_numbers<[1], [0], [0], [1], [0, 0, 1, 1], [], []>} : vector<8x128xbf16>, vector<128x384xbf16>, vector<8x384xf32> -> vector<8x384xf32>
    %461 = vector.extract_strided_slice %458 {offsets = [0, 0], sizes = [8, 256], strides = [1, 1]} : vector<8x384xf32> to vector<8x256xf32>
    %462 = vector.extract_strided_slice %460 {offsets = [0, 0], sizes = [8, 256], strides = [1, 1]} : vector<8x384xf32> to vector<8x256xf32>
    %463 = arith.addf %461, %462 : vector<8x256xf32>
    %cst_117 = arith.constant 5.000000e-01 : f32
    %464 = vector.broadcast %cst_117 : f32 to vector<8x256xf32>
    %465 = arith.mulf %464, %463 : vector<8x256xf32>
    %466 = math.tanh %465 : vector<8x256xf32>
    %cst_118 = arith.constant 5.000000e-01 : f32
    %467 = vector.broadcast %cst_118 : f32 to vector<8x256xf32>
    %468 = arith.mulf %467, %466 : vector<8x256xf32>
    %cst_119 = arith.constant 5.000000e-01 : f32
    %469 = vector.broadcast %cst_119 : f32 to vector<8x256xf32>
    %470 = arith.addf %468, %469 : vector<8x256xf32>
    %471 = vector.extract_strided_slice %470 {offsets = [0, 0], sizes = [8, 128], strides = [1, 1]} : vector<8x256xf32> to vector<8x128xf32>
    %472 = vector.extract_strided_slice %470 {offsets = [0, 128], sizes = [8, 128], strides = [1, 1]} : vector<8x256xf32> to vector<8x128xf32>
    %473 = vector.extract_strided_slice %458 {offsets = [0, 256], sizes = [8, 128], strides = [1, 1]} : vector<8x384xf32> to vector<8x128xf32>
    %474 = vector.extract_strided_slice %460 {offsets = [0, 256], sizes = [8, 128], strides = [1, 1]} : vector<8x384xf32> to vector<8x128xf32>
    %475 = arith.addf %474, %8 : vector<8x128xf32>
    %476 = arith.mulf %471, %475 : vector<8x128xf32>
    %477 = arith.addf %473, %476 : vector<8x128xf32>
    %478 = math.tanh %477 : vector<8x128xf32>
    %479 = arith.subf %409, %478 : vector<8x128xf32>
    %480 = arith.mulf %472, %479 : vector<8x128xf32>
    %481 = arith.addf %478, %480 : vector<8x128xf32>
    %482 = tpu.concatenate %409, %433 in 1 : vector<8x128xf32>, vector<8x128xf32> -> vector<8x256xf32>
    %483 = arith.truncf %482 : vector<8x256xf32> to vector<8x256xbf16>
    %cst_120 = arith.constant dense<0.000000e+00> : vector<8x512xf32>
    %484 = tpu.matmul %483, %10, %cst_120 {dimension_numbers = #tpu.dot_dimension_numbers<[1], [0], [0], [1], [0, 0, 1, 1], [], []>} : vector<8x256xbf16>, vector<256x512xbf16>, vector<8x512xf32> -> vector<8x512xf32>
    %485 = vector.extract_strided_slice %484 {offsets = [0, 0], sizes = [8, 256], strides = [1, 1]} : vector<8x512xf32> to vector<8x256xf32>
    %486 = arith.addf %485, %14 : vector<8x256xf32>
    %cst_121 = arith.constant 5.000000e-01 : f32
    %487 = vector.broadcast %cst_121 : f32 to vector<8x256xf32>
    %488 = arith.mulf %487, %486 : vector<8x256xf32>
    %489 = math.tanh %488 : vector<8x256xf32>
    %cst_122 = arith.constant 5.000000e-01 : f32
    %490 = vector.broadcast %cst_122 : f32 to vector<8x256xf32>
    %491 = arith.mulf %490, %489 : vector<8x256xf32>
    %cst_123 = arith.constant 5.000000e-01 : f32
    %492 = vector.broadcast %cst_123 : f32 to vector<8x256xf32>
    %493 = arith.addf %491, %492 : vector<8x256xf32>
    %494 = vector.extract_strided_slice %493 {offsets = [0, 0], sizes = [8, 128], strides = [1, 1]} : vector<8x256xf32> to vector<8x128xf32>
    %495 = vector.extract_strided_slice %493 {offsets = [0, 128], sizes = [8, 128], strides = [1, 1]} : vector<8x256xf32> to vector<8x128xf32>
    %496 = vector.extract_strided_slice %484 {offsets = [0, 256], sizes = [8, 128], strides = [1, 1]} : vector<8x512xf32> to vector<8x128xf32>
    %497 = arith.addf %496, %18 : vector<8x128xf32>
    %498 = vector.extract_strided_slice %484 {offsets = [0, 384], sizes = [8, 128], strides = [1, 1]} : vector<8x512xf32> to vector<8x128xf32>
    %499 = arith.addf %498, %22 : vector<8x128xf32>
    %500 = arith.mulf %494, %499 : vector<8x128xf32>
    %501 = arith.addf %497, %500 : vector<8x128xf32>
    %502 = math.tanh %501 : vector<8x128xf32>
    %503 = arith.subf %433, %502 : vector<8x128xf32>
    %504 = arith.mulf %495, %503 : vector<8x128xf32>
    %505 = arith.addf %502, %504 : vector<8x128xf32>
    %506 = tpu.concatenate %433, %457 in 1 : vector<8x128xf32>, vector<8x128xf32> -> vector<8x256xf32>
    %507 = arith.truncf %506 : vector<8x256xf32> to vector<8x256xbf16>
    %cst_124 = arith.constant dense<0.000000e+00> : vector<8x512xf32>
    %508 = tpu.matmul %507, %12, %cst_124 {dimension_numbers = #tpu.dot_dimension_numbers<[1], [0], [0], [1], [0, 0, 1, 1], [], []>} : vector<8x256xbf16>, vector<256x512xbf16>, vector<8x512xf32> -> vector<8x512xf32>
    %509 = vector.extract_strided_slice %508 {offsets = [0, 0], sizes = [8, 256], strides = [1, 1]} : vector<8x512xf32> to vector<8x256xf32>
    %510 = arith.addf %509, %16 : vector<8x256xf32>
    %cst_125 = arith.constant 5.000000e-01 : f32
    %511 = vector.broadcast %cst_125 : f32 to vector<8x256xf32>
    %512 = arith.mulf %511, %510 : vector<8x256xf32>
    %513 = math.tanh %512 : vector<8x256xf32>
    %cst_126 = arith.constant 5.000000e-01 : f32
    %514 = vector.broadcast %cst_126 : f32 to vector<8x256xf32>
    %515 = arith.mulf %514, %513 : vector<8x256xf32>
    %cst_127 = arith.constant 5.000000e-01 : f32
    %516 = vector.broadcast %cst_127 : f32 to vector<8x256xf32>
    %517 = arith.addf %515, %516 : vector<8x256xf32>
    %518 = vector.extract_strided_slice %517 {offsets = [0, 0], sizes = [8, 128], strides = [1, 1]} : vector<8x256xf32> to vector<8x128xf32>
    %519 = vector.extract_strided_slice %517 {offsets = [0, 128], sizes = [8, 128], strides = [1, 1]} : vector<8x256xf32> to vector<8x128xf32>
    %520 = vector.extract_strided_slice %508 {offsets = [0, 256], sizes = [8, 128], strides = [1, 1]} : vector<8x512xf32> to vector<8x128xf32>
    %521 = arith.addf %520, %20 : vector<8x128xf32>
    %522 = vector.extract_strided_slice %508 {offsets = [0, 384], sizes = [8, 128], strides = [1, 1]} : vector<8x512xf32> to vector<8x128xf32>
    %523 = arith.addf %522, %24 : vector<8x128xf32>
    %524 = arith.mulf %518, %523 : vector<8x128xf32>
    %525 = arith.addf %521, %524 : vector<8x128xf32>
    %526 = math.tanh %525 : vector<8x128xf32>
    %527 = arith.subf %457, %526 : vector<8x128xf32>
    %528 = arith.mulf %519, %527 : vector<8x128xf32>
    %529 = arith.addf %526, %528 : vector<8x128xf32>
    %530 = tpu.concatenate %481, %505 in 1 : vector<8x128xf32>, vector<8x128xf32> -> vector<8x256xf32>
    %531 = arith.truncf %530 : vector<8x256xf32> to vector<8x256xbf16>
    %cst_128 = arith.constant dense<0.000000e+00> : vector<8x512xf32>
    %532 = tpu.matmul %531, %10, %cst_128 {dimension_numbers = #tpu.dot_dimension_numbers<[1], [0], [0], [1], [0, 0, 1, 1], [], []>} : vector<8x256xbf16>, vector<256x512xbf16>, vector<8x512xf32> -> vector<8x512xf32>
    %533 = vector.extract_strided_slice %532 {offsets = [0, 0], sizes = [8, 256], strides = [1, 1]} : vector<8x512xf32> to vector<8x256xf32>
    %534 = arith.addf %533, %14 : vector<8x256xf32>
    %cst_129 = arith.constant 5.000000e-01 : f32
    %535 = vector.broadcast %cst_129 : f32 to vector<8x256xf32>
    %536 = arith.mulf %535, %534 : vector<8x256xf32>
    %537 = math.tanh %536 : vector<8x256xf32>
    %cst_130 = arith.constant 5.000000e-01 : f32
    %538 = vector.broadcast %cst_130 : f32 to vector<8x256xf32>
    %539 = arith.mulf %538, %537 : vector<8x256xf32>
    %cst_131 = arith.constant 5.000000e-01 : f32
    %540 = vector.broadcast %cst_131 : f32 to vector<8x256xf32>
    %541 = arith.addf %539, %540 : vector<8x256xf32>
    %542 = vector.extract_strided_slice %541 {offsets = [0, 0], sizes = [8, 128], strides = [1, 1]} : vector<8x256xf32> to vector<8x128xf32>
    %543 = vector.extract_strided_slice %541 {offsets = [0, 128], sizes = [8, 128], strides = [1, 1]} : vector<8x256xf32> to vector<8x128xf32>
    %544 = vector.extract_strided_slice %532 {offsets = [0, 256], sizes = [8, 128], strides = [1, 1]} : vector<8x512xf32> to vector<8x128xf32>
    %545 = arith.addf %544, %18 : vector<8x128xf32>
    %546 = vector.extract_strided_slice %532 {offsets = [0, 384], sizes = [8, 128], strides = [1, 1]} : vector<8x512xf32> to vector<8x128xf32>
    %547 = arith.addf %546, %22 : vector<8x128xf32>
    %548 = arith.mulf %542, %547 : vector<8x128xf32>
    %549 = arith.addf %545, %548 : vector<8x128xf32>
    %550 = math.tanh %549 : vector<8x128xf32>
    %551 = arith.subf %505, %550 : vector<8x128xf32>
    %552 = arith.mulf %543, %551 : vector<8x128xf32>
    %553 = arith.addf %550, %552 : vector<8x128xf32>
    %554 = tpu.concatenate %505, %529 in 1 : vector<8x128xf32>, vector<8x128xf32> -> vector<8x256xf32>
    %555 = arith.truncf %554 : vector<8x256xf32> to vector<8x256xbf16>
    %cst_132 = arith.constant dense<0.000000e+00> : vector<8x512xf32>
    %556 = tpu.matmul %555, %12, %cst_132 {dimension_numbers = #tpu.dot_dimension_numbers<[1], [0], [0], [1], [0, 0, 1, 1], [], []>} : vector<8x256xbf16>, vector<256x512xbf16>, vector<8x512xf32> -> vector<8x512xf32>
    %557 = vector.extract_strided_slice %556 {offsets = [0, 0], sizes = [8, 256], strides = [1, 1]} : vector<8x512xf32> to vector<8x256xf32>
    %558 = arith.addf %557, %16 : vector<8x256xf32>
    %cst_133 = arith.constant 5.000000e-01 : f32
    %559 = vector.broadcast %cst_133 : f32 to vector<8x256xf32>
    %560 = arith.mulf %559, %558 : vector<8x256xf32>
    %561 = math.tanh %560 : vector<8x256xf32>
    %cst_134 = arith.constant 5.000000e-01 : f32
    %562 = vector.broadcast %cst_134 : f32 to vector<8x256xf32>
    %563 = arith.mulf %562, %561 : vector<8x256xf32>
    %cst_135 = arith.constant 5.000000e-01 : f32
    %564 = vector.broadcast %cst_135 : f32 to vector<8x256xf32>
    %565 = arith.addf %563, %564 : vector<8x256xf32>
    %566 = vector.extract_strided_slice %565 {offsets = [0, 0], sizes = [8, 128], strides = [1, 1]} : vector<8x256xf32> to vector<8x128xf32>
    %567 = vector.extract_strided_slice %565 {offsets = [0, 128], sizes = [8, 128], strides = [1, 1]} : vector<8x256xf32> to vector<8x128xf32>
    %568 = vector.extract_strided_slice %556 {offsets = [0, 256], sizes = [8, 128], strides = [1, 1]} : vector<8x512xf32> to vector<8x128xf32>
    %569 = arith.addf %568, %20 : vector<8x128xf32>
    %570 = vector.extract_strided_slice %556 {offsets = [0, 384], sizes = [8, 128], strides = [1, 1]} : vector<8x512xf32> to vector<8x128xf32>
    %571 = arith.addf %570, %24 : vector<8x128xf32>
    %572 = arith.mulf %566, %571 : vector<8x128xf32>
    %573 = arith.addf %569, %572 : vector<8x128xf32>
    %574 = math.tanh %573 : vector<8x128xf32>
    %575 = arith.subf %529, %574 : vector<8x128xf32>
    %576 = arith.mulf %567, %575 : vector<8x128xf32>
    %577 = arith.addf %574, %576 : vector<8x128xf32>
    %578 = tpu.concatenate %553, %577 in 1 : vector<8x128xf32>, vector<8x128xf32> -> vector<8x256xf32>
    %579 = arith.truncf %578 : vector<8x256xf32> to vector<8x256xbf16>
    %cst_136 = arith.constant dense<0.000000e+00> : vector<8x512xf32>
    %580 = tpu.matmul %579, %12, %cst_136 {dimension_numbers = #tpu.dot_dimension_numbers<[1], [0], [0], [1], [0, 0, 1, 1], [], []>} : vector<8x256xbf16>, vector<256x512xbf16>, vector<8x512xf32> -> vector<8x512xf32>
    %581 = vector.extract_strided_slice %580 {offsets = [0, 0], sizes = [8, 256], strides = [1, 1]} : vector<8x512xf32> to vector<8x256xf32>
    %582 = arith.addf %581, %16 : vector<8x256xf32>
    %cst_137 = arith.constant 5.000000e-01 : f32
    %583 = vector.broadcast %cst_137 : f32 to vector<8x256xf32>
    %584 = arith.mulf %583, %582 : vector<8x256xf32>
    %585 = math.tanh %584 : vector<8x256xf32>
    %cst_138 = arith.constant 5.000000e-01 : f32
    %586 = vector.broadcast %cst_138 : f32 to vector<8x256xf32>
    %587 = arith.mulf %586, %585 : vector<8x256xf32>
    %cst_139 = arith.constant 5.000000e-01 : f32
    %588 = vector.broadcast %cst_139 : f32 to vector<8x256xf32>
    %589 = arith.addf %587, %588 : vector<8x256xf32>
    %590 = vector.extract_strided_slice %589 {offsets = [0, 0], sizes = [8, 128], strides = [1, 1]} : vector<8x256xf32> to vector<8x128xf32>
    %591 = vector.extract_strided_slice %589 {offsets = [0, 128], sizes = [8, 128], strides = [1, 1]} : vector<8x256xf32> to vector<8x128xf32>
    %592 = vector.extract_strided_slice %580 {offsets = [0, 256], sizes = [8, 128], strides = [1, 1]} : vector<8x512xf32> to vector<8x128xf32>
    %593 = arith.addf %592, %20 : vector<8x128xf32>
    %594 = vector.extract_strided_slice %580 {offsets = [0, 384], sizes = [8, 128], strides = [1, 1]} : vector<8x512xf32> to vector<8x128xf32>
    %595 = arith.addf %594, %24 : vector<8x128xf32>
    %596 = arith.mulf %590, %595 : vector<8x128xf32>
    %597 = arith.addf %593, %596 : vector<8x128xf32>
    %598 = math.tanh %597 : vector<8x128xf32>
    %599 = arith.subf %577, %598 : vector<8x128xf32>
    %600 = arith.mulf %591, %599 : vector<8x128xf32>
    %601 = arith.addf %598, %600 : vector<8x128xf32>
    %602 = arith.truncf %601 : vector<8x128xf32> to vector<8x128xbf16>
    %c0_140 = arith.constant 0 : index
    %c0_141 = arith.constant 0 : index
    %603 = vector.load %arg9[%c0_140, %c0_141] : memref<128x128xbf16, #tpu.memory_space<vmem>>, vector<128x128xbf16>
    %cst_142 = arith.constant dense<0.000000e+00> : vector<8x128xf32>
    %604 = tpu.matmul %602, %603, %cst_142 {dimension_numbers = #tpu.dot_dimension_numbers<[1], [0], [0], [1], [0, 0, 1, 1], [], []>} : vector<8x128xbf16>, vector<128x128xbf16>, vector<8x128xf32> -> vector<8x128xf32>
    %c0_143 = arith.constant 0 : index
    %c0_144 = arith.constant 0 : index
    %605 = vector.load %arg10[%c0_143, %c0_144] : memref<1x128xf32, #tpu.memory_space<vmem>>, vector<1x128xf32>
    %606 = vector.broadcast %605 : vector<1x128xf32> to vector<8x128xf32>
    %607 = arith.addf %604, %606 : vector<8x128xf32>
    %cst_145 = arith.constant 0.000000e+00 : f32
    %608 = vector.broadcast %cst_145 : f32 to vector<8x128xf32>
    %609 = arith.maximumf %607, %608 : vector<8x128xf32>
    %c0_146 = arith.constant 0 : index
    %c0_147 = arith.constant 0 : index
    %610 = vector.load %arg11[%c0_146, %c0_147] : memref<8x128xf32, #tpu.memory_space<vmem>>, vector<8x128xf32>
    tpu.vector_store %arg11[%c0_146, %c0_147], %609 {strides = array<i32>} : memref<8x128xf32, #tpu.memory_space<vmem>>, vector<8x128xf32>,
    return
  }
}

</mosaic_0001>

<llo_original>
// kernel: gru_forward.1
$region0: #{gru_forward.1}
  #allocation0 [shape = 'u32[]', space=smem, size = 0x4, offset = 0x4, fixed_abs, tag = 'smem constant byte address 0x4 - core index']
  #allocation1 [shape = 'u32[144,128]{1,0:T(1,128)}', space=vmem, size = 0x12000, scoped, tag = 'internal scratch']
  #allocation2 [shape = 'f32[64,384]{1,0:T(8,128)}', space=vmem, size = 0x18000, scoped, tag = 'scratch operand']
  %s0 = inlined_call_operand.vmem [shape: bf16[64,128], index: 0, kind: input, shape index: {}]
  %s1 = inlined_call_operand.hbm [shape: bf16[128,384], index: 1, kind: input, shape index: {}]
  %s2 = inlined_call_operand.hbm [shape: bf16[128,384], index: 2, kind: input, shape index: {}]
  %s3 = inlined_call_operand.vmem [shape: f32[1,384], index: 3, kind: input, shape index: {}]
  %s4 = inlined_call_operand.vmem [shape: f32[8,128], index: 4, kind: input, shape index: {}]
  %s5 = inlined_call_operand.hbm [shape: bf16[2,256,512], index: 5, kind: input, shape index: {}]
  %s6 = inlined_call_operand.hbm [shape: f32[2,8,256], index: 6, kind: input, shape index: {}]
  %s7 = inlined_call_operand.vmem [shape: f32[2,8,128], index: 7, kind: input, shape index: {}]
  %s8 = inlined_call_operand.hbm [shape: f32[2,8,128], index: 8, kind: input, shape index: {}]
  %s9 = inlined_call_operand.vmem [shape: bf16[128,128], index: 9, kind: input, shape index: {}]
  %s10 = inlined_call_operand.vmem [shape: f32[1,128], index: 10, kind: input, shape index: {}]
  %s11 = inlined_call_operand.vmem [shape: f32[8,128], index: 11, kind: output, shape index: {}]
  %s12 = sld [smem:[#allocation0]]
  $region74: #{gru_forward.1} parent=0
    _
  %s14 = ssub.s32 1, %s12
  %s15 = scalar_select 0, %s14, %s12
  $region1: #{gru_forward.1} parent=0
    #allocation3 [shape = 'u8[98304]{0}', space=vmem, size = 0x18000, scoped, tag = 'input window, operand 1, single buffered']
    #allocation4 [shape = 's32[1]{0}', space=sflag, size = 0x4, scoped, tag = 'scoped memory for gru_forward.1']
    #allocation5 [shape = 'u8[98304]{0}', space=vmem, size = 0x18000, scoped, tag = 'input window, operand 2, single buffered']
    #allocation6 [shape = 's32[1]{0}', space=sflag, size = 0x4, scoped, tag = 'scoped memory for gru_forward.1']
    #allocation7 [shape = 'u8[524288]{0}', space=vmem, size = 0x80000, scoped, tag = 'input window, operand 5, single buffered']
    #allocation8 [shape = 'u8[16384]{0}', space=vmem, size = 0x4000, scoped, tag = 'input window, operand 6, single buffered']
    #allocation9 [shape = 's32[1]{0}', space=sflag, size = 0x4, scoped, tag = 'scoped memory for gru_forward.1']
    #allocation10 [shape = 'u8[8192]{0}', space=vmem, size = 0x2000, scoped, tag = 'input window, operand 8, single buffered']
    %16 = vsyncpa [#allocation4], 0
    %17 = vsyncpa [#allocation6], 0
    %18 = vsyncpa [#allocation9], 0
    // Predicated region
    $region2: #{gru_forward.1} parent=1 // pred_check
      _
    $region3: #{gru_forward.1} parent=1 // pred_check_branch
      %20 = sbr.rel (0) target = $region5
    $region4: #{gru_forward.1} parent=1 // pred_region
      _
    $region5: #{gru_forward.1} parent=1 // pred_fallthru
      _
    // Predicated region
    $region6: #{gru_forward.1} parent=1 // pred_check
      _
    $region7: #{gru_forward.1} parent=1 // pred_check_branch
      %22 = sbr.rel (0) target = $region9
    $region8: #{gru_forward.1} parent=1 // pred_region
      %s24 = ssub.s32 3072, 3072
      %25 = vsyncadd [#allocation4], %s24
      %s26 = sshll.u32 [#allocation3], 4
      %s27 = int_to_ptr.vmem [resolvable:$true] %s26
      %32 = dma.hbm_to_vmem [thread:$0]  %s1, 3072, %s27, [#allocation4], 192, 192, 12
    $region9: #{gru_forward.1} parent=1 // pred_fallthru
      _
    // Predicated region
    $region10: #{gru_forward.1} parent=1 // pred_check
      _
    $region11: #{gru_forward.1} parent=1 // pred_check_branch
      %34 = sbr.rel (0) target = $region13
    $region12: #{gru_forward.1} parent=1 // pred_region
      %s36 = ssub.s32 3072, 3072
      %37 = vsyncadd [#allocation6], %s36
      %s38 = sshll.u32 [#allocation5], 4
      %s39 = int_to_ptr.vmem [resolvable:$true] %s38
      %44 = dma.hbm_to_vmem [thread:$0]  %s2, 3072, %s39, [#allocation6], 192, 192, 12
    $region13: #{gru_forward.1} parent=1 // pred_fallthru
      _
    // Predicated region
    $region14: #{gru_forward.1} parent=1 // pred_check
      _
    $region15: #{gru_forward.1} parent=1 // pred_check_branch
      %46 = sbr.rel (0) target = $region17
    $region16: #{gru_forward.1} parent=1 // pred_region
      _
    $region17: #{gru_forward.1} parent=1 // pred_fallthru
      _
    // Predicated region
    $region18: #{gru_forward.1} parent=1 // pred_check
      _
    $region19: #{gru_forward.1} parent=1 // pred_check_branch
      %48 = sbr.rel (0) target = $region21
    $region20: #{gru_forward.1} parent=1 // pred_region
      _
    $region21: #{gru_forward.1} parent=1 // pred_fallthru
      _
    // Predicated region
    $region22: #{gru_forward.1} parent=1 // pred_check
      _
    $region23: #{gru_forward.1} parent=1 // pred_check_branch
      %50 = sbr.rel (0) target = $region25
    $region24: #{gru_forward.1} parent=1 // pred_region
      %s52 = ssub.s32 16384, 16384
      %53 = vsyncadd [#allocation6], %s52
      %s54 = sshll.u32 [#allocation7], 4
      %s55 = int_to_ptr.vmem [resolvable:$true] %s54
      %60 = dma.hbm_to_vmem [thread:$0]  %s5, 16384, %s55, [#allocation6], 256, 256, 16
    $region25: #{gru_forward.1} parent=1 // pred_fallthru
      _
    // Predicated region
    $region26: #{gru_forward.1} parent=1 // pred_check
      _
    $region27: #{gru_forward.1} parent=1 // pred_check_branch
      %62 = sbr.rel (0) target = $region29
    $region28: #{gru_forward.1} parent=1 // pred_region
      %s64 = ssub.s32 512, 512
      %65 = vsyncadd [#allocation9], %s64
      %s66 = sshll.u32 [#allocation8], 4
      %s67 = int_to_ptr.vmem [resolvable:$true] %s66
      %72 = dma.hbm_to_vmem [thread:$0]  %s6, 512, %s67, [#allocation9], 256, 256, 16
    $region29: #{gru_forward.1} parent=1 // pred_fallthru
      _
    // Predicated region
    $region30: #{gru_forward.1} parent=1 // pred_check
      _
    $region31: #{gru_forward.1} parent=1 // pred_check_branch
      %74 = sbr.rel (0) target = $region33
    $region32: #{gru_forward.1} parent=1 // pred_region
      _
    $region33: #{gru_forward.1} parent=1 // pred_fallthru
      _
    // Predicated region
    $region34: #{gru_forward.1} parent=1 // pred_check
      _
    $region35: #{gru_forward.1} parent=1 // pred_check_branch
      %76 = sbr.rel (0) target = $region37
    $region36: #{gru_forward.1} parent=1 // pred_region
      %s78 = ssub.s32 256, 256
      %79 = vsyncadd [#allocation9], %s78
      %s80 = sshll.u32 [#allocation10], 4
      %s81 = int_to_ptr.vmem [resolvable:$true] %s80
      %86 = dma.hbm_to_vmem [thread:$0]  %s8, 256, %s81, [#allocation9], 128, 128, 8
    $region37: #{gru_forward.1} parent=1 // pred_fallthru
      _
    // Predicated region
    $region38: #{gru_forward.1} parent=1 // pred_check
      _
    $region39: #{gru_forward.1} parent=1 // pred_check_branch
      %88 = sbr.rel (0) target = $region41
    $region40: #{gru_forward.1} parent=1 // pred_region
      _
    $region41: #{gru_forward.1} parent=1 // pred_fallthru
      _
    // Predicated region
    $region42: #{gru_forward.1} parent=1 // pred_check
      _
    $region43: #{gru_forward.1} parent=1 // pred_check_branch
      %90 = sbr.rel (0) target = $region45
    $region44: #{gru_forward.1} parent=1 // pred_region
      _
    $region45: #{gru_forward.1} parent=1 // pred_fallthru
      _
    // Predicated region
    $region46: #{gru_forward.1} parent=1 // pred_check
      _
    $region47: #{gru_forward.1} parent=1 // pred_check_branch
      %92 = sbr.rel (0) target = $region49
    $region48: #{gru_forward.1} parent=1 // pred_region
      %93 = dma.done [#allocation4], 3072
    $region49: #{gru_forward.1} parent=1 // pred_fallthru
      _
    // Predicated region
    $region50: #{gru_forward.1} parent=1 // pred_check
      _
    $region51: #{gru_forward.1} parent=1 // pred_check_branch
      %95 = sbr.rel (0) target = $region53
    $region52: #{gru_forward.1} parent=1 // pred_region
      %96 = dma.done [#allocation6], 3072
    $region53: #{gru_forward.1} parent=1 // pred_fallthru
      _
    // Predicated region
    $region54: #{gru_forward.1} parent=1 // pred_check
      _
    $region55: #{gru_forward.1} parent=1 // pred_check_branch
      %98 = sbr.rel (0) target = $region57
    $region56: #{gru_forward.1} parent=1 // pred_region
      %99 = dma.done [#allocation6], 16384
    $region57: #{gru_forward.1} parent=1 // pred_fallthru
      _
    // Predicated region
    $region58: #{gru_forward.1} parent=1 // pred_check
      _
    $region59: #{gru_forward.1} parent=1 // pred_check_branch
      %101 = sbr.rel (0) target = $region61
    $region60: #{gru_forward.1} parent=1 // pred_region
      %102 = dma.done [#allocation9], 512
    $region61: #{gru_forward.1} parent=1 // pred_fallthru
      _
    // Predicated region
    $region62: #{gru_forward.1} parent=1 // pred_check
      _
    $region63: #{gru_forward.1} parent=1 // pred_check_branch
      %104 = sbr.rel (0) target = $region65
    $region64: #{gru_forward.1} parent=1 // pred_region
      %105 = dma.done [#allocation9], 256
    $region65: #{gru_forward.1} parent=1 // pred_fallthru
      _
    %v107 = vld [vmem:[%s0] sm:$0xf]
    %v108 = vld [vmem:[%s0 + $0x4] sm:$0xf]
    %v109 = vld [vmem:[%s0 + $0x8] sm:$0xf]
    %v110 = vld [vmem:[%s0 + $0xc] sm:$0xf]
    %v111 = vld [vmem:[%s0 + $0x10] sm:$0xf]
    %v112 = vld [vmem:[%s0 + $0x14] sm:$0xf]
    %v113 = vld [vmem:[%s0 + $0x18] sm:$0xf]
    %v114 = vld [vmem:[%s0 + $0x1c] sm:$0xf]
    %v115 = vld [vmem:[#allocation3] sm:$0xff]
    %v116 = vld [vmem:[#allocation3 + $0x8] sm:$0xf]
    %v117 = vld [vmem:[#allocation3 + $0xc] sm:$0xff]
    %v118 = vld [vmem:[#allocation3 + $0x14] sm:$0xf]
    %v119 = vld [vmem:[#allocation3 + $0x18] sm:$0xff]
    %v120 = vld [vmem:[#allocation3 + $0x20] sm:$0xf]
    %v121 = vld [vmem:[#allocation3 + $0x24] sm:$0xff]
    %v122 = vld [vmem:[#allocation3 + $0x2c] sm:$0xf]
    %v123 = vld [vmem:[#allocation3 + $0x30] sm:$0xff]
    %v124 = vld [vmem:[#allocation3 + $0x38] sm:$0xf]
    %v125 = vld [vmem:[#allocation3 + $0x3c] sm:$0xff]
    %v126 = vld [vmem:[#allocation3 + $0x44] sm:$0xf]
    %v127 = vld [vmem:[#allocation3 + $0x48] sm:$0xff]
    %v128 = vld [vmem:[#allocation3 + $0x50] sm:$0xf]
    %v129 = vld [vmem:[#allocation3 + $0x54] sm:$0xff]
    %v130 = vld [vmem:[#allocation3 + $0x5c] sm:$0xf]
    %v131 = vld [vmem:[#allocation3 + $0x60] sm:$0xff]
    %v132 = vld [vmem:[#allocation3 + $0x68] sm:$0xf]
    %v133 = vld [vmem:[#allocation3 + $0x6c] sm:$0xff]
    %v134 = vld [vmem:[#allocation3 + $0x74] sm:$0xf]
    %v135 = vld [vmem:[#allocation3 + $0x78] sm:$0xff]
    %v136 = vld [vmem:[#allocation3 + $0x80] sm:$0xf]
    %v137 = vld [vmem:[#allocation3 + $0x84] sm:$0xff]
    %v138 = vld [vmem:[#allocation3 + $0x8c] sm:$0xf]
    %v139 = vld [vmem:[#allocation3 + $0x90] sm:$0xff]
    %v140 = vld [vmem:[#allocation3 + $0x98] sm:$0xf]
    %v141 = vld [vmem:[#allocation3 + $0x9c] sm:$0xff]
    %v142 = vld [vmem:[#allocation3 + $0xa4] sm:$0xf]
    %v143 = vld [vmem:[#allocation3 + $0xa8] sm:$0xff]
    %v144 = vld [vmem:[#allocation3 + $0xb0] sm:$0xf]
    %v145 = vld [vmem:[#allocation3 + $0xb4] sm:$0xff]
    %v146 = vld [vmem:[#allocation3 + $0xbc] sm:$0xf]
    %v147 = vld [vmem:[%s3] sm:$0x7]
    %v149 = vlaneseq
    %v150 = vshrl.u32 %v149, 7
    %v151 = vsub.s32 0, %v150
    %v152 = vrot.slane %v147, %v151
    %v153 = vlaneseq
    %v154 = vshrl.u32 %v153, 7
    %v155 = vsub.s32 1, %v154
    %v156 = vrot.slane %v147, %v155
    %v157 = vlaneseq
    %v158 = vshrl.u32 %v157, 7
    %v159 = vsub.s32 2, %v158
    %v160 = vrot.slane %v147, %v159
    %v172 = vunpack.c.l.b16 %v107
    %v173 = vunpack.c.l.b16 %v108
    %v174 = vunpack.c.l.b16 %v109
    %v175 = vunpack.c.l.b16 %v110
    %v176 = vunpack.c.l.b16 %v111
    %v177 = vunpack.c.l.b16 %v112
    %v178 = vunpack.c.l.b16 %v113
    %v179 = vunpack.c.l.b16 %v114
    %v180 = vpack.c.b16 %v173, %v172
    %v181 = vpack.c.b16 %v175, %v174
    %v182 = vpack.c.b16 %v177, %v176
    %v183 = vpack.c.b16 %v179, %v178
    %v220 = vunpack.c.l.b16 %v115
    %v221 = vunpack.c.h.b16 %v115
    %v222 = vunpack.c.l.b16 %v116
    %v223 = vunpack.c.l.b16 %v117
    %v224 = vunpack.c.h.b16 %v117
    %v225 = vunpack.c.l.b16 %v118
    %v226 = vunpack.c.l.b16 %v119
    %v227 = vunpack.c.h.b16 %v119
    %v228 = vunpack.c.l.b16 %v120
    %v229 = vunpack.c.l.b16 %v121
    %v230 = vunpack.c.h.b16 %v121
    %v231 = vunpack.c.l.b16 %v122
    %v232 = vunpack.c.l.b16 %v123
    %v233 = vunpack.c.h.b16 %v123
    %v234 = vunpack.c.l.b16 %v124
    %v235 = vunpack.c.l.b16 %v125
    %v236 = vunpack.c.h.b16 %v125
    %v237 = vunpack.c.l.b16 %v126
    %v238 = vunpack.c.l.b16 %v127
    %v239 = vunpack.c.h.b16 %v127
    %v240 = vunpack.c.l.b16 %v128
    %v241 = vunpack.c.l.b16 %v129
    %v242 = vunpack.c.h.b16 %v129
    %v243 = vunpack.c.l.b16 %v130
    %v244 = vunpack.c.l.b16 %v131
    %v245 = vunpack.c.h.b16 %v131
    %v246 = vunpack.c.l.b16 %v132
    %v247 = vunpack.c.l.b16 %v133
    %v248 = vunpack.c.h.b16 %v133
    %v249 = vunpack.c.l.b16 %v134
    %v250 = vunpack.c.l.b16 %v135
    %v251 = vunpack.c.h.b16 %v135
    %v252 = vunpack.c.l.b16 %v136
    %v253 = vunpack.c.l.b16 %v137
    %v254 = vunpack.c.h.b16 %v137
    %v255 = vunpack.c.l.b16 %v138
    %v256 = vunpack.c.l.b16 %v139
    %v257 = vunpack.c.h.b16 %v139
    %v258 = vunpack.c.l.b16 %v140
    %v259 = vunpack.c.l.b16 %v141
    %v260 = vunpack.c.h.b16 %v141
    %v261 = vunpack.c.l.b16 %v142
    %v262 = vunpack.c.l.b16 %v143
    %v263 = vunpack.c.h.b16 %v143
    %v264 = vunpack.c.l.b16 %v144
    %v265 = vunpack.c.l.b16 %v145
    %v266 = vunpack.c.h.b16 %v145
    %v267 = vunpack.c.l.b16 %v146
    %v268 = vpack.c.b16 %v223, %v220
    %v269 = vpack.c.b16 %v224, %v221
    %v270 = vpack.c.b16 %v225, %v222
    %v271 = vpack.c.b16 %v229, %v226
    %v272 = vpack.c.b16 %v230, %v227
    %v273 = vpack.c.b16 %v231, %v228
    %v274 = vpack.c.b16 %v235, %v232
    %v275 = vpack.c.b16 %v236, %v233
    %v276 = vpack.c.b16 %v237, %v234
    %v277 = vpack.c.b16 %v241, %v238
    %v278 = vpack.c.b16 %v242, %v239
    %v279 = vpack.c.b16 %v243, %v240
    %v280 = vpack.c.b16 %v247, %v244
    %v281 = vpack.c.b16 %v248, %v245
    %v282 = vpack.c.b16 %v249, %v246
    %v283 = vpack.c.b16 %v253, %v250
    %v284 = vpack.c.b16 %v254, %v251
    %v285 = vpack.c.b16 %v255, %v252
    %v286 = vpack.c.b16 %v259, %v256
    %v287 = vpack.c.b16 %v260, %v257
    %v288 = vpack.c.b16 %v261, %v258
    %v289 = vpack.c.b16 %v265, %v262
    %v290 = vpack.c.b16 %v266, %v263
    %v291 = vpack.c.b16 %v267, %v264
    %316 = vmatprep.subr.bf16.mxu0 %v290
    %317 = vmatpush1.bf16.msra.mxu0 %v289
    %318 = vmatprep.subr.bf16.mxu0 %v287
    %319 = vmatpush1.bf16.msra.mxu0 %v286
    %320 = vmatprep.subr.bf16.mxu0 %v284
    %321 = vmatpush1.bf16.msra.mxu0 %v283
    %322 = vmatprep.subr.bf16.mxu0 %v281
    %323 = vmatpush1.bf16.msra.mxu0 %v280
    %324 = vmatprep.subr.bf16.mxu0 %v278
    %325 = vmatpush1.bf16.msra.mxu0 %v277
    %326 = vmatprep.subr.bf16.mxu0 %v275
    %327 = vmatpush1.bf16.msra.mxu0 %v274
    %328 = vmatprep.subr.bf16.mxu0 %v272
    %329 = vmatpush1.bf16.msra.mxu0 %v271
    %330 = vmatprep.subr.bf16.mxu0 %v269
    %331 = vmatpush1.bf16.msra.mxu0 %v268
    %332 = vmatprep.subr.bf16.mxu0 0
    %333 = vmatpush2.bf16.msra.mxu0 0
    %334 = vmatprep.subr.bf16.mxu0 0
    %335 = vmatpush2.bf16.msra.mxu0 0
    %336 = vmatprep.subr.bf16.mxu0 0
    %337 = vmatpush2.bf16.msra.mxu0 0
    %338 = vmatprep.subr.bf16.mxu0 0
    %339 = vmatpush2.bf16.msra.mxu0 0
    %340 = vmatprep.subr.bf16.mxu0 0
    %341 = vmatpush2.bf16.msra.mxu0 0
    %342 = vmatprep.subr.bf16.mxu0 0
    %343 = vmatpush2.bf16.msra.mxu0 0
    %344 = vmatprep.subr.bf16.mxu0 0
    %345 = vmatpush2.bf16.msra.mxu0 0
    %346 = vmatprep.subr.bf16.mxu0 0
    %347 = vmatpush2.bf16.msra.mxu0 0
    %348 = vmatprep.mubr.bf16.mxu0 0
    %349 = vmatmul.mubr.bf16.gmra.mxu0 %v180
    %v350 = vpop.f32.mrf.mxu0
    %v351 = vadd.f32 %v152, %v350
    %v352 = vpop.f32.mrf.mxu0
    %v353 = vadd.f32 %v156, %v352
    %v354 = vpop.f32.mrf.mxu0
    %v355 = vadd.f32 %v152, %v354
    %v356 = vpop.f32.mrf.mxu0
    %v357 = vadd.f32 %v156, %v356
    %358 = vmatprep.mubr.bf16.mxu0 0
    %359 = vmatmul.mubr.bf16.gmra.mxu0 %v181
    %v360 = vpop.f32.mrf.mxu0
    %v361 = vadd.f32 %v152, %v360
    %v362 = vpop.f32.mrf.mxu0
    %v363 = vadd.f32 %v156, %v362
    %v364 = vpop.f32.mrf.mxu0
    %v365 = vadd.f32 %v152, %v364
    %v366 = vpop.f32.mrf.mxu0
    %v367 = vadd.f32 %v156, %v366
    %368 = vmatprep.mubr.bf16.mxu0 0
    %369 = vmatmul.mubr.bf16.gmra.mxu0 %v182
    %v370 = vpop.f32.mrf.mxu0
    %v371 = vadd.f32 %v152, %v370
    %v372 = vpop.f32.mrf.mxu0
    %v373 = vadd.f32 %v156, %v372
    %v374 = vpop.f32.mrf.mxu0
    %v375 = vadd.f32 %v152, %v374
    %v376 = vpop.f32.mrf.mxu0
    %v377 = vadd.f32 %v156, %v376
    %378 = vmatprep.mubr.bf16.mxu0 0
    %379 = vmatmul.mubr.bf16.gmra.mxu0 %v183
    %v380 = vpop.f32.mrf.mxu0
    %v381 = vadd.f32 %v152, %v380
    %v382 = vpop.f32.mrf.mxu0
    %v383 = vadd.f32 %v156, %v382
    %v384 = vpop.f32.mrf.mxu0
    %v385 = vadd.f32 %v152, %v384
    %v386 = vpop.f32.mrf.mxu0
    %v387 = vadd.f32 %v156, %v386
    %388 = vdwg.mxu0
    %389 = vmatprep.subr.bf16.mxu0 0
    %390 = vmatpush1.bf16.msra.mxu0 %v291
    %391 = vmatprep.subr.bf16.mxu0 0
    %392 = vmatpush1.bf16.msra.mxu0 %v288
    %393 = vmatprep.subr.bf16.mxu0 0
    %394 = vmatpush1.bf16.msra.mxu0 %v285
    %395 = vmatprep.subr.bf16.mxu0 0
    %396 = vmatpush1.bf16.msra.mxu0 %v282
    %397 = vmatprep.subr.bf16.mxu0 0
    %398 = vmatpush1.bf16.msra.mxu0 %v279
    %399 = vmatprep.subr.bf16.mxu0 0
    %400 = vmatpush1.bf16.msra.mxu0 %v276
    %401 = vmatprep.subr.bf16.mxu0 0
    %402 = vmatpush1.bf16.msra.mxu0 %v273
    %403 = vmatprep.subr.bf16.mxu0 0
    %404 = vmatpush1.bf16.msra.mxu0 %v270
    %405 = vmatprep.subr.bf16.mxu0 0
    %406 = vmatpush2.bf16.msra.mxu0 0
    %407 = vmatprep.subr.bf16.mxu0 0
    %408 = vmatpush2.bf16.msra.mxu0 0
    %409 = vmatprep.subr.bf16.mxu0 0
    %410 = vmatpush2.bf16.msra.mxu0 0
    %411 = vmatprep.subr.bf16.mxu0 0
    %412 = vmatpush2.bf16.msra.mxu0 0
    %413 = vmatprep.subr.bf16.mxu0 0
    %414 = vmatpush2.bf16.msra.mxu0 0
    %415 = vmatprep.subr.bf16.mxu0 0
    %416 = vmatpush2.bf16.msra.mxu0 0
    %417 = vmatprep.subr.bf16.mxu0 0
    %418 = vmatpush2.bf16.msra.mxu0 0
    %419 = vmatprep.subr.bf16.mxu0 0
    %420 = vmatpush2.bf16.msra.mxu0 0
    %421 = vmatprep.mubr.bf16.mxu0 0
    %422 = vmatmul.mubr.bf16.gmra.mxu0 %v180
    %v423 = vpop.f32.mrf.mxu0
    %v424 = vadd.f32 %v160, %v423
    %v425 = vpop.f32.mrf.mxu0
    %v426 = vpop.f32.mrf.mxu0
    %v427 = vadd.f32 %v160, %v426
    %v428 = vpop.f32.mrf.mxu0
    %429 = vmatprep.mubr.bf16.mxu0 0
    %430 = vmatmul.mubr.bf16.gmra.mxu0 %v181
    %v431 = vpop.f32.mrf.mxu0
    %v432 = vadd.f32 %v160, %v431
    %v433 = vpop.f32.mrf.mxu0
    %v434 = vpop.f32.mrf.mxu0
    %v435 = vadd.f32 %v160, %v434
    %v436 = vpop.f32.mrf.mxu0
    %437 = vmatprep.mubr.bf16.mxu0 0
    %438 = vmatmul.mubr.bf16.gmra.mxu0 %v182
    %v439 = vpop.f32.mrf.mxu0
    %v440 = vadd.f32 %v160, %v439
    %v441 = vpop.f32.mrf.mxu0
    %v442 = vpop.f32.mrf.mxu0
    %v443 = vadd.f32 %v160, %v442
    %v444 = vpop.f32.mrf.mxu0
    %445 = vmatprep.mubr.bf16.mxu0 0
    %446 = vmatmul.mubr.bf16.gmra.mxu0 %v183
    %v447 = vpop.f32.mrf.mxu0
    %v448 = vadd.f32 %v160, %v447
    %v449 = vpop.f32.mrf.mxu0
    %v450 = vpop.f32.mrf.mxu0
    %v451 = vadd.f32 %v160, %v450
    %v452 = vpop.f32.mrf.mxu0
    %453 = vdwg.mxu0
    %454 = vst [vmem:[#allocation2] sm:$0xff] %v351
    %455 = vst [vmem:[#allocation2 + $0x8] sm:$0xff] %v353
    %456 = vst [vmem:[#allocation2 + $0x10] sm:$0xff] %v424
    %457 = vst [vmem:[#allocation2 + $0x18] sm:$0xff] %v355
    %458 = vst [vmem:[#allocation2 + $0x20] sm:$0xff] %v357
    %459 = vst [vmem:[#allocation2 + $0x28] sm:$0xff] %v427
    %460 = vst [vmem:[#allocation2 + $0x30] sm:$0xff] %v361
    %461 = vst [vmem:[#allocation2 + $0x38] sm:$0xff] %v363
    %462 = vst [vmem:[#allocation2 + $0x40] sm:$0xff] %v432
    %463 = vst [vmem:[#allocation2 + $0x48] sm:$0xff] %v365
    %464 = vst [vmem:[#allocation2 + $0x50] sm:$0xff] %v367
    %465 = vst [vmem:[#allocation2 + $0x58] sm:$0xff] %v435
    %466 = vst [vmem:[#allocation2 + $0x60] sm:$0xff] %v371
    %467 = vst [vmem:[#allocation2 + $0x68] sm:$0xff] %v373
    %468 = vst [vmem:[#allocation2 + $0x70] sm:$0xff] %v440
    %469 = vst [vmem:[#allocation2 + $0x78] sm:$0xff] %v375
    %470 = vst [vmem:[#allocation2 + $0x80] sm:$0xff] %v377
    %471 = vst [vmem:[#allocation2 + $0x88] sm:$0xff] %v443
    %472 = vst [vmem:[#allocation2 + $0x90] sm:$0xff] %v381
    %473 = vst [vmem:[#allocation2 + $0x98] sm:$0xff] %v383
    %474 = vst [vmem:[#allocation2 + $0xa0] sm:$0xff] %v448
    %475 = vst [vmem:[#allocation2 + $0xa8] sm:$0xff] %v385
    %476 = vst [vmem:[#allocation2 + $0xb0] sm:$0xff] %v387
    %477 = vst [vmem:[#allocation2 + $0xb8] sm:$0xff] %v451
    %v478 = vld [vmem:[#allocation5] sm:$0xff]
    %v479 = vld [vmem:[#allocation5 + $0x8] sm:$0xf]
    %v480 = vld [vmem:[#allocation5 + $0xc] sm:$0xff]
    %v481 = vld [vmem:[#allocation5 + $0x14] sm:$0xf]
    %v482 = vld [vmem:[#allocation5 + $0x18] sm:$0xff]
    %v483 = vld [vmem:[#allocation5 + $0x20] sm:$0xf]
    %v484 = vld [vmem:[#allocation5 + $0x24] sm:$0xff]
    %v485 = vld [vmem:[#allocation5 + $0x2c] sm:$0xf]
    %v486 = vld [vmem:[#allocation5 + $0x30] sm:$0xff]
    %v487 = vld [vmem:[#allocation5 + $0x38] sm:$0xf]
    %v488 = vld [vmem:[#allocation5 + $0x3c] sm:$0xff]
    %v489 = vld [vmem:[#allocation5 + $0x44] sm:$0xf]
    %v490 = vld [vmem:[#allocation5 + $0x48] sm:$0xff]
    %v491 = vld [vmem:[#allocation5 + $0x50] sm:$0xf]
    %v492 = vld [vmem:[#allocation5 + $0x54] sm:$0xff]
    %v493 = vld [vmem:[#allocation5 + $0x5c] sm:$0xf]
    %v494 = vld [vmem:[#allocation5 + $0x60] sm:$0xff]
    %v495 = vld [vmem:[#allocation5 + $0x68] sm:$0xf]
    %v496 = vld [vmem:[#allocation5 + $0x6c] sm:$0xff]
    %v497 = vld [vmem:[#allocation5 + $0x74] sm:$0xf]
    %v498 = vld [vmem:[#allocation5 + $0x78] sm:$0xff]
    %v499 = vld [vmem:[#allocation5 + $0x80] sm:$0xf]
    %v500 = vld [vmem:[#allocation5 + $0x84] sm:$0xff]
    %v501 = vld [vmem:[#allocation5 + $0x8c] sm:$0xf]
    %v502 = vld [vmem:[#allocation5 + $0x90] sm:$0xff]
    %v503 = vld [vmem:[#allocation5 + $0x98] sm:$0xf]
    %v504 = vld [vmem:[#allocation5 + $0x9c] sm:$0xff]
    %v505 = vld [vmem:[#allocation5 + $0xa4] sm:$0xf]
    %v506 = vld [vmem:[#allocation5 + $0xa8] sm:$0xff]
    %v507 = vld [vmem:[#allocation5 + $0xb0] sm:$0xf]
    %v508 = vld [vmem:[#allocation5 + $0xb4] sm:$0xff]
    %v509 = vld [vmem:[#allocation5 + $0xbc] sm:$0xf]
    %v510 = vld [vmem:[%s4] sm:$0xff]
    %v511 = vld [vmem:[#allocation7] sm:$0xff]
    %v512 = vld [vmem:[#allocation7 + $0x8] sm:$0xff]
    %v513 = vld [vmem:[#allocation7 + $0x10] sm:$0xff]
    %v514 = vld [vmem:[#allocation7 + $0x18] sm:$0xff]
    %v515 = vld [vmem:[#allocation7 + $0x20] sm:$0xff]
    %v516 = vld [vmem:[#allocation7 + $0x28] sm:$0xff]
    %v517 = vld [vmem:[#allocation7 + $0x30] sm:$0xff]
    %v518 = vld [vmem:[#allocation7 + $0x38] sm:$0xff]
    %v519 = vld [vmem:[#allocation7 + $0x40] sm:$0xff]
    %v520 = vld [vmem:[#allocation7 + $0x48] sm:$0xff]
    %v521 = vld [vmem:[#allocation7 + $0x50] sm:$0xff]
    %v522 = vld [vmem:[#allocation7 + $0x58] sm:$0xff]
    %v523 = vld [vmem:[#allocation7 + $0x60] sm:$0xff]
    %v524 = vld [vmem:[#allocation7 + $0x68] sm:$0xff]
    %v525 = vld [vmem:[#allocation7 + $0x70] sm:$0xff]
    %v526 = vld [vmem:[#allocation7 + $0x78] sm:$0xff]
    %v527 = vld [vmem:[#allocation7 + $0x80] sm:$0xff]
    %v528 = vld [vmem:[#allocation7 + $0x88] sm:$0xff]
    %v529 = vld [vmem:[#allocation7 + $0x90] sm:$0xff]
    %v530 = vld [vmem:[#allocation7 + $0x98] sm:$0xff]
    %v531 = vld [vmem:[#allocation7 + $0xa0] sm:$0xff]
    %v532 = vld [vmem:[#allocation7 + $0xa8] sm:$0xff]
    %v533 = vld [vmem:[#allocation7 + $0xb0] sm:$0xff]
    %v534 = vld [vmem:[#allocation7 + $0xb8] sm:$0xff]
    %v535 = vld [vmem:[#allocation7 + $0xc0] sm:$0xff]
    %v536 = vld [vmem:[#allocation7 + $0xc8] sm:$0xff]
    %v537 = vld [vmem:[#allocation7 + $0xd0] sm:$0xff]
    %v538 = vld [vmem:[#allocation7 + $0xd8] sm:$0xff]
    %v539 = vld [vmem:[#allocation7 + $0xe0] sm:$0xff]
    %v540 = vld [vmem:[#allocation7 + $0xe8] sm:$0xff]
    %v541 = vld [vmem:[#allocation7 + $0xf0] sm:$0xff]
    %v542 = vld [vmem:[#allocation7 + $0xf8] sm:$0xff]
    %v543 = vld [vmem:[#allocation7 + $0x100] sm:$0xff]
    %v544 = vld [vmem:[#allocation7 + $0x108] sm:$0xff]
    %v545 = vld [vmem:[#allocation7 + $0x110] sm:$0xff]
    %v546 = vld [vmem:[#allocation7 + $0x118] sm:$0xff]
    %v547 = vld [vmem:[#allocation7 + $0x120] sm:$0xff]
    %v548 = vld [vmem:[#allocation7 + $0x128] sm:$0xff]
    %v549 = vld [vmem:[#allocation7 + $0x130] sm:$0xff]
    %v550 = vld [vmem:[#allocation7 + $0x138] sm:$0xff]
    %v551 = vld [vmem:[#allocation7 + $0x140] sm:$0xff]
    %v552 = vld [vmem:[#allocation7 + $0x148] sm:$0xff]
    %v553 = vld [vmem:[#allocation7 + $0x150] sm:$0xff]
    %v554 = vld [vmem:[#allocation7 + $0x158] sm:$0xff]
    %v555 = vld [vmem:[#allocation7 + $0x160] sm:$0xff]
    %v556 = vld [vmem:[#allocation7 + $0x168] sm:$0xff]
    %v557 = vld [vmem:[#allocation7 + $0x170] sm:$0xff]
    %v558 = vld [vmem:[#allocation7 + $0x178] sm:$0xff]
    %v559 = vld [vmem:[#allocation7 + $0x180] sm:$0xff]
    %v560 = vld [vmem:[#allocation7 + $0x188] sm:$0xff]
    %v561 = vld [vmem:[#allocation7 + $0x190] sm:$0xff]
    %v562 = vld [vmem:[#allocation7 + $0x198] sm:$0xff]
    %v563 = vld [vmem:[#allocation7 + $0x1a0] sm:$0xff]
    %v564 = vld [vmem:[#allocation7 + $0x1a8] sm:$0xff]
    %v565 = vld [vmem:[#allocation7 + $0x1b0] sm:$0xff]
    %v566 = vld [vmem:[#allocation7 + $0x1b8] sm:$0xff]
    %v567 = vld [vmem:[#allocation7 + $0x1c0] sm:$0xff]
    %v568 = vld [vmem:[#allocation7 + $0x1c8] sm:$0xff]
    %v569 = vld [vmem:[#allocation7 + $0x1d0] sm:$0xff]
    %v570 = vld [vmem:[#allocation7 + $0x1d8] sm:$0xff]
    %v571 = vld [vmem:[#allocation7 + $0x1e0] sm:$0xff]
    %v572 = vld [vmem:[#allocation7 + $0x1e8] sm:$0xff]
    %v573 = vld [vmem:[#allocation7 + $0x1f0] sm:$0xff]
    %v574 = vld [vmem:[#allocation7 + $0x1f8] sm:$0xff]
    %s575 = scalar_lea.vmem [#allocation7], 512
    %v576 = vld [vmem:[%s575] sm:$0xff]
    %v577 = vld [vmem:[%s575 + $0x8] sm:$0xff]
    %v578 = vld [vmem:[%s575 + $0x10] sm:$0xff]
    %v579 = vld [vmem:[%s575 + $0x18] sm:$0xff]
    %v580 = vld [vmem:[%s575 + $0x20] sm:$0xff]
    %v581 = vld [vmem:[%s575 + $0x28] sm:$0xff]
    %v582 = vld [vmem:[%s575 + $0x30] sm:$0xff]
    %v583 = vld [vmem:[%s575 + $0x38] sm:$0xff]
    %v584 = vld [vmem:[%s575 + $0x40] sm:$0xff]
    %v585 = vld [vmem:[%s575 + $0x48] sm:$0xff]
    %v586 = vld [vmem:[%s575 + $0x50] sm:$0xff]
    %v587 = vld [vmem:[%s575 + $0x58] sm:$0xff]
    %v588 = vld [vmem:[%s575 + $0x60] sm:$0xff]
    %v589 = vld [vmem:[%s575 + $0x68] sm:$0xff]
    %v590 = vld [vmem:[%s575 + $0x70] sm:$0xff]
    %v591 = vld [vmem:[%s575 + $0x78] sm:$0xff]
    %v592 = vld [vmem:[%s575 + $0x80] sm:$0xff]
    %v593 = vld [vmem:[%s575 + $0x88] sm:$0xff]
    %v594 = vld [vmem:[%s575 + $0x90] sm:$0xff]
    %v595 = vld [vmem:[%s575 + $0x98] sm:$0xff]
    %v596 = vld [vmem:[%s575 + $0xa0] sm:$0xff]
    %v597 = vld [vmem:[%s575 + $0xa8] sm:$0xff]
    %v598 = vld [vmem:[%s575 + $0xb0] sm:$0xff]
    %v599 = vld [vmem:[%s575 + $0xb8] sm:$0xff]
    %v600 = vld [vmem:[%s575 + $0xc0] sm:$0xff]
    %v601 = vld [vmem:[%s575 + $0xc8] sm:$0xff]
    %v602 = vld [vmem:[%s575 + $0xd0] sm:$0xff]
    %v603 = vld [vmem:[%s575 + $0xd8] sm:$0xff]
    %v604 = vld [vmem:[%s575 + $0xe0] sm:$0xff]
    %v605 = vld [vmem:[%s575 + $0xe8] sm:$0xff]
    %v606 = vld [vmem:[%s575 + $0xf0] sm:$0xff]
    %v607 = vld [vmem:[%s575 + $0xf8] sm:$0xff]
    %v608 = vld [vmem:[%s575 + $0x100] sm:$0xff]
    %v609 = vld [vmem:[%s575 + $0x108] sm:$0xff]
    %v610 = vld [vmem:[%s575 + $0x110] sm:$0xff]
    %v611 = vld [vmem:[%s575 + $0x118] sm:$0xff]
    %v612 = vld [vmem:[%s575 + $0x120] sm:$0xff]
    %v613 = vld [vmem:[%s575 + $0x128] sm:$0xff]
    %v614 = vld [vmem:[%s575 + $0x130] sm:$0xff]
    %v615 = vld [vmem:[%s575 + $0x138] sm:$0xff]
    %v616 = vld [vmem:[%s575 + $0x140] sm:$0xff]
    %v617 = vld [vmem:[%s575 + $0x148] sm:$0xff]
    %v618 = vld [vmem:[%s575 + $0x150] sm:$0xff]
    %v619 = vld [vmem:[%s575 + $0x158] sm:$0xff]
    %v620 = vld [vmem:[%s575 + $0x160] sm:$0xff]
    %v621 = vld [vmem:[%s575 + $0x168] sm:$0xff]
    %v622 = vld [vmem:[%s575 + $0x170] sm:$0xff]
    %v623 = vld [vmem:[%s575 + $0x178] sm:$0xff]
    %v624 = vld [vmem:[%s575 + $0x180] sm:$0xff]
    %v625 = vld [vmem:[%s575 + $0x188] sm:$0xff]
    %v626 = vld [vmem:[%s575 + $0x190] sm:$0xff]
    %v627 = vld [vmem:[%s575 + $0x198] sm:$0xff]
    %v628 = vld [vmem:[%s575 + $0x1a0] sm:$0xff]
    %v629 = vld [vmem:[%s575 + $0x1a8] sm:$0xff]
    %v630 = vld [vmem:[%s575 + $0x1b0] sm:$0xff]
    %v631 = vld [vmem:[%s575 + $0x1b8] sm:$0xff]
    %v632 = vld [vmem:[%s575 + $0x1c0] sm:$0xff]
    %v633 = vld [vmem:[%s575 + $0x1c8] sm:$0xff]
    %v634 = vld [vmem:[%s575 + $0x1d0] sm:$0xff]
    %v635 = vld [vmem:[%s575 + $0x1d8] sm:$0xff]
    %v636 = vld [vmem:[%s575 + $0x1e0] sm:$0xff]
    %v637 = vld [vmem:[%s575 + $0x1e8] sm:$0xff]
    %v638 = vld [vmem:[%s575 + $0x1f0] sm:$0xff]
    %v639 = vld [vmem:[%s575 + $0x1f8] sm:$0xff]
    %v640 = vld [vmem:[#allocation8] sm:$0xff]
    %v641 = vld [vmem:[#allocation8 + $0x8] sm:$0xff]
    %s642 = scalar_lea.vmem [#allocation8], 16
    %v643 = vld [vmem:[%s642] sm:$0xff]
    %v644 = vld [vmem:[%s642 + $0x8] sm:$0xff]
    %v645 = vld [vmem:[%s7] sm:$0xff]
    %s646 = scalar_lea.vmem %s7, 8
    %v647 = vld [vmem:[%s646] sm:$0xff]
    %v648 = vld [vmem:[#allocation10] sm:$0xff]
    %s649 = scalar_lea.vmem [#allocation10], 8
    %v650 = vld [vmem:[%s649] sm:$0xff]
    %v651 = vld [vmem:[#allocation2] sm:$0xff]
    %v652 = vld [vmem:[#allocation2 + $0x8] sm:$0xff]
    %v653 = vld [vmem:[#allocation2 + $0x10] sm:$0xff]
    %v686 = vunpack.c.l.b16 %v478
    %v687 = vunpack.c.h.b16 %v478
    %v688 = vunpack.c.l.b16 %v479
    %v689 = vunpack.c.l.b16 %v480
    %v690 = vunpack.c.h.b16 %v480
    %v691 = vunpack.c.l.b16 %v481
    %v692 = vunpack.c.l.b16 %v482
    %v693 = vunpack.c.h.b16 %v482
    %v694 = vunpack.c.l.b16 %v483
    %v695 = vunpack.c.l.b16 %v484
    %v696 = vunpack.c.h.b16 %v484
    %v697 = vunpack.c.l.b16 %v485
    %v698 = vunpack.c.l.b16 %v486
    %v699 = vunpack.c.h.b16 %v486
    %v700 = vunpack.c.l.b16 %v487
    %v701 = vunpack.c.l.b16 %v488
    %v702 = vunpack.c.h.b16 %v488
    %v703 = vunpack.c.l.b16 %v489
    %v704 = vunpack.c.l.b16 %v490
    %v705 = vunpack.c.h.b16 %v490
    %v706 = vunpack.c.l.b16 %v491
    %v707 = vunpack.c.l.b16 %v492
    %v708 = vunpack.c.h.b16 %v492
    %v709 = vunpack.c.l.b16 %v493
    %v710 = vunpack.c.l.b16 %v494
    %v711 = vunpack.c.h.b16 %v494
    %v712 = vunpack.c.l.b16 %v495
    %v713 = vunpack.c.l.b16 %v496
    %v714 = vunpack.c.h.b16 %v496
    %v715 = vunpack.c.l.b16 %v497
    %v716 = vunpack.c.l.b16 %v498
    %v717 = vunpack.c.h.b16 %v498
    %v718 = vunpack.c.l.b16 %v499
    %v719 = vunpack.c.l.b16 %v500
    %v720 = vunpack.c.h.b16 %v500
    %v721 = vunpack.c.l.b16 %v501
    %v722 = vunpack.c.l.b16 %v502
    %v723 = vunpack.c.h.b16 %v502
    %v724 = vunpack.c.l.b16 %v503
    %v725 = vunpack.c.l.b16 %v504
    %v726 = vunpack.c.h.b16 %v504
    %v727 = vunpack.c.l.b16 %v505
    %v728 = vunpack.c.l.b16 %v506
    %v729 = vunpack.c.h.b16 %v506
    %v730 = vunpack.c.l.b16 %v507
    %v731 = vunpack.c.l.b16 %v508
    %v732 = vunpack.c.h.b16 %v508
    %v733 = vunpack.c.l.b16 %v509
    %v734 = vpack.c.b16 %v689, %v686
    %v735 = vpack.c.b16 %v690, %v687
    %v736 = vpack.c.b16 %v691, %v688
    %v737 = vpack.c.b16 %v695, %v692
    %v738 = vpack.c.b16 %v696, %v693
    %v739 = vpack.c.b16 %v697, %v694
    %v740 = vpack.c.b16 %v701, %v698
    %v741 = vpack.c.b16 %v702, %v699
    %v742 = vpack.c.b16 %v703, %v700
    %v743 = vpack.c.b16 %v707, %v704
    %v744 = vpack.c.b16 %v708, %v705
    %v745 = vpack.c.b16 %v709, %v706
    %v746 = vpack.c.b16 %v713, %v710
    %v747 = vpack.c.b16 %v714, %v711
    %v748 = vpack.c.b16 %v715, %v712
    %v749 = vpack.c.b16 %v719, %v716
    %v750 = vpack.c.b16 %v720, %v717
    %v751 = vpack.c.b16 %v721, %v718
    %v752 = vpack.c.b16 %v725, %v722
    %v753 = vpack.c.b16 %v726, %v723
    %v754 = vpack.c.b16 %v727, %v724
    %v755 = vpack.c.b16 %v731, %v728
    %v756 = vpack.c.b16 %v732, %v729
    %v757 = vpack.c.b16 %v733, %v730
    %782 = vmatprep.subr.bf16.mxu0 %v756
    %783 = vmatpush1.bf16.msra.mxu0 %v755
    %784 = vmatprep.subr.bf16.mxu0 %v753
    %785 = vmatpush1.bf16.msra.mxu0 %v752
    %786 = vmatprep.subr.bf16.mxu0 %v750
    %787 = vmatpush1.bf16.msra.mxu0 %v749
    %788 = vmatprep.subr.bf16.mxu0 %v747
    %789 = vmatpush1.bf16.msra.mxu0 %v746
    %790 = vmatprep.subr.bf16.mxu0 %v744
    %791 = vmatpush1.bf16.msra.mxu0 %v743
    %792 = vmatprep.subr.bf16.mxu0 %v741
    %793 = vmatpush1.bf16.msra.mxu0 %v740
    %794 = vmatprep.subr.bf16.mxu0 %v738
    %795 = vmatpush1.bf16.msra.mxu0 %v737
    %796 = vmatprep.subr.bf16.mxu0 %v735
    %797 = vmatpush1.bf16.msra.mxu0 %v734
    %798 = vmatprep.subr.bf16.mxu0 0
    %799 = vmatpush2.bf16.msra.mxu0 0
    %800 = vmatprep.subr.bf16.mxu0 0
    %801 = vmatpush2.bf16.msra.mxu0 0
    %802 = vmatprep.subr.bf16.mxu0 0
    %803 = vmatpush2.bf16.msra.mxu0 0
    %804 = vmatprep.subr.bf16.mxu0 0
    %805 = vmatpush2.bf16.msra.mxu0 0
    %806 = vmatprep.subr.bf16.mxu0 0
    %807 = vmatpush2.bf16.msra.mxu0 0
    %808 = vmatprep.subr.bf16.mxu0 0
    %809 = vmatpush2.bf16.msra.mxu0 0
    %810 = vmatprep.subr.bf16.mxu0 0
    %811 = vmatpush2.bf16.msra.mxu0 0
    %812 = vmatprep.subr.bf16.mxu0 0
    %813 = vmatpush2.bf16.msra.mxu0 0
    %814 = vmatprep.mubr.bf16.mxu0 0
    %815 = vmatmul.mubr.bf16.gmra.mxu0 0
    %v816 = vpop.f32.mrf.mxu0
    %v817 = vadd.f32 0.0, %v816
    %v818 = vpop.f32.mrf.mxu0
    %v819 = vadd.f32 0.0, %v818
    %v820 = vpop.f32.mrf.mxu0
    %v821 = vpop.f32.mrf.mxu0
    %822 = vdwg.mxu0
    %823 = vmatprep.subr.bf16.mxu0 0
    %824 = vmatpush1.bf16.msra.mxu0 %v757
    %825 = vmatprep.subr.bf16.mxu0 0
    %826 = vmatpush1.bf16.msra.mxu0 %v754
    %827 = vmatprep.subr.bf16.mxu0 0
    %828 = vmatpush1.bf16.msra.mxu0 %v751
    %829 = vmatprep.subr.bf16.mxu0 0
    %830 = vmatpush1.bf16.msra.mxu0 %v748
    %831 = vmatprep.subr.bf16.mxu0 0
    %832 = vmatpush1.bf16.msra.mxu0 %v745
    %833 = vmatprep.subr.bf16.mxu0 0
    %834 = vmatpush1.bf16.msra.mxu0 %v742
    %835 = vmatprep.subr.bf16.mxu0 0
    %836 = vmatpush1.bf16.msra.mxu0 %v739
    %837 = vmatprep.subr.bf16.mxu0 0
    %838 = vmatpush1.bf16.msra.mxu0 %v736
    %839 = vmatprep.subr.bf16.mxu0 0
    %840 = vmatpush2.bf16.msra.mxu0 0
    %841 = vmatprep.subr.bf16.mxu0 0
    %842 = vmatpush2.bf16.msra.mxu0 0
    %843 = vmatprep.subr.bf16.mxu0 0
    %844 = vmatpush2.bf16.msra.mxu0 0
    %845 = vmatprep.subr.bf16.mxu0 0
    %846 = vmatpush2.bf16.msra.mxu0 0
    %847 = vmatprep.subr.bf16.mxu0 0
    %848 = vmatpush2.bf16.msra.mxu0 0
    %849 = vmatprep.subr.bf16.mxu0 0
    %850 = vmatpush2.bf16.msra.mxu0 0
    %851 = vmatprep.subr.bf16.mxu0 0
    %852 = vmatpush2.bf16.msra.mxu0 0
    %853 = vmatprep.subr.bf16.mxu0 0
    %854 = vmatpush2.bf16.msra.mxu0 0
    %855 = vmatprep.mubr.bf16.mxu0 0
    %856 = vmatmul.mubr.bf16.gmra.mxu0 0
    %v857 = vpop.f32.mrf.mxu0
    %v858 = vadd.f32 0.0, %v857
    %v859 = vpop.f32.mrf.mxu0
    %v860 = vpop.f32.mrf.mxu0
    %v861 = vpop.f32.mrf.mxu0
    %862 = vdwg.mxu0
    %v863 = vadd.f32 %v651, %v817
    %v864 = vadd.f32 %v652, %v819
    %v865 = vmul.f32 %v863, 0.5
    %v866 = vmul.f32 %v864, 0.5
    %v867 = vtanh.pop %v865
    %v868 = vtanh.pop %v866
    %v869 = vmul.f32 %v867, 0.5
    %v870 = vmul.f32 %v868, 0.5
    %v871 = vadd.f32 %v869, 0.5
    %v872 = vadd.f32 %v870, 0.5
    %v873 = vadd.f32 %v858, %v510
    %v874 = vmul.f32 %v871, %v873
    %v875 = vadd.f32 %v653, %v874
    %v876 = vtanh.pop %v875
    %v877 = vsub.f32 0.0, %v876
    %v878 = vmul.f32 %v872, %v877
    %v879 = vadd.f32 %v876, %v878
    %v880 = vld [vmem:[#allocation2 + $0x18] sm:$0xff]
    %v881 = vld [vmem:[#allocation2 + $0x20] sm:$0xff]
    %v882 = vld [vmem:[#allocation2 + $0x28] sm:$0xff]
    %v883 = vpack.c.bf16 %v879, %v879
    %884 = vmatprep.subr.bf16.mxu0 %v756
    %885 = vmatpush1.bf16.msra.mxu0 %v755
    %886 = vmatprep.subr.bf16.mxu0 %v753
    %887 = vmatpush1.bf16.msra.mxu0 %v752
    %888 = vmatprep.subr.bf16.mxu0 %v750
    %889 = vmatpush1.bf16.msra.mxu0 %v749
    %890 = vmatprep.subr.bf16.mxu0 %v747
    %891 = vmatpush1.bf16.msra.mxu0 %v746
    %892 = vmatprep.subr.bf16.mxu0 %v744
    %893 = vmatpush1.bf16.msra.mxu0 %v743
    %894 = vmatprep.subr.bf16.mxu0 %v741
    %895 = vmatpush1.bf16.msra.mxu0 %v740
    %896 = vmatprep.subr.bf16.mxu0 %v738
    %897 = vmatpush1.bf16.msra.mxu0 %v737
    %898 = vmatprep.subr.bf16.mxu0 %v735
    %899 = vmatpush1.bf16.msra.mxu0 %v734
    %900 = vmatprep.subr.bf16.mxu0 0
    %901 = vmatpush2.bf16.msra.mxu0 0
    %902 = vmatprep.subr.bf16.mxu0 0
    %903 = vmatpush2.bf16.msra.mxu0 0
    %904 = vmatprep.subr.bf16.mxu0 0
    %905 = vmatpush2.bf16.msra.mxu0 0
    %906 = vmatprep.subr.bf16.mxu0 0
    %907 = vmatpush2.bf16.msra.mxu0 0
    %908 = vmatprep.subr.bf16.mxu0 0
    %909 = vmatpush2.bf16.msra.mxu0 0
    %910 = vmatprep.subr.bf16.mxu0 0
    %911 = vmatpush2.bf16.msra.mxu0 0
    %912 = vmatprep.subr.bf16.mxu0 0
    %913 = vmatpush2.bf16.msra.mxu0 0
    %914 = vmatprep.subr.bf16.mxu0 0
    %915 = vmatpush2.bf16.msra.mxu0 0
    %916 = vmatprep.mubr.bf16.mxu0 0
    %917 = vmatmul.mubr.bf16.gmra.mxu0 %v883
    %v918 = vpop.f32.mrf.mxu0
    %v919 = vadd.f32 0.0, %v918
    %v920 = vpop.f32.mrf.mxu0
    %v921 = vadd.f32 0.0, %v920
    %v922 = vpop.f32.mrf.mxu0
    %v923 = vpop.f32.mrf.mxu0
    %924 = vdwg.mxu0
    %925 = vmatprep.subr.bf16.mxu0 0
    %926 = vmatpush1.bf16.msra.mxu0 %v757
    %927 = vmatprep.subr.bf16.mxu0 0
    %928 = vmatpush1.bf16.msra.mxu0 %v754
    %929 = vmatprep.subr.bf16.mxu0 0
    %930 = vmatpush1.bf16.msra.mxu0 %v751
    %931 = vmatprep.subr.bf16.mxu0 0
    %932 = vmatpush1.bf16.msra.mxu0 %v748
    %933 = vmatprep.subr.bf16.mxu0 0
    %934 = vmatpush1.bf16.msra.mxu0 %v745
    %935 = vmatprep.subr.bf16.mxu0 0
    %936 = vmatpush1.bf16.msra.mxu0 %v742
    %937 = vmatprep.subr.bf16.mxu0 0
    %938 = vmatpush1.bf16.msra.mxu0 %v739
    %939 = vmatprep.subr.bf16.mxu0 0
    %940 = vmatpush1.bf16.msra.mxu0 %v736
    %941 = vmatprep.subr.bf16.mxu0 0
    %942 = vmatpush2.bf16.msra.mxu0 0
    %943 = vmatprep.subr.bf16.mxu0 0
    %944 = vmatpush2.bf16.msra.mxu0 0
    %945 = vmatprep.subr.bf16.mxu0 0
    %946 = vmatpush2.bf16.msra.mxu0 0
    %947 = vmatprep.subr.bf16.mxu0 0
    %948 = vmatpush2.bf16.msra.mxu0 0
    %949 = vmatprep.subr.bf16.mxu0 0
    %950 = vmatpush2.bf16.msra.mxu0 0
    %951 = vmatprep.subr.bf16.mxu0 0
    %952 = vmatpush2.bf16.msra.mxu0 0
    %953 = vmatprep.subr.bf16.mxu0 0
    %954 = vmatpush2.bf16.msra.mxu0 0
    %955 = vmatprep.subr.bf16.mxu0 0
    %956 = vmatpush2.bf16.msra.mxu0 0
    %957 = vmatprep.mubr.bf16.mxu0 0
    %958 = vmatmul.mubr.bf16.gmra.mxu0 %v883
    %v959 = vpop.f32.mrf.mxu0
    %v960 = vadd.f32 0.0, %v959
    %v961 = vpop.f32.mrf.mxu0
    %v962 = vpop.f32.mrf.mxu0
    %v963 = vpop.f32.mrf.mxu0
    %964 = vdwg.mxu0
    %v965 = vadd.f32 %v880, %v919
    %v966 = vadd.f32 %v881, %v921
    %v967 = vmul.f32 %v965, 0.5
    %v968 = vmul.f32 %v966, 0.5
    %v969 = vtanh.pop %v967
    %v970 = vtanh.pop %v968
    %v971 = vmul.f32 %v969, 0.5
    %v972 = vmul.f32 %v970, 0.5
    %v973 = vadd.f32 %v971, 0.5
    %v974 = vadd.f32 %v972, 0.5
    %v975 = vadd.f32 %v960, %v510
    %v976 = vmul.f32 %v973, %v975
    %v977 = vadd.f32 %v882, %v976
    %v978 = vtanh.pop %v977
    %v979 = vsub.f32 %v879, %v978
    %v980 = vmul.f32 %v974, %v979
    %v981 = vadd.f32 %v978, %v980
    %v982 = vpack.c.bf16 0.0, 0.0
    %v1047 = vunpack.c.l.b16 %v511
    %v1048 = vunpack.c.h.b16 %v511
    %v1049 = vunpack.c.l.b16 %v512
    %v1050 = vunpack.c.h.b16 %v512
    %v1051 = vunpack.c.l.b16 %v513
    %v1052 = vunpack.c.h.b16 %v513
    %v1053 = vunpack.c.l.b16 %v514
    %v1054 = vunpack.c.h.b16 %v514
    %v1055 = vunpack.c.l.b16 %v515
    %v1056 = vunpack.c.h.b16 %v515
    %v1057 = vunpack.c.l.b16 %v516
    %v1058 = vunpack.c.h.b16 %v516
    %v1059 = vunpack.c.l.b16 %v517
    %v1060 = vunpack.c.h.b16 %v517
    %v1061 = vunpack.c.l.b16 %v518
    %v1062 = vunpack.c.h.b16 %v518
    %v1063 = vunpack.c.l.b16 %v519
    %v1064 = vunpack.c.h.b16 %v519
    %v1065 = vunpack.c.l.b16 %v520
    %v1066 = vunpack.c.h.b16 %v520
    %v1067 = vunpack.c.l.b16 %v521
    %v1068 = vunpack.c.h.b16 %v521
    %v1069 = vunpack.c.l.b16 %v522
    %v1070 = vunpack.c.h.b16 %v522
    %v1071 = vunpack.c.l.b16 %v523
    %v1072 = vunpack.c.h.b16 %v523
    %v1073 = vunpack.c.l.b16 %v524
    %v1074 = vunpack.c.h.b16 %v524
    %v1075 = vunpack.c.l.b16 %v525
    %v1076 = vunpack.c.h.b16 %v525
    %v1077 = vunpack.c.l.b16 %v526
    %v1078 = vunpack.c.h.b16 %v526
    %v1079 = vunpack.c.l.b16 %v527
    %v1080 = vunpack.c.h.b16 %v527
    %v1081 = vunpack.c.l.b16 %v528
    %v1082 = vunpack.c.h.b16 %v528
    %v1083 = vunpack.c.l.b16 %v529
    %v1084 = vunpack.c.h.b16 %v529
    %v1085 = vunpack.c.l.b16 %v530
    %v1086 = vunpack.c.h.b16 %v530
    %v1087 = vunpack.c.l.b16 %v531
    %v1088 = vunpack.c.h.b16 %v531
    %v1089 = vunpack.c.l.b16 %v532
    %v1090 = vunpack.c.h.b16 %v532
    %v1091 = vunpack.c.l.b16 %v533
    %v1092 = vunpack.c.h.b16 %v533
    %v1093 = vunpack.c.l.b16 %v534
    %v1094 = vunpack.c.h.b16 %v534
    %v1095 = vunpack.c.l.b16 %v535
    %v1096 = vunpack.c.h.b16 %v535
    %v1097 = vunpack.c.l.b16 %v536
    %v1098 = vunpack.c.h.b16 %v536
    %v1099 = vunpack.c.l.b16 %v537
    %v1100 = vunpack.c.h.b16 %v537
    %v1101 = vunpack.c.l.b16 %v538
    %v1102 = vunpack.c.h.b16 %v538
    %v1103 = vunpack.c.l.b16 %v539
    %v1104 = vunpack.c.h.b16 %v539
    %v1105 = vunpack.c.l.b16 %v540
    %v1106 = vunpack.c.h.b16 %v540
    %v1107 = vunpack.c.l.b16 %v541
    %v1108 = vunpack.c.h.b16 %v541
    %v1109 = vunpack.c.l.b16 %v542
    %v1110 = vunpack.c.h.b16 %v542
    %v1111 = vunpack.c.l.b16 %v543
    %v1112 = vunpack.c.h.b16 %v543
    %v1113 = vunpack.c.l.b16 %v544
    %v1114 = vunpack.c.h.b16 %v544
    %v1115 = vunpack.c.l.b16 %v545
    %v1116 = vunpack.c.h.b16 %v545
    %v1117 = vunpack.c.l.b16 %v546
    %v1118 = vunpack.c.h.b16 %v546
    %v1119 = vunpack.c.l.b16 %v547
    %v1120 = vunpack.c.h.b16 %v547
    %v1121 = vunpack.c.l.b16 %v548
    %v1122 = vunpack.c.h.b16 %v548
    %v1123 = vunpack.c.l.b16 %v549
    %v1124 = vunpack.c.h.b16 %v549
    %v1125 = vunpack.c.l.b16 %v550
    %v1126 = vunpack.c.h.b16 %v550
    %v1127 = vunpack.c.l.b16 %v551
    %v1128 = vunpack.c.h.b16 %v551
    %v1129 = vunpack.c.l.b16 %v552
    %v1130 = vunpack.c.h.b16 %v552
    %v1131 = vunpack.c.l.b16 %v553
    %v1132 = vunpack.c.h.b16 %v553
    %v1133 = vunpack.c.l.b16 %v554
    %v1134 = vunpack.c.h.b16 %v554
    %v1135 = vunpack.c.l.b16 %v555
    %v1136 = vunpack.c.h.b16 %v555
    %v1137 = vunpack.c.l.b16 %v556
    %v1138 = vunpack.c.h.b16 %v556
    %v1139 = vunpack.c.l.b16 %v557
    %v1140 = vunpack.c.h.b16 %v557
    %v1141 = vunpack.c.l.b16 %v558
    %v1142 = vunpack.c.h.b16 %v558
    %v1143 = vunpack.c.l.b16 %v559
    %v1144 = vunpack.c.h.b16 %v559
    %v1145 = vunpack.c.l.b16 %v560
    %v1146 = vunpack.c.h.b16 %v560
    %v1147 = vunpack.c.l.b16 %v561
    %v1148 = vunpack.c.h.b16 %v561
    %v1149 = vunpack.c.l.b16 %v562
    %v1150 = vunpack.c.h.b16 %v562
    %v1151 = vunpack.c.l.b16 %v563
    %v1152 = vunpack.c.h.b16 %v563
    %v1153 = vunpack.c.l.b16 %v564
    %v1154 = vunpack.c.h.b16 %v564
    %v1155 = vunpack.c.l.b16 %v565
    %v1156 = vunpack.c.h.b16 %v565
    %v1157 = vunpack.c.l.b16 %v566
    %v1158 = vunpack.c.h.b16 %v566
    %v1159 = vunpack.c.l.b16 %v567
    %v1160 = vunpack.c.h.b16 %v567
    %v1161 = vunpack.c.l.b16 %v568
    %v1162 = vunpack.c.h.b16 %v568
    %v1163 = vunpack.c.l.b16 %v569
    %v1164 = vunpack.c.h.b16 %v569
    %v1165 = vunpack.c.l.b16 %v570
    %v1166 = vunpack.c.h.b16 %v570
    %v1167 = vunpack.c.l.b16 %v571
    %v1168 = vunpack.c.h.b16 %v571
    %v1169 = vunpack.c.l.b16 %v572
    %v1170 = vunpack.c.h.b16 %v572
    %v1171 = vunpack.c.l.b16 %v573
    %v1172 = vunpack.c.h.b16 %v573
    %v1173 = vunpack.c.l.b16 %v574
    %v1174 = vunpack.c.h.b16 %v574
    %v1175 = vpack.c.b16 %v1051, %v1047
    %v1176 = vpack.c.b16 %v1052, %v1048
    %v1177 = vpack.c.b16 %v1053, %v1049
    %v1178 = vpack.c.b16 %v1054, %v1050
    %v1179 = vpack.c.b16 %v1059, %v1055
    %v1180 = vpack.c.b16 %v1060, %v1056
    %v1181 = vpack.c.b16 %v1061, %v1057
    %v1182 = vpack.c.b16 %v1062, %v1058
    %v1183 = vpack.c.b16 %v1067, %v1063
    %v1184 = vpack.c.b16 %v1068, %v1064
    %v1185 = vpack.c.b16 %v1069, %v1065
    %v1186 = vpack.c.b16 %v1070, %v1066
    %v1187 = vpack.c.b16 %v1075, %v1071
    %v1188 = vpack.c.b16 %v1076, %v1072
    %v1189 = vpack.c.b16 %v1077, %v1073
    %v1190 = vpack.c.b16 %v1078, %v1074
    %v1191 = vpack.c.b16 %v1083, %v1079
    %v1192 = vpack.c.b16 %v1084, %v1080
    %v1193 = vpack.c.b16 %v1085, %v1081
    %v1194 = vpack.c.b16 %v1086, %v1082
    %v1195 = vpack.c.b16 %v1091, %v1087
    %v1196 = vpack.c.b16 %v1092, %v1088
    %v1197 = vpack.c.b16 %v1093, %v1089
    %v1198 = vpack.c.b16 %v1094, %v1090
    %v1199 = vpack.c.b16 %v1099, %v1095
    %v1200 = vpack.c.b16 %v1100, %v1096
    %v1201 = vpack.c.b16 %v1101, %v1097
    %v1202 = vpack.c.b16 %v1102, %v1098
    %v1203 = vpack.c.b16 %v1107, %v1103
    %v1204 = vpack.c.b16 %v1108, %v1104
    %v1205 = vpack.c.b16 %v1109, %v1105
    %v1206 = vpack.c.b16 %v1110, %v1106
    %v1207 = vpack.c.b16 %v1115, %v1111
    %v1208 = vpack.c.b16 %v1116, %v1112
    %v1209 = vpack.c.b16 %v1117, %v1113
    %v1210 = vpack.c.b16 %v1118, %v1114
    %v1211 = vpack.c.b16 %v1123, %v1119
    %v1212 = vpack.c.b16 %v1124, %v1120
    %v1213 = vpack.c.b16 %v1125, %v1121
    %v1214 = vpack.c.b16 %v1126, %v1122
    %v1215 = vpack.c.b16 %v1131, %v1127
    %v1216 = vpack.c.b16 %v1132, %v1128
    %v1217 = vpack.c.b16 %v1133, %v1129
    %v1218 = vpack.c.b16 %v1134, %v1130
    %v1219 = vpack.c.b16 %v1139, %v1135
    %v1220 = vpack.c.b16 %v1140, %v1136
    %v1221 = vpack.c.b16 %v1141, %v1137
    %v1222 = vpack.c.b16 %v1142, %v1138
    %v1223 = vpack.c.b16 %v1147, %v1143
    %v1224 = vpack.c.b16 %v1148, %v1144
    %v1225 = vpack.c.b16 %v1149, %v1145
    %v1226 = vpack.c.b16 %v1150, %v1146
    %v1227 = vpack.c.b16 %v1155, %v1151
    %v1228 = vpack.c.b16 %v1156, %v1152
    %v1229 = vpack.c.b16 %v1157, %v1153
    %v1230 = vpack.c.b16 %v1158, %v1154
    %v1231 = vpack.c.b16 %v1163, %v1159
    %v1232 = vpack.c.b16 %v1164, %v1160
    %v1233 = vpack.c.b16 %v1165, %v1161
    %v1234 = vpack.c.b16 %v1166, %v1162
    %v1235 = vpack.c.b16 %v1171, %v1167
    %v1236 = vpack.c.b16 %v1172, %v1168
    %v1237 = vpack.c.b16 %v1173, %v1169
    %v1238 = vpack.c.b16 %v1174, %v1170
    %1303 = vmatprep.subr.bf16.mxu0 %v1204
    %1304 = vmatpush1.bf16.msra.mxu0 %v1203
    %1305 = vmatprep.subr.bf16.mxu0 %v1200
    %1306 = vmatpush1.bf16.msra.mxu0 %v1199
    %1307 = vmatprep.subr.bf16.mxu0 %v1196
    %1308 = vmatpush1.bf16.msra.mxu0 %v1195
    %1309 = vmatprep.subr.bf16.mxu0 %v1192
    %1310 = vmatpush1.bf16.msra.mxu0 %v1191
    %1311 = vmatprep.subr.bf16.mxu0 %v1188
    %1312 = vmatpush1.bf16.msra.mxu0 %v1187
    %1313 = vmatprep.subr.bf16.mxu0 %v1184
    %1314 = vmatpush1.bf16.msra.mxu0 %v1183
    %1315 = vmatprep.subr.bf16.mxu0 %v1180
    %1316 = vmatpush1.bf16.msra.mxu0 %v1179
    %1317 = vmatprep.subr.bf16.mxu0 %v1176
    %1318 = vmatpush1.bf16.msra.mxu0 %v1175
    %1319 = vmatprep.subr.bf16.mxu0 %v1236
    %1320 = vmatpush2.bf16.msra.mxu0 %v1235
    %1321 = vmatprep.subr.bf16.mxu0 %v1232
    %1322 = vmatpush2.bf16.msra.mxu0 %v1231
    %1323 = vmatprep.subr.bf16.mxu0 %v1228
    %1324 = vmatpush2.bf16.msra.mxu0 %v1227
    %1325 = vmatprep.subr.bf16.mxu0 %v1224
    %1326 = vmatpush2.bf16.msra.mxu0 %v1223
    %1327 = vmatprep.subr.bf16.mxu0 %v1220
    %1328 = vmatpush2.bf16.msra.mxu0 %v1219
    %1329 = vmatprep.subr.bf16.mxu0 %v1216
    %1330 = vmatpush2.bf16.msra.mxu0 %v1215
    %1331 = vmatprep.subr.bf16.mxu0 %v1212
    %1332 = vmatpush2.bf16.msra.mxu0 %v1211
    %1333 = vmatprep.subr.bf16.mxu0 %v1208
    %1334 = vmatpush2.bf16.msra.mxu0 %v1207
    %1335 = vmatprep.mubr.bf16.mxu0 %v982
    %1336 = vmatmul.mubr.bf16.gmra.mxu0 %v883
    %v1337 = vpop.f32.mrf.mxu0
    %v1338 = vadd.f32 0.0, %v1337
    %v1339 = vpop.f32.mrf.mxu0
    %v1340 = vadd.f32 0.0, %v1339
    %v1341 = vpop.f32.mrf.mxu0
    %v1342 = vpop.f32.mrf.mxu0
    %1343 = vdwg.mxu0
    %1344 = vmatprep.subr.bf16.mxu0 %v1206
    %1345 = vmatpush1.bf16.msra.mxu0 %v1205
    %1346 = vmatprep.subr.bf16.mxu0 %v1202
    %1347 = vmatpush1.bf16.msra.mxu0 %v1201
    %1348 = vmatprep.subr.bf16.mxu0 %v1198
    %1349 = vmatpush1.bf16.msra.mxu0 %v1197
    %1350 = vmatprep.subr.bf16.mxu0 %v1194
    %1351 = vmatpush1.bf16.msra.mxu0 %v1193
    %1352 = vmatprep.subr.bf16.mxu0 %v1190
    %1353 = vmatpush1.bf16.msra.mxu0 %v1189
    %1354 = vmatprep.subr.bf16.mxu0 %v1186
    %1355 = vmatpush1.bf16.msra.mxu0 %v1185
    %1356 = vmatprep.subr.bf16.mxu0 %v1182
    %1357 = vmatpush1.bf16.msra.mxu0 %v1181
    %1358 = vmatprep.subr.bf16.mxu0 %v1178
    %1359 = vmatpush1.bf16.msra.mxu0 %v1177
    %1360 = vmatprep.subr.bf16.mxu0 %v1238
    %1361 = vmatpush2.bf16.msra.mxu0 %v1237
    %1362 = vmatprep.subr.bf16.mxu0 %v1234
    %1363 = vmatpush2.bf16.msra.mxu0 %v1233
    %1364 = vmatprep.subr.bf16.mxu0 %v1230
    %1365 = vmatpush2.bf16.msra.mxu0 %v1229
    %1366 = vmatprep.subr.bf16.mxu0 %v1226
    %1367 = vmatpush2.bf16.msra.mxu0 %v1225
    %1368 = vmatprep.subr.bf16.mxu0 %v1222
    %1369 = vmatpush2.bf16.msra.mxu0 %v1221
    %1370 = vmatprep.subr.bf16.mxu0 %v1218
    %1371 = vmatpush2.bf16.msra.mxu0 %v1217
    %1372 = vmatprep.subr.bf16.mxu0 %v1214
    %1373 = vmatpush2.bf16.msra.mxu0 %v1213
    %1374 = vmatprep.subr.bf16.mxu0 %v1210
    %1375 = vmatpush2.bf16.msra.mxu0 %v1209
    %1376 = vmatprep.mubr.bf16.mxu0 %v982
    %1377 = vmatmul.mubr.bf16.gmra.mxu0 %v883
    %v1378 = vpop.f32.mrf.mxu0
    %v1379 = vadd.f32 0.0, %v1378
    %v1380 = vpop.f32.mrf.mxu0
    %v1381 = vadd.f32 0.0, %v1380
    %v1382 = vpop.f32.mrf.mxu0
    %v1383 = vpop.f32.mrf.mxu0
    %1384 = vdwg.mxu0
    %v1385 = vadd.f32 %v1338, %v640
    %v1386 = vadd.f32 %v1340, %v641
    %v1387 = vmul.f32 %v1385, 0.5
    %v1388 = vmul.f32 %v1386, 0.5
    %v1389 = vtanh.pop %v1387
    %v1390 = vtanh.pop %v1388
    %v1391 = vmul.f32 %v1389, 0.5
    %v1392 = vmul.f32 %v1390, 0.5
    %v1393 = vadd.f32 %v1391, 0.5
    %v1394 = vadd.f32 %v1392, 0.5
    %v1395 = vadd.f32 %v1379, %v645
    %v1396 = vadd.f32 %v1381, %v648
    %v1397 = vmul.f32 %v1393, %v1396
    %v1398 = vadd.f32 %v1395, %v1397
    %v1399 = vtanh.pop %v1398
    %v1400 = vsub.f32 0.0, %v1399
    %v1401 = vmul.f32 %v1394, %v1400
    %v1402 = vadd.f32 %v1399, %v1401
    %v1403 = vld [vmem:[#allocation2 + $0x30] sm:$0xff]
    %v1404 = vld [vmem:[#allocation2 + $0x38] sm:$0xff]
    %v1405 = vld [vmem:[#allocation2 + $0x40] sm:$0xff]
    %v1406 = vpack.c.bf16 %v981, %v981
    %1407 = vmatprep.subr.bf16.mxu0 %v756
    %1408 = vmatpush1.bf16.msra.mxu0 %v755
    %1409 = vmatprep.subr.bf16.mxu0 %v753
    %1410 = vmatpush1.bf16.msra.mxu0 %v752
    %1411 = vmatprep.subr.bf16.mxu0 %v750
    %1412 = vmatpush1.bf16.msra.mxu0 %v749
    %1413 = vmatprep.subr.bf16.mxu0 %v747
    %1414 = vmatpush1.bf16.msra.mxu0 %v746
    %1415 = vmatprep.subr.bf16.mxu0 %v744
    %1416 = vmatpush1.bf16.msra.mxu0 %v743
    %1417 = vmatprep.subr.bf16.mxu0 %v741
    %1418 = vmatpush1.bf16.msra.mxu0 %v740
    %1419 = vmatprep.subr.bf16.mxu0 %v738
    %1420 = vmatpush1.bf16.msra.mxu0 %v737
    %1421 = vmatprep.subr.bf16.mxu0 %v735
    %1422 = vmatpush1.bf16.msra.mxu0 %v734
    %1423 = vmatprep.subr.bf16.mxu0 0
    %1424 = vmatpush2.bf16.msra.mxu0 0
    %1425 = vmatprep.subr.bf16.mxu0 0
    %1426 = vmatpush2.bf16.msra.mxu0 0
    %1427 = vmatprep.subr.bf16.mxu0 0
    %1428 = vmatpush2.bf16.msra.mxu0 0
    %1429 = vmatprep.subr.bf16.mxu0 0
    %1430 = vmatpush2.bf16.msra.mxu0 0
    %1431 = vmatprep.subr.bf16.mxu0 0
    %1432 = vmatpush2.bf16.msra.mxu0 0
    %1433 = vmatprep.subr.bf16.mxu0 0
    %1434 = vmatpush2.bf16.msra.mxu0 0
    %1435 = vmatprep.subr.bf16.mxu0 0
    %1436 = vmatpush2.bf16.msra.mxu0 0
    %1437 = vmatprep.subr.bf16.mxu0 0
    %1438 = vmatpush2.bf16.msra.mxu0 0
    %1439 = vmatprep.mubr.bf16.mxu0 0
    %1440 = vmatmul.mubr.bf16.gmra.mxu0 %v1406
    %v1441 = vpop.f32.mrf.mxu0
    %v1442 = vadd.f32 0.0, %v1441
    %v1443 = vpop.f32.mrf.mxu0
    %v1444 = vadd.f32 0.0, %v1443
    %v1445 = vpop.f32.mrf.mxu0
    %v1446 = vpop.f32.mrf.mxu0
    %1447 = vdwg.mxu0
    %1448 = vmatprep.subr.bf16.mxu0 0
    %1449 = vmatpush1.bf16.msra.mxu0 %v757
    %1450 = vmatprep.subr.bf16.mxu0 0
    %1451 = vmatpush1.bf16.msra.mxu0 %v754
    %1452 = vmatprep.subr.bf16.mxu0 0
    %1453 = vmatpush1.bf16.msra.mxu0 %v751
    %1454 = vmatprep.subr.bf16.mxu0 0
    %1455 = vmatpush1.bf16.msra.mxu0 %v748
    %1456 = vmatprep.subr.bf16.mxu0 0
    %1457 = vmatpush1.bf16.msra.mxu0 %v745
    %1458 = vmatprep.subr.bf16.mxu0 0
    %1459 = vmatpush1.bf16.msra.mxu0 %v742
    %1460 = vmatprep.subr.bf16.mxu0 0
    %1461 = vmatpush1.bf16.msra.mxu0 %v739
    %1462 = vmatprep.subr.bf16.mxu0 0
    %1463 = vmatpush1.bf16.msra.mxu0 %v736
    %1464 = vmatprep.subr.bf16.mxu0 0
    %1465 = vmatpush2.bf16.msra.mxu0 0
    %1466 = vmatprep.subr.bf16.mxu0 0
    %1467 = vmatpush2.bf16.msra.mxu0 0
    %1468 = vmatprep.subr.bf16.mxu0 0
    %1469 = vmatpush2.bf16.msra.mxu0 0
    %1470 = vmatprep.subr.bf16.mxu0 0
    %1471 = vmatpush2.bf16.msra.mxu0 0
    %1472 = vmatprep.subr.bf16.mxu0 0
    %1473 = vmatpush2.bf16.msra.mxu0 0
    %1474 = vmatprep.subr.bf16.mxu0 0
    %1475 = vmatpush2.bf16.msra.mxu0 0
    %1476 = vmatprep.subr.bf16.mxu0 0
    %1477 = vmatpush2.bf16.msra.mxu0 0
    %1478 = vmatprep.subr.bf16.mxu0 0
    %1479 = vmatpush2.bf16.msra.mxu0 0
    %1480 = vmatprep.mubr.bf16.mxu0 0
    %1481 = vmatmul.mubr.bf16.gmra.mxu0 %v1406
    %v1482 = vpop.f32.mrf.mxu0
    %v1483 = vadd.f32 0.0, %v1482
    %v1484 = vpop.f32.mrf.mxu0
    %v1485 = vpop.f32.mrf.mxu0
    %v1486 = vpop.f32.mrf.mxu0
    %1487 = vdwg.mxu0
    %v1488 = vadd.f32 %v1403, %v1442
    %v1489 = vadd.f32 %v1404, %v1444
    %v1490 = vmul.f32 %v1488, 0.5
    %v1491 = vmul.f32 %v1489, 0.5
    %v1492 = vtanh.pop %v1490
    %v1493 = vtanh.pop %v1491
    %v1494 = vmul.f32 %v1492, 0.5
    %v1495 = vmul.f32 %v1493, 0.5
    %v1496 = vadd.f32 %v1494, 0.5
    %v1497 = vadd.f32 %v1495, 0.5
    %v1498 = vadd.f32 %v1483, %v510
    %v1499 = vmul.f32 %v1496, %v1498
    %v1500 = vadd.f32 %v1405, %v1499
    %v1501 = vtanh.pop %v1500
    %v1502 = vsub.f32 %v981, %v1501
    %v1503 = vmul.f32 %v1497, %v1502
    %v1504 = vadd.f32 %v1501, %v1503
    %v1505 = vpack.c.bf16 %v1402, %v1402
    %1506 = vmatprep.subr.bf16.mxu0 %v1204
    %1507 = vmatpush1.bf16.msra.mxu0 %v1203
    %1508 = vmatprep.subr.bf16.mxu0 %v1200
    %1509 = vmatpush1.bf16.msra.mxu0 %v1199
    %1510 = vmatprep.subr.bf16.mxu0 %v1196
    %1511 = vmatpush1.bf16.msra.mxu0 %v1195
    %1512 = vmatprep.subr.bf16.mxu0 %v1192
    %1513 = vmatpush1.bf16.msra.mxu0 %v1191
    %1514 = vmatprep.subr.bf16.mxu0 %v1188
    %1515 = vmatpush1.bf16.msra.mxu0 %v1187
    %1516 = vmatprep.subr.bf16.mxu0 %v1184
    %1517 = vmatpush1.bf16.msra.mxu0 %v1183
    %1518 = vmatprep.subr.bf16.mxu0 %v1180
    %1519 = vmatpush1.bf16.msra.mxu0 %v1179
    %1520 = vmatprep.subr.bf16.mxu0 %v1176
    %1521 = vmatpush1.bf16.msra.mxu0 %v1175
    %1522 = vmatprep.subr.bf16.mxu0 %v1236
    %1523 = vmatpush2.bf16.msra.mxu0 %v1235
    %1524 = vmatprep.subr.bf16.mxu0 %v1232
    %1525 = vmatpush2.bf16.msra.mxu0 %v1231
    %1526 = vmatprep.subr.bf16.mxu0 %v1228
    %1527 = vmatpush2.bf16.msra.mxu0 %v1227
    %1528 = vmatprep.subr.bf16.mxu0 %v1224
    %1529 = vmatpush2.bf16.msra.mxu0 %v1223
    %1530 = vmatprep.subr.bf16.mxu0 %v1220
    %1531 = vmatpush2.bf16.msra.mxu0 %v1219
    %1532 = vmatprep.subr.bf16.mxu0 %v1216
    %1533 = vmatpush2.bf16.msra.mxu0 %v1215
    %1534 = vmatprep.subr.bf16.mxu0 %v1212
    %1535 = vmatpush2.bf16.msra.mxu0 %v1211
    %1536 = vmatprep.subr.bf16.mxu0 %v1208
    %1537 = vmatpush2.bf16.msra.mxu0 %v1207
    %1538 = vmatprep.mubr.bf16.mxu0 %v1505
    %1539 = vmatmul.mubr.bf16.gmra.mxu0 %v1406
    %v1540 = vpop.f32.mrf.mxu0
    %v1541 = vadd.f32 0.0, %v1540
    %v1542 = vpop.f32.mrf.mxu0
    %v1543 = vadd.f32 0.0, %v1542
    %v1544 = vpop.f32.mrf.mxu0
    %v1545 = vpop.f32.mrf.mxu0
    %1546 = vdwg.mxu0
    %1547 = vmatprep.subr.bf16.mxu0 %v1206
    %1548 = vmatpush1.bf16.msra.mxu0 %v1205
    %1549 = vmatprep.subr.bf16.mxu0 %v1202
    %1550 = vmatpush1.bf16.msra.mxu0 %v1201
    %1551 = vmatprep.subr.bf16.mxu0 %v1198
    %1552 = vmatpush1.bf16.msra.mxu0 %v1197
    %1553 = vmatprep.subr.bf16.mxu0 %v1194
    %1554 = vmatpush1.bf16.msra.mxu0 %v1193
    %1555 = vmatprep.subr.bf16.mxu0 %v1190
    %1556 = vmatpush1.bf16.msra.mxu0 %v1189
    %1557 = vmatprep.subr.bf16.mxu0 %v1186
    %1558 = vmatpush1.bf16.msra.mxu0 %v1185
    %1559 = vmatprep.subr.bf16.mxu0 %v1182
    %1560 = vmatpush1.bf16.msra.mxu0 %v1181
    %1561 = vmatprep.subr.bf16.mxu0 %v1178
    %1562 = vmatpush1.bf16.msra.mxu0 %v1177
    %1563 = vmatprep.subr.bf16.mxu0 %v1238
    %1564 = vmatpush2.bf16.msra.mxu0 %v1237
    %1565 = vmatprep.subr.bf16.mxu0 %v1234
    %1566 = vmatpush2.bf16.msra.mxu0 %v1233
    %1567 = vmatprep.subr.bf16.mxu0 %v1230
    %1568 = vmatpush2.bf16.msra.mxu0 %v1229
    %1569 = vmatprep.subr.bf16.mxu0 %v1226
    %1570 = vmatpush2.bf16.msra.mxu0 %v1225
    %1571 = vmatprep.subr.bf16.mxu0 %v1222
    %1572 = vmatpush2.bf16.msra.mxu0 %v1221
    %1573 = vmatprep.subr.bf16.mxu0 %v1218
    %1574 = vmatpush2.bf16.msra.mxu0 %v1217
    %1575 = vmatprep.subr.bf16.mxu0 %v1214
    %1576 = vmatpush2.bf16.msra.mxu0 %v1213
    %1577 = vmatprep.subr.bf16.mxu0 %v1210
    %1578 = vmatpush2.bf16.msra.mxu0 %v1209
    %1579 = vmatprep.mubr.bf16.mxu0 %v1505
    %1580 = vmatmul.mubr.bf16.gmra.mxu0 %v1406
    %v1581 = vpop.f32.mrf.mxu0
    %v1582 = vadd.f32 0.0, %v1581
    %v1583 = vpop.f32.mrf.mxu0
    %v1584 = vadd.f32 0.0, %v1583
    %v1585 = vpop.f32.mrf.mxu0
    %v1586 = vpop.f32.mrf.mxu0
    %1587 = vdwg.mxu0
    %v1588 = vadd.f32 %v1541, %v640
    %v1589 = vadd.f32 %v1543, %v641
    %v1590 = vmul.f32 %v1588, 0.5
    %v1591 = vmul.f32 %v1589, 0.5
    %v1592 = vtanh.pop %v1590
    %v1593 = vtanh.pop %v1591
    %v1594 = vmul.f32 %v1592, 0.5
    %v1595 = vmul.f32 %v1593, 0.5
    %v1596 = vadd.f32 %v1594, 0.5
    %v1597 = vadd.f32 %v1595, 0.5
    %v1598 = vadd.f32 %v1582, %v645
    %v1599 = vadd.f32 %v1584, %v648
    %v1600 = vmul.f32 %v1596, %v1599
    %v1601 = vadd.f32 %v1598, %v1600
    %v1602 = vtanh.pop %v1601
    %v1603 = vsub.f32 %v1402, %v1602
    %v1604 = vmul.f32 %v1597, %v1603
    %v1605 = vadd.f32 %v1602, %v1604
    %v1670 = vunpack.c.l.b16 %v576
    %v1671 = vunpack.c.h.b16 %v576
    %v1672 = vunpack.c.l.b16 %v577
    %v1673 = vunpack.c.h.b16 %v577
    %v1674 = vunpack.c.l.b16 %v578
    %v1675 = vunpack.c.h.b16 %v578
    %v1676 = vunpack.c.l.b16 %v579
    %v1677 = vunpack.c.h.b16 %v579
    %v1678 = vunpack.c.l.b16 %v580
    %v1679 = vunpack.c.h.b16 %v580
    %v1680 = vunpack.c.l.b16 %v581
    %v1681 = vunpack.c.h.b16 %v581
    %v1682 = vunpack.c.l.b16 %v582
    %v1683 = vunpack.c.h.b16 %v582
    %v1684 = vunpack.c.l.b16 %v583
    %v1685 = vunpack.c.h.b16 %v583
    %v1686 = vunpack.c.l.b16 %v584
    %v1687 = vunpack.c.h.b16 %v584
    %v1688 = vunpack.c.l.b16 %v585
    %v1689 = vunpack.c.h.b16 %v585
    %v1690 = vunpack.c.l.b16 %v586
    %v1691 = vunpack.c.h.b16 %v586
    %v1692 = vunpack.c.l.b16 %v587
    %v1693 = vunpack.c.h.b16 %v587
    %v1694 = vunpack.c.l.b16 %v588
    %v1695 = vunpack.c.h.b16 %v588
    %v1696 = vunpack.c.l.b16 %v589
    %v1697 = vunpack.c.h.b16 %v589
    %v1698 = vunpack.c.l.b16 %v590
    %v1699 = vunpack.c.h.b16 %v590
    %v1700 = vunpack.c.l.b16 %v591
    %v1701 = vunpack.c.h.b16 %v591
    %v1702 = vunpack.c.l.b16 %v592
    %v1703 = vunpack.c.h.b16 %v592
    %v1704 = vunpack.c.l.b16 %v593
    %v1705 = vunpack.c.h.b16 %v593
    %v1706 = vunpack.c.l.b16 %v594
    %v1707 = vunpack.c.h.b16 %v594
    %v1708 = vunpack.c.l.b16 %v595
    %v1709 = vunpack.c.h.b16 %v595
    %v1710 = vunpack.c.l.b16 %v596
    %v1711 = vunpack.c.h.b16 %v596
    %v1712 = vunpack.c.l.b16 %v597
    %v1713 = vunpack.c.h.b16 %v597
    %v1714 = vunpack.c.l.b16 %v598
    %v1715 = vunpack.c.h.b16 %v598
    %v1716 = vunpack.c.l.b16 %v599
    %v1717 = vunpack.c.h.b16 %v599
    %v1718 = vunpack.c.l.b16 %v600
    %v1719 = vunpack.c.h.b16 %v600
    %v1720 = vunpack.c.l.b16 %v601
    %v1721 = vunpack.c.h.b16 %v601
    %v1722 = vunpack.c.l.b16 %v602
    %v1723 = vunpack.c.h.b16 %v602
    %v1724 = vunpack.c.l.b16 %v603
    %v1725 = vunpack.c.h.b16 %v603
    %v1726 = vunpack.c.l.b16 %v604
    %v1727 = vunpack.c.h.b16 %v604
    %v1728 = vunpack.c.l.b16 %v605
    %v1729 = vunpack.c.h.b16 %v605
    %v1730 = vunpack.c.l.b16 %v606
    %v1731 = vunpack.c.h.b16 %v606
    %v1732 = vunpack.c.l.b16 %v607
    %v1733 = vunpack.c.h.b16 %v607
    %v1734 = vunpack.c.l.b16 %v608
    %v1735 = vunpack.c.h.b16 %v608
    %v1736 = vunpack.c.l.b16 %v609
    %v1737 = vunpack.c.h.b16 %v609
    %v1738 = vunpack.c.l.b16 %v610
    %v1739 = vunpack.c.h.b16 %v610
    %v1740 = vunpack.c.l.b16 %v611
    %v1741 = vunpack.c.h.b16 %v611
    %v1742 = vunpack.c.l.b16 %v612
    %v1743 = vunpack.c.h.b16 %v612
    %v1744 = vunpack.c.l.b16 %v613
    %v1745 = vunpack.c.h.b16 %v613
    %v1746 = vunpack.c.l.b16 %v614
    %v1747 = vunpack.c.h.b16 %v614
    %v1748 = vunpack.c.l.b16 %v615
    %v1749 = vunpack.c.h.b16 %v615
    %v1750 = vunpack.c.l.b16 %v616
    %v1751 = vunpack.c.h.b16 %v616
    %v1752 = vunpack.c.l.b16 %v617
    %v1753 = vunpack.c.h.b16 %v617
    %v1754 = vunpack.c.l.b16 %v618
    %v1755 = vunpack.c.h.b16 %v618
    %v1756 = vunpack.c.l.b16 %v619
    %v1757 = vunpack.c.h.b16 %v619
    %v1758 = vunpack.c.l.b16 %v620
    %v1759 = vunpack.c.h.b16 %v620
    %v1760 = vunpack.c.l.b16 %v621
    %v1761 = vunpack.c.h.b16 %v621
    %v1762 = vunpack.c.l.b16 %v622
    %v1763 = vunpack.c.h.b16 %v622
    %v1764 = vunpack.c.l.b16 %v623
    %v1765 = vunpack.c.h.b16 %v623
    %v1766 = vunpack.c.l.b16 %v624
    %v1767 = vunpack.c.h.b16 %v624
    %v1768 = vunpack.c.l.b16 %v625
    %v1769 = vunpack.c.h.b16 %v625
    %v1770 = vunpack.c.l.b16 %v626
    %v1771 = vunpack.c.h.b16 %v626
    %v1772 = vunpack.c.l.b16 %v627
    %v1773 = vunpack.c.h.b16 %v627
    %v1774 = vunpack.c.l.b16 %v628
    %v1775 = vunpack.c.h.b16 %v628
    %v1776 = vunpack.c.l.b16 %v629
    %v1777 = vunpack.c.h.b16 %v629
    %v1778 = vunpack.c.l.b16 %v630
    %v1779 = vunpack.c.h.b16 %v630
    %v1780 = vunpack.c.l.b16 %v631
    %v1781 = vunpack.c.h.b16 %v631
    %v1782 = vunpack.c.l.b16 %v632
    %v1783 = vunpack.c.h.b16 %v632
    %v1784 = vunpack.c.l.b16 %v633
    %v1785 = vunpack.c.h.b16 %v633
    %v1786 = vunpack.c.l.b16 %v634
    %v1787 = vunpack.c.h.b16 %v634
    %v1788 = vunpack.c.l.b16 %v635
    %v1789 = vunpack.c.h.b16 %v635
    %v1790 = vunpack.c.l.b16 %v636
    %v1791 = vunpack.c.h.b16 %v636
    %v1792 = vunpack.c.l.b16 %v637
    %v1793 = vunpack.c.h.b16 %v637
    %v1794 = vunpack.c.l.b16 %v638
    %v1795 = vunpack.c.h.b16 %v638
    %v1796 = vunpack.c.l.b16 %v639
    %v1797 = vunpack.c.h.b16 %v639
    %v1798 = vpack.c.b16 %v1674, %v1670
    %v1799 = vpack.c.b16 %v1675, %v1671
    %v1800 = vpack.c.b16 %v1676, %v1672
    %v1801 = vpack.c.b16 %v1677, %v1673
    %v1802 = vpack.c.b16 %v1682, %v1678
    %v1803 = vpack.c.b16 %v1683, %v1679
    %v1804 = vpack.c.b16 %v1684, %v1680
    %v1805 = vpack.c.b16 %v1685, %v1681
    %v1806 = vpack.c.b16 %v1690, %v1686
    %v1807 = vpack.c.b16 %v1691, %v1687
    %v1808 = vpack.c.b16 %v1692, %v1688
    %v1809 = vpack.c.b16 %v1693, %v1689
    %v1810 = vpack.c.b16 %v1698, %v1694
    %v1811 = vpack.c.b16 %v1699, %v1695
    %v1812 = vpack.c.b16 %v1700, %v1696
    %v1813 = vpack.c.b16 %v1701, %v1697
    %v1814 = vpack.c.b16 %v1706, %v1702
    %v1815 = vpack.c.b16 %v1707, %v1703
    %v1816 = vpack.c.b16 %v1708, %v1704
    %v1817 = vpack.c.b16 %v1709, %v1705
    %v1818 = vpack.c.b16 %v1714, %v1710
    %v1819 = vpack.c.b16 %v1715, %v1711
    %v1820 = vpack.c.b16 %v1716, %v1712
    %v1821 = vpack.c.b16 %v1717, %v1713
    %v1822 = vpack.c.b16 %v1722, %v1718
    %v1823 = vpack.c.b16 %v1723, %v1719
    %v1824 = vpack.c.b16 %v1724, %v1720
    %v1825 = vpack.c.b16 %v1725, %v1721
    %v1826 = vpack.c.b16 %v1730, %v1726
    %v1827 = vpack.c.b16 %v1731, %v1727
    %v1828 = vpack.c.b16 %v1732, %v1728
    %v1829 = vpack.c.b16 %v1733, %v1729
    %v1830 = vpack.c.b16 %v1738, %v1734
    %v1831 = vpack.c.b16 %v1739, %v1735
    %v1832 = vpack.c.b16 %v1740, %v1736
    %v1833 = vpack.c.b16 %v1741, %v1737
    %v1834 = vpack.c.b16 %v1746, %v1742
    %v1835 = vpack.c.b16 %v1747, %v1743
    %v1836 = vpack.c.b16 %v1748, %v1744
    %v1837 = vpack.c.b16 %v1749, %v1745
    %v1838 = vpack.c.b16 %v1754, %v1750
    %v1839 = vpack.c.b16 %v1755, %v1751
    %v1840 = vpack.c.b16 %v1756, %v1752
    %v1841 = vpack.c.b16 %v1757, %v1753
    %v1842 = vpack.c.b16 %v1762, %v1758
    %v1843 = vpack.c.b16 %v1763, %v1759
    %v1844 = vpack.c.b16 %v1764, %v1760
    %v1845 = vpack.c.b16 %v1765, %v1761
    %v1846 = vpack.c.b16 %v1770, %v1766
    %v1847 = vpack.c.b16 %v1771, %v1767
    %v1848 = vpack.c.b16 %v1772, %v1768
    %v1849 = vpack.c.b16 %v1773, %v1769
    %v1850 = vpack.c.b16 %v1778, %v1774
    %v1851 = vpack.c.b16 %v1779, %v1775
    %v1852 = vpack.c.b16 %v1780, %v1776
    %v1853 = vpack.c.b16 %v1781, %v1777
    %v1854 = vpack.c.b16 %v1786, %v1782
    %v1855 = vpack.c.b16 %v1787, %v1783
    %v1856 = vpack.c.b16 %v1788, %v1784
    %v1857 = vpack.c.b16 %v1789, %v1785
    %v1858 = vpack.c.b16 %v1794, %v1790
    %v1859 = vpack.c.b16 %v1795, %v1791
    %v1860 = vpack.c.b16 %v1796, %v1792
    %v1861 = vpack.c.b16 %v1797, %v1793
    %1926 = vmatprep.subr.bf16.mxu0 %v1827
    %1927 = vmatpush1.bf16.msra.mxu0 %v1826
    %1928 = vmatprep.subr.bf16.mxu0 %v1823
    %1929 = vmatpush1.bf16.msra.mxu0 %v1822
    %1930 = vmatprep.subr.bf16.mxu0 %v1819
    %1931 = vmatpush1.bf16.msra.mxu0 %v1818
    %1932 = vmatprep.subr.bf16.mxu0 %v1815
    %1933 = vmatpush1.bf16.msra.mxu0 %v1814
    %1934 = vmatprep.subr.bf16.mxu0 %v1811
    %1935 = vmatpush1.bf16.msra.mxu0 %v1810
    %1936 = vmatprep.subr.bf16.mxu0 %v1807
    %1937 = vmatpush1.bf16.msra.mxu0 %v1806
    %1938 = vmatprep.subr.bf16.mxu0 %v1803
    %1939 = vmatpush1.bf16.msra.mxu0 %v1802
    %1940 = vmatprep.subr.bf16.mxu0 %v1799
    %1941 = vmatpush1.bf16.msra.mxu0 %v1798
    %1942 = vmatprep.subr.bf16.mxu0 %v1859
    %1943 = vmatpush2.bf16.msra.mxu0 %v1858
    %1944 = vmatprep.subr.bf16.mxu0 %v1855
    %1945 = vmatpush2.bf16.msra.mxu0 %v1854
    %1946 = vmatprep.subr.bf16.mxu0 %v1851
    %1947 = vmatpush2.bf16.msra.mxu0 %v1850
    %1948 = vmatprep.subr.bf16.mxu0 %v1847
    %1949 = vmatpush2.bf16.msra.mxu0 %v1846
    %1950 = vmatprep.subr.bf16.mxu0 %v1843
    %1951 = vmatpush2.bf16.msra.mxu0 %v1842
    %1952 = vmatprep.subr.bf16.mxu0 %v1839
    %1953 = vmatpush2.bf16.msra.mxu0 %v1838
    %1954 = vmatprep.subr.bf16.mxu0 %v1835
    %1955 = vmatpush2.bf16.msra.mxu0 %v1834
    %1956 = vmatprep.subr.bf16.mxu0 %v1831
    %1957 = vmatpush2.bf16.msra.mxu0 %v1830
    %1958 = vmatprep.mubr.bf16.mxu0 %v982
    %1959 = vmatmul.mubr.bf16.gmra.mxu0 %v1505
    %v1960 = vpop.f32.mrf.mxu0
    %v1961 = vadd.f32 0.0, %v1960
    %v1962 = vpop.f32.mrf.mxu0
    %v1963 = vadd.f32 0.0, %v1962
    %v1964 = vpop.f32.mrf.mxu0
    %v1965 = vpop.f32.mrf.mxu0
    %1966 = vdwg.mxu0
    %1967 = vmatprep.subr.bf16.mxu0 %v1829
    %1968 = vmatpush1.bf16.msra.mxu0 %v1828
    %1969 = vmatprep.subr.bf16.mxu0 %v1825
    %1970 = vmatpush1.bf16.msra.mxu0 %v1824
    %1971 = vmatprep.subr.bf16.mxu0 %v1821
    %1972 = vmatpush1.bf16.msra.mxu0 %v1820
    %1973 = vmatprep.subr.bf16.mxu0 %v1817
    %1974 = vmatpush1.bf16.msra.mxu0 %v1816
    %1975 = vmatprep.subr.bf16.mxu0 %v1813
    %1976 = vmatpush1.bf16.msra.mxu0 %v1812
    %1977 = vmatprep.subr.bf16.mxu0 %v1809
    %1978 = vmatpush1.bf16.msra.mxu0 %v1808
    %1979 = vmatprep.subr.bf16.mxu0 %v1805
    %1980 = vmatpush1.bf16.msra.mxu0 %v1804
    %1981 = vmatprep.subr.bf16.mxu0 %v1801
    %1982 = vmatpush1.bf16.msra.mxu0 %v1800
    %1983 = vmatprep.subr.bf16.mxu0 %v1861
    %1984 = vmatpush2.bf16.msra.mxu0 %v1860
    %1985 = vmatprep.subr.bf16.mxu0 %v1857
    %1986 = vmatpush2.bf16.msra.mxu0 %v1856
    %1987 = vmatprep.subr.bf16.mxu0 %v1853
    %1988 = vmatpush2.bf16.msra.mxu0 %v1852
    %1989 = vmatprep.subr.bf16.mxu0 %v1849
    %1990 = vmatpush2.bf16.msra.mxu0 %v1848
    %1991 = vmatprep.subr.bf16.mxu0 %v1845
    %1992 = vmatpush2.bf16.msra.mxu0 %v1844
    %1993 = vmatprep.subr.bf16.mxu0 %v1841
    %1994 = vmatpush2.bf16.msra.mxu0 %v1840
    %1995 = vmatprep.subr.bf16.mxu0 %v1837
    %1996 = vmatpush2.bf16.msra.mxu0 %v1836
    %1997 = vmatprep.subr.bf16.mxu0 %v1833
    %1998 = vmatpush2.bf16.msra.mxu0 %v1832
    %1999 = vmatprep.mubr.bf16.mxu0 %v982
    %2000 = vmatmul.mubr.bf16.gmra.mxu0 %v1505
    %v2001 = vpop.f32.mrf.mxu0
    %v2002 = vadd.f32 0.0, %v2001
    %v2003 = vpop.f32.mrf.mxu0
    %v2004 = vadd.f32 0.0, %v2003
    %v2005 = vpop.f32.mrf.mxu0
    %v2006 = vpop.f32.mrf.mxu0
    %2007 = vdwg.mxu0
    %v2008 = vadd.f32 %v1961, %v643
    %v2009 = vadd.f32 %v1963, %v644
    %v2010 = vmul.f32 %v2008, 0.5
    %v2011 = vmul.f32 %v2009, 0.5
    %v2012 = vtanh.pop %v2010
    %v2013 = vtanh.pop %v2011
    %v2014 = vmul.f32 %v2012, 0.5
    %v2015 = vmul.f32 %v2013, 0.5
    %v2016 = vadd.f32 %v2014, 0.5
    %v2017 = vadd.f32 %v2015, 0.5
    %v2018 = vadd.f32 %v2002, %v647
    %v2019 = vadd.f32 %v2004, %v650
    %v2020 = vmul.f32 %v2016, %v2019
    %v2021 = vadd.f32 %v2018, %v2020
    %v2022 = vtanh.pop %v2021
    %v2023 = vsub.f32 0.0, %v2022
    %v2024 = vmul.f32 %v2017, %v2023
    %v2025 = vadd.f32 %v2022, %v2024
    %v2026 = vld [vmem:[#allocation2 + $0x48] sm:$0xff]
    %v2027 = vld [vmem:[#allocation2 + $0x50] sm:$0xff]
    %v2028 = vld [vmem:[#allocation2 + $0x58] sm:$0xff]
    %v2029 = vpack.c.bf16 %v1504, %v1504
    %2030 = vmatprep.subr.bf16.mxu0 %v756
    %2031 = vmatpush1.bf16.msra.mxu0 %v755
    %2032 = vmatprep.subr.bf16.mxu0 %v753
    %2033 = vmatpush1.bf16.msra.mxu0 %v752
    %2034 = vmatprep.subr.bf16.mxu0 %v750
    %2035 = vmatpush1.bf16.msra.mxu0 %v749
    %2036 = vmatprep.subr.bf16.mxu0 %v747
    %2037 = vmatpush1.bf16.msra.mxu0 %v746
    %2038 = vmatprep.subr.bf16.mxu0 %v744
    %2039 = vmatpush1.bf16.msra.mxu0 %v743
    %2040 = vmatprep.subr.bf16.mxu0 %v741
    %2041 = vmatpush1.bf16.msra.mxu0 %v740
    %2042 = vmatprep.subr.bf16.mxu0 %v738
    %2043 = vmatpush1.bf16.msra.mxu0 %v737
    %2044 = vmatprep.subr.bf16.mxu0 %v735
    %2045 = vmatpush1.bf16.msra.mxu0 %v734
    %2046 = vmatprep.subr.bf16.mxu0 0
    %2047 = vmatpush2.bf16.msra.mxu0 0
    %2048 = vmatprep.subr.bf16.mxu0 0
    %2049 = vmatpush2.bf16.msra.mxu0 0
    %2050 = vmatprep.subr.bf16.mxu0 0
    %2051 = vmatpush2.bf16.msra.mxu0 0
    %2052 = vmatprep.subr.bf16.mxu0 0
    %2053 = vmatpush2.bf16.msra.mxu0 0
    %2054 = vmatprep.subr.bf16.mxu0 0
    %2055 = vmatpush2.bf16.msra.mxu0 0
    %2056 = vmatprep.subr.bf16.mxu0 0
    %2057 = vmatpush2.bf16.msra.mxu0 0
    %2058 = vmatprep.subr.bf16.mxu0 0
    %2059 = vmatpush2.bf16.msra.mxu0 0
    %2060 = vmatprep.subr.bf16.mxu0 0
    %2061 = vmatpush2.bf16.msra.mxu0 0
    %2062 = vmatprep.mubr.bf16.mxu0 0
    %2063 = vmatmul.mubr.bf16.gmra.mxu0 %v2029
    %v2064 = vpop.f32.mrf.mxu0
    %v2065 = vadd.f32 0.0, %v2064
    %v2066 = vpop.f32.mrf.mxu0
    %v2067 = vadd.f32 0.0, %v2066
    %v2068 = vpop.f32.mrf.mxu0
    %v2069 = vpop.f32.mrf.mxu0
    %2070 = vdwg.mxu0
    %2071 = vmatprep.subr.bf16.mxu0 0
    %2072 = vmatpush1.bf16.msra.mxu0 %v757
    %2073 = vmatprep.subr.bf16.mxu0 0
    %2074 = vmatpush1.bf16.msra.mxu0 %v754
    %2075 = vmatprep.subr.bf16.mxu0 0
    %2076 = vmatpush1.bf16.msra.mxu0 %v751
    %2077 = vmatprep.subr.bf16.mxu0 0
    %2078 = vmatpush1.bf16.msra.mxu0 %v748
    %2079 = vmatprep.subr.bf16.mxu0 0
    %2080 = vmatpush1.bf16.msra.mxu0 %v745
    %2081 = vmatprep.subr.bf16.mxu0 0
    %2082 = vmatpush1.bf16.msra.mxu0 %v742
    %2083 = vmatprep.subr.bf16.mxu0 0
    %2084 = vmatpush1.bf16.msra.mxu0 %v739
    %2085 = vmatprep.subr.bf16.mxu0 0
    %2086 = vmatpush1.bf16.msra.mxu0 %v736
    %2087 = vmatprep.subr.bf16.mxu0 0
    %2088 = vmatpush2.bf16.msra.mxu0 0
    %2089 = vmatprep.subr.bf16.mxu0 0
    %2090 = vmatpush2.bf16.msra.mxu0 0
    %2091 = vmatprep.subr.bf16.mxu0 0
    %2092 = vmatpush2.bf16.msra.mxu0 0
    %2093 = vmatprep.subr.bf16.mxu0 0
    %2094 = vmatpush2.bf16.msra.mxu0 0
    %2095 = vmatprep.subr.bf16.mxu0 0
    %2096 = vmatpush2.bf16.msra.mxu0 0
    %2097 = vmatprep.subr.bf16.mxu0 0
    %2098 = vmatpush2.bf16.msra.mxu0 0
    %2099 = vmatprep.subr.bf16.mxu0 0
    %2100 = vmatpush2.bf16.msra.mxu0 0
    %2101 = vmatprep.subr.bf16.mxu0 0
    %2102 = vmatpush2.bf16.msra.mxu0 0
    %2103 = vmatprep.mubr.bf16.mxu0 0
    %2104 = vmatmul.mubr.bf16.gmra.mxu0 %v2029
    %v2105 = vpop.f32.mrf.mxu0
    %v2106 = vadd.f32 0.0, %v2105
    %v2107 = vpop.f32.mrf.mxu0
    %v2108 = vpop.f32.mrf.mxu0
    %v2109 = vpop.f32.mrf.mxu0
    %2110 = vdwg.mxu0
    %v2111 = vadd.f32 %v2026, %v2065
    %v2112 = vadd.f32 %v2027, %v2067
    %v2113 = vmul.f32 %v2111, 0.5
    %v2114 = vmul.f32 %v2112, 0.5
    %v2115 = vtanh.pop %v2113
    %v2116 = vtanh.pop %v2114
    %v2117 = vmul.f32 %v2115, 0.5
    %v2118 = vmul.f32 %v2116, 0.5
    %v2119 = vadd.f32 %v2117, 0.5
    %v2120 = vadd.f32 %v2118, 0.5
    %v2121 = vadd.f32 %v2106, %v510
    %v2122 = vmul.f32 %v2119, %v2121
    %v2123 = vadd.f32 %v2028, %v2122
    %v2124 = vtanh.pop %v2123
    %v2125 = vsub.f32 %v1504, %v2124
    %v2126 = vmul.f32 %v2120, %v2125
    %v2127 = vadd.f32 %v2124, %v2126
    %v2128 = vpack.c.bf16 %v1605, %v1605
    %2129 = vmatprep.subr.bf16.mxu0 %v1204
    %2130 = vmatpush1.bf16.msra.mxu0 %v1203
    %2131 = vmatprep.subr.bf16.mxu0 %v1200
    %2132 = vmatpush1.bf16.msra.mxu0 %v1199
    %2133 = vmatprep.subr.bf16.mxu0 %v1196
    %2134 = vmatpush1.bf16.msra.mxu0 %v1195
    %2135 = vmatprep.subr.bf16.mxu0 %v1192
    %2136 = vmatpush1.bf16.msra.mxu0 %v1191
    %2137 = vmatprep.subr.bf16.mxu0 %v1188
    %2138 = vmatpush1.bf16.msra.mxu0 %v1187
    %2139 = vmatprep.subr.bf16.mxu0 %v1184
    %2140 = vmatpush1.bf16.msra.mxu0 %v1183
    %2141 = vmatprep.subr.bf16.mxu0 %v1180
    %2142 = vmatpush1.bf16.msra.mxu0 %v1179
    %2143 = vmatprep.subr.bf16.mxu0 %v1176
    %2144 = vmatpush1.bf16.msra.mxu0 %v1175
    %2145 = vmatprep.subr.bf16.mxu0 %v1236
    %2146 = vmatpush2.bf16.msra.mxu0 %v1235
    %2147 = vmatprep.subr.bf16.mxu0 %v1232
    %2148 = vmatpush2.bf16.msra.mxu0 %v1231
    %2149 = vmatprep.subr.bf16.mxu0 %v1228
    %2150 = vmatpush2.bf16.msra.mxu0 %v1227
    %2151 = vmatprep.subr.bf16.mxu0 %v1224
    %2152 = vmatpush2.bf16.msra.mxu0 %v1223
    %2153 = vmatprep.subr.bf16.mxu0 %v1220
    %2154 = vmatpush2.bf16.msra.mxu0 %v1219
    %2155 = vmatprep.subr.bf16.mxu0 %v1216
    %2156 = vmatpush2.bf16.msra.mxu0 %v1215
    %2157 = vmatprep.subr.bf16.mxu0 %v1212
    %2158 = vmatpush2.bf16.msra.mxu0 %v1211
    %2159 = vmatprep.subr.bf16.mxu0 %v1208
    %2160 = vmatpush2.bf16.msra.mxu0 %v1207
    %2161 = vmatprep.mubr.bf16.mxu0 %v2128
    %2162 = vmatmul.mubr.bf16.gmra.mxu0 %v2029
    %v2163 = vpop.f32.mrf.mxu0
    %v2164 = vadd.f32 0.0, %v2163
    %v2165 = vpop.f32.mrf.mxu0
    %v2166 = vadd.f32 0.0, %v2165
    %v2167 = vpop.f32.mrf.mxu0
    %v2168 = vpop.f32.mrf.mxu0
    %2169 = vdwg.mxu0
    %2170 = vmatprep.subr.bf16.mxu0 %v1206
    %2171 = vmatpush1.bf16.msra.mxu0 %v1205
    %2172 = vmatprep.subr.bf16.mxu0 %v1202
    %2173 = vmatpush1.bf16.msra.mxu0 %v1201
    %2174 = vmatprep.subr.bf16.mxu0 %v1198
    %2175 = vmatpush1.bf16.msra.mxu0 %v1197
    %2176 = vmatprep.subr.bf16.mxu0 %v1194
    %2177 = vmatpush1.bf16.msra.mxu0 %v1193
    %2178 = vmatprep.subr.bf16.mxu0 %v1190
    %2179 = vmatpush1.bf16.msra.mxu0 %v1189
    %2180 = vmatprep.subr.bf16.mxu0 %v1186
    %2181 = vmatpush1.bf16.msra.mxu0 %v1185
    %2182 = vmatprep.subr.bf16.mxu0 %v1182
    %2183 = vmatpush1.bf16.msra.mxu0 %v1181
    %2184 = vmatprep.subr.bf16.mxu0 %v1178
    %2185 = vmatpush1.bf16.msra.mxu0 %v1177
    %2186 = vmatprep.subr.bf16.mxu0 %v1238
    %2187 = vmatpush2.bf16.msra.mxu0 %v1237
    %2188 = vmatprep.subr.bf16.mxu0 %v1234
    %2189 = vmatpush2.bf16.msra.mxu0 %v1233
    %2190 = vmatprep.subr.bf16.mxu0 %v1230
    %2191 = vmatpush2.bf16.msra.mxu0 %v1229
    %2192 = vmatprep.subr.bf16.mxu0 %v1226
    %2193 = vmatpush2.bf16.msra.mxu0 %v1225
    %2194 = vmatprep.subr.bf16.mxu0 %v1222
    %2195 = vmatpush2.bf16.msra.mxu0 %v1221
    %2196 = vmatprep.subr.bf16.mxu0 %v1218
    %2197 = vmatpush2.bf16.msra.mxu0 %v1217
    %2198 = vmatprep.subr.bf16.mxu0 %v1214
    %2199 = vmatpush2.bf16.msra.mxu0 %v1213
    %2200 = vmatprep.subr.bf16.mxu0 %v1210
    %2201 = vmatpush2.bf16.msra.mxu0 %v1209
    %2202 = vmatprep.mubr.bf16.mxu0 %v2128
    %2203 = vmatmul.mubr.bf16.gmra.mxu0 %v2029
    %v2204 = vpop.f32.mrf.mxu0
    %v2205 = vadd.f32 0.0, %v2204
    %v2206 = vpop.f32.mrf.mxu0
    %v2207 = vadd.f32 0.0, %v2206
    %v2208 = vpop.f32.mrf.mxu0
    %v2209 = vpop.f32.mrf.mxu0
    %2210 = vdwg.mxu0
    %v2211 = vadd.f32 %v2164, %v640
    %v2212 = vadd.f32 %v2166, %v641
    %v2213 = vmul.f32 %v2211, 0.5
    %v2214 = vmul.f32 %v2212, 0.5
    %v2215 = vtanh.pop %v2213
    %v2216 = vtanh.pop %v2214
    %v2217 = vmul.f32 %v2215, 0.5
    %v2218 = vmul.f32 %v2216, 0.5
    %v2219 = vadd.f32 %v2217, 0.5
    %v2220 = vadd.f32 %v2218, 0.5
    %v2221 = vadd.f32 %v2205, %v645
    %v2222 = vadd.f32 %v2207, %v648
    %v2223 = vmul.f32 %v2219, %v2222
    %v2224 = vadd.f32 %v2221, %v2223
    %v2225 = vtanh.pop %v2224
    %v2226 = vsub.f32 %v1605, %v2225
    %v2227 = vmul.f32 %v2220, %v2226
    %v2228 = vadd.f32 %v2225, %v2227
    %v2229 = vpack.c.bf16 %v2025, %v2025
    %2230 = vmatprep.subr.bf16.mxu0 %v1827
    %2231 = vmatpush1.bf16.msra.mxu0 %v1826
    %2232 = vmatprep.subr.bf16.mxu0 %v1823
    %2233 = vmatpush1.bf16.msra.mxu0 %v1822
    %2234 = vmatprep.subr.bf16.mxu0 %v1819
    %2235 = vmatpush1.bf16.msra.mxu0 %v1818
    %2236 = vmatprep.subr.bf16.mxu0 %v1815
    %2237 = vmatpush1.bf16.msra.mxu0 %v1814
    %2238 = vmatprep.subr.bf16.mxu0 %v1811
    %2239 = vmatpush1.bf16.msra.mxu0 %v1810
    %2240 = vmatprep.subr.bf16.mxu0 %v1807
    %2241 = vmatpush1.bf16.msra.mxu0 %v1806
    %2242 = vmatprep.subr.bf16.mxu0 %v1803
    %2243 = vmatpush1.bf16.msra.mxu0 %v1802
    %2244 = vmatprep.subr.bf16.mxu0 %v1799
    %2245 = vmatpush1.bf16.msra.mxu0 %v1798
    %2246 = vmatprep.subr.bf16.mxu0 %v1859
    %2247 = vmatpush2.bf16.msra.mxu0 %v1858
    %2248 = vmatprep.subr.bf16.mxu0 %v1855
    %2249 = vmatpush2.bf16.msra.mxu0 %v1854
    %2250 = vmatprep.subr.bf16.mxu0 %v1851
    %2251 = vmatpush2.bf16.msra.mxu0 %v1850
    %2252 = vmatprep.subr.bf16.mxu0 %v1847
    %2253 = vmatpush2.bf16.msra.mxu0 %v1846
    %2254 = vmatprep.subr.bf16.mxu0 %v1843
    %2255 = vmatpush2.bf16.msra.mxu0 %v1842
    %2256 = vmatprep.subr.bf16.mxu0 %v1839
    %2257 = vmatpush2.bf16.msra.mxu0 %v1838
    %2258 = vmatprep.subr.bf16.mxu0 %v1835
    %2259 = vmatpush2.bf16.msra.mxu0 %v1834
    %2260 = vmatprep.subr.bf16.mxu0 %v1831
    %2261 = vmatpush2.bf16.msra.mxu0 %v1830
    %2262 = vmatprep.mubr.bf16.mxu0 %v2229
    %2263 = vmatmul.mubr.bf16.gmra.mxu0 %v2128
    %v2264 = vpop.f32.mrf.mxu0
    %v2265 = vadd.f32 0.0, %v2264
    %v2266 = vpop.f32.mrf.mxu0
    %v2267 = vadd.f32 0.0, %v2266
    %v2268 = vpop.f32.mrf.mxu0
    %v2269 = vpop.f32.mrf.mxu0
    %2270 = vdwg.mxu0
    %2271 = vmatprep.subr.bf16.mxu0 %v1829
    %2272 = vmatpush1.bf16.msra.mxu0 %v1828
    %2273 = vmatprep.subr.bf16.mxu0 %v1825
    %2274 = vmatpush1.bf16.msra.mxu0 %v1824
    %2275 = vmatprep.subr.bf16.mxu0 %v1821
    %2276 = vmatpush1.bf16.msra.mxu0 %v1820
    %2277 = vmatprep.subr.bf16.mxu0 %v1817
    %2278 = vmatpush1.bf16.msra.mxu0 %v1816
    %2279 = vmatprep.subr.bf16.mxu0 %v1813
    %2280 = vmatpush1.bf16.msra.mxu0 %v1812
    %2281 = vmatprep.subr.bf16.mxu0 %v1809
    %2282 = vmatpush1.bf16.msra.mxu0 %v1808
    %2283 = vmatprep.subr.bf16.mxu0 %v1805
    %2284 = vmatpush1.bf16.msra.mxu0 %v1804
    %2285 = vmatprep.subr.bf16.mxu0 %v1801
    %2286 = vmatpush1.bf16.msra.mxu0 %v1800
    %2287 = vmatprep.subr.bf16.mxu0 %v1861
    %2288 = vmatpush2.bf16.msra.mxu0 %v1860
    %2289 = vmatprep.subr.bf16.mxu0 %v1857
    %2290 = vmatpush2.bf16.msra.mxu0 %v1856
    %2291 = vmatprep.subr.bf16.mxu0 %v1853
    %2292 = vmatpush2.bf16.msra.mxu0 %v1852
    %2293 = vmatprep.subr.bf16.mxu0 %v1849
    %2294 = vmatpush2.bf16.msra.mxu0 %v1848
    %2295 = vmatprep.subr.bf16.mxu0 %v1845
    %2296 = vmatpush2.bf16.msra.mxu0 %v1844
    %2297 = vmatprep.subr.bf16.mxu0 %v1841
    %2298 = vmatpush2.bf16.msra.mxu0 %v1840
    %2299 = vmatprep.subr.bf16.mxu0 %v1837
    %2300 = vmatpush2.bf16.msra.mxu0 %v1836
    %2301 = vmatprep.subr.bf16.mxu0 %v1833
    %2302 = vmatpush2.bf16.msra.mxu0 %v1832
    %2303 = vmatprep.mubr.bf16.mxu0 %v2229
    %2304 = vmatmul.mubr.bf16.gmra.mxu0 %v2128
    %v2305 = vpop.f32.mrf.mxu0
    %v2306 = vadd.f32 0.0, %v2305
    %v2307 = vpop.f32.mrf.mxu0
    %v2308 = vadd.f32 0.0, %v2307
    %v2309 = vpop.f32.mrf.mxu0
    %v2310 = vpop.f32.mrf.mxu0
    %2311 = vdwg.mxu0
    %v2312 = vadd.f32 %v2265, %v643
    %v2313 = vadd.f32 %v2267, %v644
    %v2314 = vmul.f32 %v2312, 0.5
    %v2315 = vmul.f32 %v2313, 0.5
    %v2316 = vtanh.pop %v2314
    %v2317 = vtanh.pop %v2315
    %v2318 = vmul.f32 %v2316, 0.5
    %v2319 = vmul.f32 %v2317, 0.5
    %v2320 = vadd.f32 %v2318, 0.5
    %v2321 = vadd.f32 %v2319, 0.5
    %v2322 = vadd.f32 %v2306, %v647
    %v2323 = vadd.f32 %v2308, %v650
    %v2324 = vmul.f32 %v2320, %v2323
    %v2325 = vadd.f32 %v2322, %v2324
    %v2326 = vtanh.pop %v2325
    %v2327 = vsub.f32 %v2025, %v2326
    %v2328 = vmul.f32 %v2321, %v2327
    %v2329 = vadd.f32 %v2326, %v2328
    %v2330 = vld [vmem:[#allocation2 + $0x60] sm:$0xff]
    %v2331 = vld [vmem:[#allocation2 + $0x68] sm:$0xff]
    %v2332 = vld [vmem:[#allocation2 + $0x70] sm:$0xff]
    %v2333 = vpack.c.bf16 %v2127, %v2127
    %2334 = vmatprep.subr.bf16.mxu0 %v756
    %2335 = vmatpush1.bf16.msra.mxu0 %v755
    %2336 = vmatprep.subr.bf16.mxu0 %v753
    %2337 = vmatpush1.bf16.msra.mxu0 %v752
    %2338 = vmatprep.subr.bf16.mxu0 %v750
    %2339 = vmatpush1.bf16.msra.mxu0 %v749
    %2340 = vmatprep.subr.bf16.mxu0 %v747
    %2341 = vmatpush1.bf16.msra.mxu0 %v746
    %2342 = vmatprep.subr.bf16.mxu0 %v744
    %2343 = vmatpush1.bf16.msra.mxu0 %v743
    %2344 = vmatprep.subr.bf16.mxu0 %v741
    %2345 = vmatpush1.bf16.msra.mxu0 %v740
    %2346 = vmatprep.subr.bf16.mxu0 %v738
    %2347 = vmatpush1.bf16.msra.mxu0 %v737
    %2348 = vmatprep.subr.bf16.mxu0 %v735
    %2349 = vmatpush1.bf16.msra.mxu0 %v734
    %2350 = vmatprep.subr.bf16.mxu0 0
    %2351 = vmatpush2.bf16.msra.mxu0 0
    %2352 = vmatprep.subr.bf16.mxu0 0
    %2353 = vmatpush2.bf16.msra.mxu0 0
    %2354 = vmatprep.subr.bf16.mxu0 0
    %2355 = vmatpush2.bf16.msra.mxu0 0
    %2356 = vmatprep.subr.bf16.mxu0 0
    %2357 = vmatpush2.bf16.msra.mxu0 0
    %2358 = vmatprep.subr.bf16.mxu0 0
    %2359 = vmatpush2.bf16.msra.mxu0 0
    %2360 = vmatprep.subr.bf16.mxu0 0
    %2361 = vmatpush2.bf16.msra.mxu0 0
    %2362 = vmatprep.subr.bf16.mxu0 0
    %2363 = vmatpush2.bf16.msra.mxu0 0
    %2364 = vmatprep.subr.bf16.mxu0 0
    %2365 = vmatpush2.bf16.msra.mxu0 0
    %2366 = vmatprep.mubr.bf16.mxu0 0
    %2367 = vmatmul.mubr.bf16.gmra.mxu0 %v2333
    %v2368 = vpop.f32.mrf.mxu0
    %v2369 = vadd.f32 0.0, %v2368
    %v2370 = vpop.f32.mrf.mxu0
    %v2371 = vadd.f32 0.0, %v2370
    %v2372 = vpop.f32.mrf.mxu0
    %v2373 = vpop.f32.mrf.mxu0
    %2374 = vdwg.mxu0
    %2375 = vmatprep.subr.bf16.mxu0 0
    %2376 = vmatpush1.bf16.msra.mxu0 %v757
    %2377 = vmatprep.subr.bf16.mxu0 0
    %2378 = vmatpush1.bf16.msra.mxu0 %v754
    %2379 = vmatprep.subr.bf16.mxu0 0
    %2380 = vmatpush1.bf16.msra.mxu0 %v751
    %2381 = vmatprep.subr.bf16.mxu0 0
    %2382 = vmatpush1.bf16.msra.mxu0 %v748
    %2383 = vmatprep.subr.bf16.mxu0 0
    %2384 = vmatpush1.bf16.msra.mxu0 %v745
    %2385 = vmatprep.subr.bf16.mxu0 0
    %2386 = vmatpush1.bf16.msra.mxu0 %v742
    %2387 = vmatprep.subr.bf16.mxu0 0
    %2388 = vmatpush1.bf16.msra.mxu0 %v739
    %2389 = vmatprep.subr.bf16.mxu0 0
    %2390 = vmatpush1.bf16.msra.mxu0 %v736
    %2391 = vmatprep.subr.bf16.mxu0 0
    %2392 = vmatpush2.bf16.msra.mxu0 0
    %2393 = vmatprep.subr.bf16.mxu0 0
    %2394 = vmatpush2.bf16.msra.mxu0 0
    %2395 = vmatprep.subr.bf16.mxu0 0
    %2396 = vmatpush2.bf16.msra.mxu0 0
    %2397 = vmatprep.subr.bf16.mxu0 0
    %2398 = vmatpush2.bf16.msra.mxu0 0
    %2399 = vmatprep.subr.bf16.mxu0 0
    %2400 = vmatpush2.bf16.msra.mxu0 0
    %2401 = vmatprep.subr.bf16.mxu0 0
    %2402 = vmatpush2.bf16.msra.mxu0 0
    %2403 = vmatprep.subr.bf16.mxu0 0
    %2404 = vmatpush2.bf16.msra.mxu0 0
    %2405 = vmatprep.subr.bf16.mxu0 0
    %2406 = vmatpush2.bf16.msra.mxu0 0
    %2407 = vmatprep.mubr.bf16.mxu0 0
    %2408 = vmatmul.mubr.bf16.gmra.mxu0 %v2333
    %v2409 = vpop.f32.mrf.mxu0
    %v2410 = vadd.f32 0.0, %v2409
    %v2411 = vpop.f32.mrf.mxu0
    %v2412 = vpop.f32.mrf.mxu0
    %v2413 = vpop.f32.mrf.mxu0
    %2414 = vdwg.mxu0
    %v2415 = vadd.f32 %v2330, %v2369
    %v2416 = vadd.f32 %v2331, %v2371
    %v2417 = vmul.f32 %v2415, 0.5
    %v2418 = vmul.f32 %v2416, 0.5
    %v2419 = vtanh.pop %v2417
    %v2420 = vtanh.pop %v2418
    %v2421 = vmul.f32 %v2419, 0.5
    %v2422 = vmul.f32 %v2420, 0.5
    %v2423 = vadd.f32 %v2421, 0.5
    %v2424 = vadd.f32 %v2422, 0.5
    %v2425 = vadd.f32 %v2410, %v510
    %v2426 = vmul.f32 %v2423, %v2425
    %v2427 = vadd.f32 %v2332, %v2426
    %v2428 = vtanh.pop %v2427
    %v2429 = vsub.f32 %v2127, %v2428
    %v2430 = vmul.f32 %v2424, %v2429
    %v2431 = vadd.f32 %v2428, %v2430
    %v2432 = vpack.c.bf16 %v2228, %v2228
    %2433 = vmatprep.subr.bf16.mxu0 %v1204
    %2434 = vmatpush1.bf16.msra.mxu0 %v1203
    %2435 = vmatprep.subr.bf16.mxu0 %v1200
    %2436 = vmatpush1.bf16.msra.mxu0 %v1199
    %2437 = vmatprep.subr.bf16.mxu0 %v1196
    %2438 = vmatpush1.bf16.msra.mxu0 %v1195
    %2439 = vmatprep.subr.bf16.mxu0 %v1192
    %2440 = vmatpush1.bf16.msra.mxu0 %v1191
    %2441 = vmatprep.subr.bf16.mxu0 %v1188
    %2442 = vmatpush1.bf16.msra.mxu0 %v1187
    %2443 = vmatprep.subr.bf16.mxu0 %v1184
    %2444 = vmatpush1.bf16.msra.mxu0 %v1183
    %2445 = vmatprep.subr.bf16.mxu0 %v1180
    %2446 = vmatpush1.bf16.msra.mxu0 %v1179
    %2447 = vmatprep.subr.bf16.mxu0 %v1176
    %2448 = vmatpush1.bf16.msra.mxu0 %v1175
    %2449 = vmatprep.subr.bf16.mxu0 %v1236
    %2450 = vmatpush2.bf16.msra.mxu0 %v1235
    %2451 = vmatprep.subr.bf16.mxu0 %v1232
    %2452 = vmatpush2.bf16.msra.mxu0 %v1231
    %2453 = vmatprep.subr.bf16.mxu0 %v1228
    %2454 = vmatpush2.bf16.msra.mxu0 %v1227
    %2455 = vmatprep.subr.bf16.mxu0 %v1224
    %2456 = vmatpush2.bf16.msra.mxu0 %v1223
    %2457 = vmatprep.subr.bf16.mxu0 %v1220
    %2458 = vmatpush2.bf16.msra.mxu0 %v1219
    %2459 = vmatprep.subr.bf16.mxu0 %v1216
    %2460 = vmatpush2.bf16.msra.mxu0 %v1215
    %2461 = vmatprep.subr.bf16.mxu0 %v1212
    %2462 = vmatpush2.bf16.msra.mxu0 %v1211
    %2463 = vmatprep.subr.bf16.mxu0 %v1208
    %2464 = vmatpush2.bf16.msra.mxu0 %v1207
    %2465 = vmatprep.mubr.bf16.mxu0 %v2432
    %2466 = vmatmul.mubr.bf16.gmra.mxu0 %v2333
    %v2467 = vpop.f32.mrf.mxu0
    %v2468 = vadd.f32 0.0, %v2467
    %v2469 = vpop.f32.mrf.mxu0
    %v2470 = vadd.f32 0.0, %v2469
    %v2471 = vpop.f32.mrf.mxu0
    %v2472 = vpop.f32.mrf.mxu0
    %2473 = vdwg.mxu0
    %2474 = vmatprep.subr.bf16.mxu0 %v1206
    %2475 = vmatpush1.bf16.msra.mxu0 %v1205
    %2476 = vmatprep.subr.bf16.mxu0 %v1202
    %2477 = vmatpush1.bf16.msra.mxu0 %v1201
    %2478 = vmatprep.subr.bf16.mxu0 %v1198
    %2479 = vmatpush1.bf16.msra.mxu0 %v1197
    %2480 = vmatprep.subr.bf16.mxu0 %v1194
    %2481 = vmatpush1.bf16.msra.mxu0 %v1193
    %2482 = vmatprep.subr.bf16.mxu0 %v1190
    %2483 = vmatpush1.bf16.msra.mxu0 %v1189
    %2484 = vmatprep.subr.bf16.mxu0 %v1186
    %2485 = vmatpush1.bf16.msra.mxu0 %v1185
    %2486 = vmatprep.subr.bf16.mxu0 %v1182
    %2487 = vmatpush1.bf16.msra.mxu0 %v1181
    %2488 = vmatprep.subr.bf16.mxu0 %v1178
    %2489 = vmatpush1.bf16.msra.mxu0 %v1177
    %2490 = vmatprep.subr.bf16.mxu0 %v1238
    %2491 = vmatpush2.bf16.msra.mxu0 %v1237
    %2492 = vmatprep.subr.bf16.mxu0 %v1234
    %2493 = vmatpush2.bf16.msra.mxu0 %v1233
    %2494 = vmatprep.subr.bf16.mxu0 %v1230
    %2495 = vmatpush2.bf16.msra.mxu0 %v1229
    %2496 = vmatprep.subr.bf16.mxu0 %v1226
    %2497 = vmatpush2.bf16.msra.mxu0 %v1225
    %2498 = vmatprep.subr.bf16.mxu0 %v1222
    %2499 = vmatpush2.bf16.msra.mxu0 %v1221
    %2500 = vmatprep.subr.bf16.mxu0 %v1218
    %2501 = vmatpush2.bf16.msra.mxu0 %v1217
    %2502 = vmatprep.subr.bf16.mxu0 %v1214
    %2503 = vmatpush2.bf16.msra.mxu0 %v1213
    %2504 = vmatprep.subr.bf16.mxu0 %v1210
    %2505 = vmatpush2.bf16.msra.mxu0 %v1209
    %2506 = vmatprep.mubr.bf16.mxu0 %v2432
    %2507 = vmatmul.mubr.bf16.gmra.mxu0 %v2333
    %v2508 = vpop.f32.mrf.mxu0
    %v2509 = vadd.f32 0.0, %v2508
    %v2510 = vpop.f32.mrf.mxu0
    %v2511 = vadd.f32 0.0, %v2510
    %v2512 = vpop.f32.mrf.mxu0
    %v2513 = vpop.f32.mrf.mxu0
    %2514 = vdwg.mxu0
    %v2515 = vadd.f32 %v2468, %v640
    %v2516 = vadd.f32 %v2470, %v641
    %v2517 = vmul.f32 %v2515, 0.5
    %v2518 = vmul.f32 %v2516, 0.5
    %v2519 = vtanh.pop %v2517
    %v2520 = vtanh.pop %v2518
    %v2521 = vmul.f32 %v2519, 0.5
    %v2522 = vmul.f32 %v2520, 0.5
    %v2523 = vadd.f32 %v2521, 0.5
    %v2524 = vadd.f32 %v2522, 0.5
    %v2525 = vadd.f32 %v2509, %v645
    %v2526 = vadd.f32 %v2511, %v648
    %v2527 = vmul.f32 %v2523, %v2526
    %v2528 = vadd.f32 %v2525, %v2527
    %v2529 = vtanh.pop %v2528
    %v2530 = vsub.f32 %v2228, %v2529
    %v2531 = vmul.f32 %v2524, %v2530
    %v2532 = vadd.f32 %v2529, %v2531
    %v2533 = vpack.c.bf16 %v2329, %v2329
    %2534 = vmatprep.subr.bf16.mxu0 %v1827
    %2535 = vmatpush1.bf16.msra.mxu0 %v1826
    %2536 = vmatprep.subr.bf16.mxu0 %v1823
    %2537 = vmatpush1.bf16.msra.mxu0 %v1822
    %2538 = vmatprep.subr.bf16.mxu0 %v1819
    %2539 = vmatpush1.bf16.msra.mxu0 %v1818
    %2540 = vmatprep.subr.bf16.mxu0 %v1815
    %2541 = vmatpush1.bf16.msra.mxu0 %v1814
    %2542 = vmatprep.subr.bf16.mxu0 %v1811
    %2543 = vmatpush1.bf16.msra.mxu0 %v1810
    %2544 = vmatprep.subr.bf16.mxu0 %v1807
    %2545 = vmatpush1.bf16.msra.mxu0 %v1806
    %2546 = vmatprep.subr.bf16.mxu0 %v1803
    %2547 = vmatpush1.bf16.msra.mxu0 %v1802
    %2548 = vmatprep.subr.bf16.mxu0 %v1799
    %2549 = vmatpush1.bf16.msra.mxu0 %v1798
    %2550 = vmatprep.subr.bf16.mxu0 %v1859
    %2551 = vmatpush2.bf16.msra.mxu0 %v1858
    %2552 = vmatprep.subr.bf16.mxu0 %v1855
    %2553 = vmatpush2.bf16.msra.mxu0 %v1854
    %2554 = vmatprep.subr.bf16.mxu0 %v1851
    %2555 = vmatpush2.bf16.msra.mxu0 %v1850
    %2556 = vmatprep.subr.bf16.mxu0 %v1847
    %2557 = vmatpush2.bf16.msra.mxu0 %v1846
    %2558 = vmatprep.subr.bf16.mxu0 %v1843
    %2559 = vmatpush2.bf16.msra.mxu0 %v1842
    %2560 = vmatprep.subr.bf16.mxu0 %v1839
    %2561 = vmatpush2.bf16.msra.mxu0 %v1838
    %2562 = vmatprep.subr.bf16.mxu0 %v1835
    %2563 = vmatpush2.bf16.msra.mxu0 %v1834
    %2564 = vmatprep.subr.bf16.mxu0 %v1831
    %2565 = vmatpush2.bf16.msra.mxu0 %v1830
    %2566 = vmatprep.mubr.bf16.mxu0 %v2533
    %2567 = vmatmul.mubr.bf16.gmra.mxu0 %v2432
    %v2568 = vpop.f32.mrf.mxu0
    %v2569 = vadd.f32 0.0, %v2568
    %v2570 = vpop.f32.mrf.mxu0
    %v2571 = vadd.f32 0.0, %v2570
    %v2572 = vpop.f32.mrf.mxu0
    %v2573 = vpop.f32.mrf.mxu0
    %2574 = vdwg.mxu0
    %2575 = vmatprep.subr.bf16.mxu0 %v1829
    %2576 = vmatpush1.bf16.msra.mxu0 %v1828
    %2577 = vmatprep.subr.bf16.mxu0 %v1825
    %2578 = vmatpush1.bf16.msra.mxu0 %v1824
    %2579 = vmatprep.subr.bf16.mxu0 %v1821
    %2580 = vmatpush1.bf16.msra.mxu0 %v1820
    %2581 = vmatprep.subr.bf16.mxu0 %v1817
    %2582 = vmatpush1.bf16.msra.mxu0 %v1816
    %2583 = vmatprep.subr.bf16.mxu0 %v1813
    %2584 = vmatpush1.bf16.msra.mxu0 %v1812
    %2585 = vmatprep.subr.bf16.mxu0 %v1809
    %2586 = vmatpush1.bf16.msra.mxu0 %v1808
    %2587 = vmatprep.subr.bf16.mxu0 %v1805
    %2588 = vmatpush1.bf16.msra.mxu0 %v1804
    %2589 = vmatprep.subr.bf16.mxu0 %v1801
    %2590 = vmatpush1.bf16.msra.mxu0 %v1800
    %2591 = vmatprep.subr.bf16.mxu0 %v1861
    %2592 = vmatpush2.bf16.msra.mxu0 %v1860
    %2593 = vmatprep.subr.bf16.mxu0 %v1857
    %2594 = vmatpush2.bf16.msra.mxu0 %v1856
    %2595 = vmatprep.subr.bf16.mxu0 %v1853
    %2596 = vmatpush2.bf16.msra.mxu0 %v1852
    %2597 = vmatprep.subr.bf16.mxu0 %v1849
    %2598 = vmatpush2.bf16.msra.mxu0 %v1848
    %2599 = vmatprep.subr.bf16.mxu0 %v1845
    %2600 = vmatpush2.bf16.msra.mxu0 %v1844
    %2601 = vmatprep.subr.bf16.mxu0 %v1841
    %2602 = vmatpush2.bf16.msra.mxu0 %v1840
    %2603 = vmatprep.subr.bf16.mxu0 %v1837
    %2604 = vmatpush2.bf16.msra.mxu0 %v1836
    %2605 = vmatprep.subr.bf16.mxu0 %v1833
    %2606 = vmatpush2.bf16.msra.mxu0 %v1832
    %2607 = vmatprep.mubr.bf16.mxu0 %v2533
    %2608 = vmatmul.mubr.bf16.gmra.mxu0 %v2432
    %v2609 = vpop.f32.mrf.mxu0
    %v2610 = vadd.f32 0.0, %v2609
    %v2611 = vpop.f32.mrf.mxu0
    %v2612 = vadd.f32 0.0, %v2611
    %v2613 = vpop.f32.mrf.mxu0
    %v2614 = vpop.f32.mrf.mxu0
    %2615 = vdwg.mxu0
    %v2616 = vadd.f32 %v2569, %v643
    %v2617 = vadd.f32 %v2571, %v644
    %v2618 = vmul.f32 %v2616, 0.5
    %v2619 = vmul.f32 %v2617, 0.5
    %v2620 = vtanh.pop %v2618
    %v2621 = vtanh.pop %v2619
    %v2622 = vmul.f32 %v2620, 0.5
    %v2623 = vmul.f32 %v2621, 0.5
    %v2624 = vadd.f32 %v2622, 0.5
    %v2625 = vadd.f32 %v2623, 0.5
    %v2626 = vadd.f32 %v2610, %v647
    %v2627 = vadd.f32 %v2612, %v650
    %v2628 = vmul.f32 %v2624, %v2627
    %v2629 = vadd.f32 %v2626, %v2628
    %v2630 = vtanh.pop %v2629
    %v2631 = vsub.f32 %v2329, %v2630
    %v2632 = vmul.f32 %v2625, %v2631
    %v2633 = vadd.f32 %v2630, %v2632
    %v2634 = vld [vmem:[#allocation2 + $0x78] sm:$0xff]
    %v2635 = vld [vmem:[#allocation2 + $0x80] sm:$0xff]
    %v2636 = vld [vmem:[#allocation2 + $0x88] sm:$0xff]
    %v2637 = vpack.c.bf16 %v2431, %v2431
    %2638 = vmatprep.subr.bf16.mxu0 %v756
    %2639 = vmatpush1.bf16.msra.mxu0 %v755
    %2640 = vmatprep.subr.bf16.mxu0 %v753
    %2641 = vmatpush1.bf16.msra.mxu0 %v752
    %2642 = vmatprep.subr.bf16.mxu0 %v750
    %2643 = vmatpush1.bf16.msra.mxu0 %v749
    %2644 = vmatprep.subr.bf16.mxu0 %v747
    %2645 = vmatpush1.bf16.msra.mxu0 %v746
    %2646 = vmatprep.subr.bf16.mxu0 %v744
    %2647 = vmatpush1.bf16.msra.mxu0 %v743
    %2648 = vmatprep.subr.bf16.mxu0 %v741
    %2649 = vmatpush1.bf16.msra.mxu0 %v740
    %2650 = vmatprep.subr.bf16.mxu0 %v738
    %2651 = vmatpush1.bf16.msra.mxu0 %v737
    %2652 = vmatprep.subr.bf16.mxu0 %v735
    %2653 = vmatpush1.bf16.msra.mxu0 %v734
    %2654 = vmatprep.subr.bf16.mxu0 0
    %2655 = vmatpush2.bf16.msra.mxu0 0
    %2656 = vmatprep.subr.bf16.mxu0 0
    %2657 = vmatpush2.bf16.msra.mxu0 0
    %2658 = vmatprep.subr.bf16.mxu0 0
    %2659 = vmatpush2.bf16.msra.mxu0 0
    %2660 = vmatprep.subr.bf16.mxu0 0
    %2661 = vmatpush2.bf16.msra.mxu0 0
    %2662 = vmatprep.subr.bf16.mxu0 0
    %2663 = vmatpush2.bf16.msra.mxu0 0
    %2664 = vmatprep.subr.bf16.mxu0 0
    %2665 = vmatpush2.bf16.msra.mxu0 0
    %2666 = vmatprep.subr.bf16.mxu0 0
    %2667 = vmatpush2.bf16.msra.mxu0 0
    %2668 = vmatprep.subr.bf16.mxu0 0
    %2669 = vmatpush2.bf16.msra.mxu0 0
    %2670 = vmatprep.mubr.bf16.mxu0 0
    %2671 = vmatmul.mubr.bf16.gmra.mxu0 %v2637
    %v2672 = vpop.f32.mrf.mxu0
    %v2673 = vadd.f32 0.0, %v2672
    %v2674 = vpop.f32.mrf.mxu0
    %v2675 = vadd.f32 0.0, %v2674
    %v2676 = vpop.f32.mrf.mxu0
    %v2677 = vpop.f32.mrf.mxu0
    %2678 = vdwg.mxu0
    %2679 = vmatprep.subr.bf16.mxu0 0
    %2680 = vmatpush1.bf16.msra.mxu0 %v757
    %2681 = vmatprep.subr.bf16.mxu0 0
    %2682 = vmatpush1.bf16.msra.mxu0 %v754
    %2683 = vmatprep.subr.bf16.mxu0 0
    %2684 = vmatpush1.bf16.msra.mxu0 %v751
    %2685 = vmatprep.subr.bf16.mxu0 0
    %2686 = vmatpush1.bf16.msra.mxu0 %v748
    %2687 = vmatprep.subr.bf16.mxu0 0
    %2688 = vmatpush1.bf16.msra.mxu0 %v745
    %2689 = vmatprep.subr.bf16.mxu0 0
    %2690 = vmatpush1.bf16.msra.mxu0 %v742
    %2691 = vmatprep.subr.bf16.mxu0 0
    %2692 = vmatpush1.bf16.msra.mxu0 %v739
    %2693 = vmatprep.subr.bf16.mxu0 0
    %2694 = vmatpush1.bf16.msra.mxu0 %v736
    %2695 = vmatprep.subr.bf16.mxu0 0
    %2696 = vmatpush2.bf16.msra.mxu0 0
    %2697 = vmatprep.subr.bf16.mxu0 0
    %2698 = vmatpush2.bf16.msra.mxu0 0
    %2699 = vmatprep.subr.bf16.mxu0 0
    %2700 = vmatpush2.bf16.msra.mxu0 0
    %2701 = vmatprep.subr.bf16.mxu0 0
    %2702 = vmatpush2.bf16.msra.mxu0 0
    %2703 = vmatprep.subr.bf16.mxu0 0
    %2704 = vmatpush2.bf16.msra.mxu0 0
    %2705 = vmatprep.subr.bf16.mxu0 0
    %2706 = vmatpush2.bf16.msra.mxu0 0
    %2707 = vmatprep.subr.bf16.mxu0 0
    %2708 = vmatpush2.bf16.msra.mxu0 0
    %2709 = vmatprep.subr.bf16.mxu0 0
    %2710 = vmatpush2.bf16.msra.mxu0 0
    %2711 = vmatprep.mubr.bf16.mxu0 0
    %2712 = vmatmul.mubr.bf16.gmra.mxu0 %v2637
    %v2713 = vpop.f32.mrf.mxu0
    %v2714 = vadd.f32 0.0, %v2713
    %v2715 = vpop.f32.mrf.mxu0
    %v2716 = vpop.f32.mrf.mxu0
    %v2717 = vpop.f32.mrf.mxu0
    %2718 = vdwg.mxu0
    %v2719 = vadd.f32 %v2634, %v2673
    %v2720 = vadd.f32 %v2635, %v2675
    %v2721 = vmul.f32 %v2719, 0.5
    %v2722 = vmul.f32 %v2720, 0.5
    %v2723 = vtanh.pop %v2721
    %v2724 = vtanh.pop %v2722
    %v2725 = vmul.f32 %v2723, 0.5
    %v2726 = vmul.f32 %v2724, 0.5
    %v2727 = vadd.f32 %v2725, 0.5
    %v2728 = vadd.f32 %v2726, 0.5
    %v2729 = vadd.f32 %v2714, %v510
    %v2730 = vmul.f32 %v2727, %v2729
    %v2731 = vadd.f32 %v2636, %v2730
    %v2732 = vtanh.pop %v2731
    %v2733 = vsub.f32 %v2431, %v2732
    %v2734 = vmul.f32 %v2728, %v2733
    %v2735 = vadd.f32 %v2732, %v2734
    %v2736 = vpack.c.bf16 %v2532, %v2532
    %2737 = vmatprep.subr.bf16.mxu0 %v1204
    %2738 = vmatpush1.bf16.msra.mxu0 %v1203
    %2739 = vmatprep.subr.bf16.mxu0 %v1200
    %2740 = vmatpush1.bf16.msra.mxu0 %v1199
    %2741 = vmatprep.subr.bf16.mxu0 %v1196
    %2742 = vmatpush1.bf16.msra.mxu0 %v1195
    %2743 = vmatprep.subr.bf16.mxu0 %v1192
    %2744 = vmatpush1.bf16.msra.mxu0 %v1191
    %2745 = vmatprep.subr.bf16.mxu0 %v1188
    %2746 = vmatpush1.bf16.msra.mxu0 %v1187
    %2747 = vmatprep.subr.bf16.mxu0 %v1184
    %2748 = vmatpush1.bf16.msra.mxu0 %v1183
    %2749 = vmatprep.subr.bf16.mxu0 %v1180
    %2750 = vmatpush1.bf16.msra.mxu0 %v1179
    %2751 = vmatprep.subr.bf16.mxu0 %v1176
    %2752 = vmatpush1.bf16.msra.mxu0 %v1175
    %2753 = vmatprep.subr.bf16.mxu0 %v1236
    %2754 = vmatpush2.bf16.msra.mxu0 %v1235
    %2755 = vmatprep.subr.bf16.mxu0 %v1232
    %2756 = vmatpush2.bf16.msra.mxu0 %v1231
    %2757 = vmatprep.subr.bf16.mxu0 %v1228
    %2758 = vmatpush2.bf16.msra.mxu0 %v1227
    %2759 = vmatprep.subr.bf16.mxu0 %v1224
    %2760 = vmatpush2.bf16.msra.mxu0 %v1223
    %2761 = vmatprep.subr.bf16.mxu0 %v1220
    %2762 = vmatpush2.bf16.msra.mxu0 %v1219
    %2763 = vmatprep.subr.bf16.mxu0 %v1216
    %2764 = vmatpush2.bf16.msra.mxu0 %v1215
    %2765 = vmatprep.subr.bf16.mxu0 %v1212
    %2766 = vmatpush2.bf16.msra.mxu0 %v1211
    %2767 = vmatprep.subr.bf16.mxu0 %v1208
    %2768 = vmatpush2.bf16.msra.mxu0 %v1207
    %2769 = vmatprep.mubr.bf16.mxu0 %v2736
    %2770 = vmatmul.mubr.bf16.gmra.mxu0 %v2637
    %v2771 = vpop.f32.mrf.mxu0
    %v2772 = vadd.f32 0.0, %v2771
    %v2773 = vpop.f32.mrf.mxu0
    %v2774 = vadd.f32 0.0, %v2773
    %v2775 = vpop.f32.mrf.mxu0
    %v2776 = vpop.f32.mrf.mxu0
    %2777 = vdwg.mxu0
    %2778 = vmatprep.subr.bf16.mxu0 %v1206
    %2779 = vmatpush1.bf16.msra.mxu0 %v1205
    %2780 = vmatprep.subr.bf16.mxu0 %v1202
    %2781 = vmatpush1.bf16.msra.mxu0 %v1201
    %2782 = vmatprep.subr.bf16.mxu0 %v1198
    %2783 = vmatpush1.bf16.msra.mxu0 %v1197
    %2784 = vmatprep.subr.bf16.mxu0 %v1194
    %2785 = vmatpush1.bf16.msra.mxu0 %v1193
    %2786 = vmatprep.subr.bf16.mxu0 %v1190
    %2787 = vmatpush1.bf16.msra.mxu0 %v1189
    %2788 = vmatprep.subr.bf16.mxu0 %v1186
    %2789 = vmatpush1.bf16.msra.mxu0 %v1185
    %2790 = vmatprep.subr.bf16.mxu0 %v1182
    %2791 = vmatpush1.bf16.msra.mxu0 %v1181
    %2792 = vmatprep.subr.bf16.mxu0 %v1178
    %2793 = vmatpush1.bf16.msra.mxu0 %v1177
    %2794 = vmatprep.subr.bf16.mxu0 %v1238
    %2795 = vmatpush2.bf16.msra.mxu0 %v1237
    %2796 = vmatprep.subr.bf16.mxu0 %v1234
    %2797 = vmatpush2.bf16.msra.mxu0 %v1233
    %2798 = vmatprep.subr.bf16.mxu0 %v1230
    %2799 = vmatpush2.bf16.msra.mxu0 %v1229
    %2800 = vmatprep.subr.bf16.mxu0 %v1226
    %2801 = vmatpush2.bf16.msra.mxu0 %v1225
    %2802 = vmatprep.subr.bf16.mxu0 %v1222
    %2803 = vmatpush2.bf16.msra.mxu0 %v1221
    %2804 = vmatprep.subr.bf16.mxu0 %v1218
    %2805 = vmatpush2.bf16.msra.mxu0 %v1217
    %2806 = vmatprep.subr.bf16.mxu0 %v1214
    %2807 = vmatpush2.bf16.msra.mxu0 %v1213
    %2808 = vmatprep.subr.bf16.mxu0 %v1210
    %2809 = vmatpush2.bf16.msra.mxu0 %v1209
    %2810 = vmatprep.mubr.bf16.mxu0 %v2736
    %2811 = vmatmul.mubr.bf16.gmra.mxu0 %v2637
    %v2812 = vpop.f32.mrf.mxu0
    %v2813 = vadd.f32 0.0, %v2812
    %v2814 = vpop.f32.mrf.mxu0
    %v2815 = vadd.f32 0.0, %v2814
    %v2816 = vpop.f32.mrf.mxu0
    %v2817 = vpop.f32.mrf.mxu0
    %2818 = vdwg.mxu0
    %v2819 = vadd.f32 %v2772, %v640
    %v2820 = vadd.f32 %v2774, %v641
    %v2821 = vmul.f32 %v2819, 0.5
    %v2822 = vmul.f32 %v2820, 0.5
    %v2823 = vtanh.pop %v2821
    %v2824 = vtanh.pop %v2822
    %v2825 = vmul.f32 %v2823, 0.5
    %v2826 = vmul.f32 %v2824, 0.5
    %v2827 = vadd.f32 %v2825, 0.5
    %v2828 = vadd.f32 %v2826, 0.5
    %v2829 = vadd.f32 %v2813, %v645
    %v2830 = vadd.f32 %v2815, %v648
    %v2831 = vmul.f32 %v2827, %v2830
    %v2832 = vadd.f32 %v2829, %v2831
    %v2833 = vtanh.pop %v2832
    %v2834 = vsub.f32 %v2532, %v2833
    %v2835 = vmul.f32 %v2828, %v2834
    %v2836 = vadd.f32 %v2833, %v2835
    %v2837 = vpack.c.bf16 %v2633, %v2633
    %2838 = vmatprep.subr.bf16.mxu0 %v1827
    %2839 = vmatpush1.bf16.msra.mxu0 %v1826
    %2840 = vmatprep.subr.bf16.mxu0 %v1823
    %2841 = vmatpush1.bf16.msra.mxu0 %v1822
    %2842 = vmatprep.subr.bf16.mxu0 %v1819
    %2843 = vmatpush1.bf16.msra.mxu0 %v1818
    %2844 = vmatprep.subr.bf16.mxu0 %v1815
    %2845 = vmatpush1.bf16.msra.mxu0 %v1814
    %2846 = vmatprep.subr.bf16.mxu0 %v1811
    %2847 = vmatpush1.bf16.msra.mxu0 %v1810
    %2848 = vmatprep.subr.bf16.mxu0 %v1807
    %2849 = vmatpush1.bf16.msra.mxu0 %v1806
    %2850 = vmatprep.subr.bf16.mxu0 %v1803
    %2851 = vmatpush1.bf16.msra.mxu0 %v1802
    %2852 = vmatprep.subr.bf16.mxu0 %v1799
    %2853 = vmatpush1.bf16.msra.mxu0 %v1798
    %2854 = vmatprep.subr.bf16.mxu0 %v1859
    %2855 = vmatpush2.bf16.msra.mxu0 %v1858
    %2856 = vmatprep.subr.bf16.mxu0 %v1855
    %2857 = vmatpush2.bf16.msra.mxu0 %v1854
    %2858 = vmatprep.subr.bf16.mxu0 %v1851
    %2859 = vmatpush2.bf16.msra.mxu0 %v1850
    %2860 = vmatprep.subr.bf16.mxu0 %v1847
    %2861 = vmatpush2.bf16.msra.mxu0 %v1846
    %2862 = vmatprep.subr.bf16.mxu0 %v1843
    %2863 = vmatpush2.bf16.msra.mxu0 %v1842
    %2864 = vmatprep.subr.bf16.mxu0 %v1839
    %2865 = vmatpush2.bf16.msra.mxu0 %v1838
    %2866 = vmatprep.subr.bf16.mxu0 %v1835
    %2867 = vmatpush2.bf16.msra.mxu0 %v1834
    %2868 = vmatprep.subr.bf16.mxu0 %v1831
    %2869 = vmatpush2.bf16.msra.mxu0 %v1830
    %2870 = vmatprep.mubr.bf16.mxu0 %v2837
    %2871 = vmatmul.mubr.bf16.gmra.mxu0 %v2736
    %v2872 = vpop.f32.mrf.mxu0
    %v2873 = vadd.f32 0.0, %v2872
    %v2874 = vpop.f32.mrf.mxu0
    %v2875 = vadd.f32 0.0, %v2874
    %v2876 = vpop.f32.mrf.mxu0
    %v2877 = vpop.f32.mrf.mxu0
    %2878 = vdwg.mxu0
    %2879 = vmatprep.subr.bf16.mxu0 %v1829
    %2880 = vmatpush1.bf16.msra.mxu0 %v1828
    %2881 = vmatprep.subr.bf16.mxu0 %v1825
    %2882 = vmatpush1.bf16.msra.mxu0 %v1824
    %2883 = vmatprep.subr.bf16.mxu0 %v1821
    %2884 = vmatpush1.bf16.msra.mxu0 %v1820
    %2885 = vmatprep.subr.bf16.mxu0 %v1817
    %2886 = vmatpush1.bf16.msra.mxu0 %v1816
    %2887 = vmatprep.subr.bf16.mxu0 %v1813
    %2888 = vmatpush1.bf16.msra.mxu0 %v1812
    %2889 = vmatprep.subr.bf16.mxu0 %v1809
    %2890 = vmatpush1.bf16.msra.mxu0 %v1808
    %2891 = vmatprep.subr.bf16.mxu0 %v1805
    %2892 = vmatpush1.bf16.msra.mxu0 %v1804
    %2893 = vmatprep.subr.bf16.mxu0 %v1801
    %2894 = vmatpush1.bf16.msra.mxu0 %v1800
    %2895 = vmatprep.subr.bf16.mxu0 %v1861
    %2896 = vmatpush2.bf16.msra.mxu0 %v1860
    %2897 = vmatprep.subr.bf16.mxu0 %v1857
    %2898 = vmatpush2.bf16.msra.mxu0 %v1856
    %2899 = vmatprep.subr.bf16.mxu0 %v1853
    %2900 = vmatpush2.bf16.msra.mxu0 %v1852
    %2901 = vmatprep.subr.bf16.mxu0 %v1849
    %2902 = vmatpush2.bf16.msra.mxu0 %v1848
    %2903 = vmatprep.subr.bf16.mxu0 %v1845
    %2904 = vmatpush2.bf16.msra.mxu0 %v1844
    %2905 = vmatprep.subr.bf16.mxu0 %v1841
    %2906 = vmatpush2.bf16.msra.mxu0 %v1840
    %2907 = vmatprep.subr.bf16.mxu0 %v1837
    %2908 = vmatpush2.bf16.msra.mxu0 %v1836
    %2909 = vmatprep.subr.bf16.mxu0 %v1833
    %2910 = vmatpush2.bf16.msra.mxu0 %v1832
    %2911 = vmatprep.mubr.bf16.mxu0 %v2837
    %2912 = vmatmul.mubr.bf16.gmra.mxu0 %v2736
    %v2913 = vpop.f32.mrf.mxu0
    %v2914 = vadd.f32 0.0, %v2913
    %v2915 = vpop.f32.mrf.mxu0
    %v2916 = vadd.f32 0.0, %v2915
    %v2917 = vpop.f32.mrf.mxu0
    %v2918 = vpop.f32.mrf.mxu0
    %2919 = vdwg.mxu0
    %v2920 = vadd.f32 %v2873, %v643
    %v2921 = vadd.f32 %v2875, %v644
    %v2922 = vmul.f32 %v2920, 0.5
    %v2923 = vmul.f32 %v2921, 0.5
    %v2924 = vtanh.pop %v2922
    %v2925 = vtanh.pop %v2923
    %v2926 = vmul.f32 %v2924, 0.5
    %v2927 = vmul.f32 %v2925, 0.5
    %v2928 = vadd.f32 %v2926, 0.5
    %v2929 = vadd.f32 %v2927, 0.5
    %v2930 = vadd.f32 %v2914, %v647
    %v2931 = vadd.f32 %v2916, %v650
    %v2932 = vmul.f32 %v2928, %v2931
    %v2933 = vadd.f32 %v2930, %v2932
    %v2934 = vtanh.pop %v2933
    %v2935 = vsub.f32 %v2633, %v2934
    %v2936 = vmul.f32 %v2929, %v2935
    %v2937 = vadd.f32 %v2934, %v2936
    %v2938 = vld [vmem:[#allocation2 + $0x90] sm:$0xff]
    %v2939 = vld [vmem:[#allocation2 + $0x98] sm:$0xff]
    %v2940 = vld [vmem:[#allocation2 + $0xa0] sm:$0xff]
    %v2941 = vpack.c.bf16 %v2735, %v2735
    %2942 = vmatprep.subr.bf16.mxu0 %v756
    %2943 = vmatpush1.bf16.msra.mxu0 %v755
    %2944 = vmatprep.subr.bf16.mxu0 %v753
    %2945 = vmatpush1.bf16.msra.mxu0 %v752
    %2946 = vmatprep.subr.bf16.mxu0 %v750
    %2947 = vmatpush1.bf16.msra.mxu0 %v749
    %2948 = vmatprep.subr.bf16.mxu0 %v747
    %2949 = vmatpush1.bf16.msra.mxu0 %v746
    %2950 = vmatprep.subr.bf16.mxu0 %v744
    %2951 = vmatpush1.bf16.msra.mxu0 %v743
    %2952 = vmatprep.subr.bf16.mxu0 %v741
    %2953 = vmatpush1.bf16.msra.mxu0 %v740
    %2954 = vmatprep.subr.bf16.mxu0 %v738
    %2955 = vmatpush1.bf16.msra.mxu0 %v737
    %2956 = vmatprep.subr.bf16.mxu0 %v735
    %2957 = vmatpush1.bf16.msra.mxu0 %v734
    %2958 = vmatprep.subr.bf16.mxu0 0
    %2959 = vmatpush2.bf16.msra.mxu0 0
    %2960 = vmatprep.subr.bf16.mxu0 0
    %2961 = vmatpush2.bf16.msra.mxu0 0
    %2962 = vmatprep.subr.bf16.mxu0 0
    %2963 = vmatpush2.bf16.msra.mxu0 0
    %2964 = vmatprep.subr.bf16.mxu0 0
    %2965 = vmatpush2.bf16.msra.mxu0 0
    %2966 = vmatprep.subr.bf16.mxu0 0
    %2967 = vmatpush2.bf16.msra.mxu0 0
    %2968 = vmatprep.subr.bf16.mxu0 0
    %2969 = vmatpush2.bf16.msra.mxu0 0
    %2970 = vmatprep.subr.bf16.mxu0 0
    %2971 = vmatpush2.bf16.msra.mxu0 0
    %2972 = vmatprep.subr.bf16.mxu0 0
    %2973 = vmatpush2.bf16.msra.mxu0 0
    %2974 = vmatprep.mubr.bf16.mxu0 0
    %2975 = vmatmul.mubr.bf16.gmra.mxu0 %v2941
    %v2976 = vpop.f32.mrf.mxu0
    %v2977 = vadd.f32 0.0, %v2976
    %v2978 = vpop.f32.mrf.mxu0
    %v2979 = vadd.f32 0.0, %v2978
    %v2980 = vpop.f32.mrf.mxu0
    %v2981 = vpop.f32.mrf.mxu0
    %2982 = vdwg.mxu0
    %2983 = vmatprep.subr.bf16.mxu0 0
    %2984 = vmatpush1.bf16.msra.mxu0 %v757
    %2985 = vmatprep.subr.bf16.mxu0 0
    %2986 = vmatpush1.bf16.msra.mxu0 %v754
    %2987 = vmatprep.subr.bf16.mxu0 0
    %2988 = vmatpush1.bf16.msra.mxu0 %v751
    %2989 = vmatprep.subr.bf16.mxu0 0
    %2990 = vmatpush1.bf16.msra.mxu0 %v748
    %2991 = vmatprep.subr.bf16.mxu0 0
    %2992 = vmatpush1.bf16.msra.mxu0 %v745
    %2993 = vmatprep.subr.bf16.mxu0 0
    %2994 = vmatpush1.bf16.msra.mxu0 %v742
    %2995 = vmatprep.subr.bf16.mxu0 0
    %2996 = vmatpush1.bf16.msra.mxu0 %v739
    %2997 = vmatprep.subr.bf16.mxu0 0
    %2998 = vmatpush1.bf16.msra.mxu0 %v736
    %2999 = vmatprep.subr.bf16.mxu0 0
    %3000 = vmatpush2.bf16.msra.mxu0 0
    %3001 = vmatprep.subr.bf16.mxu0 0
    %3002 = vmatpush2.bf16.msra.mxu0 0
    %3003 = vmatprep.subr.bf16.mxu0 0
    %3004 = vmatpush2.bf16.msra.mxu0 0
    %3005 = vmatprep.subr.bf16.mxu0 0
    %3006 = vmatpush2.bf16.msra.mxu0 0
    %3007 = vmatprep.subr.bf16.mxu0 0
    %3008 = vmatpush2.bf16.msra.mxu0 0
    %3009 = vmatprep.subr.bf16.mxu0 0
    %3010 = vmatpush2.bf16.msra.mxu0 0
    %3011 = vmatprep.subr.bf16.mxu0 0
    %3012 = vmatpush2.bf16.msra.mxu0 0
    %3013 = vmatprep.subr.bf16.mxu0 0
    %3014 = vmatpush2.bf16.msra.mxu0 0
    %3015 = vmatprep.mubr.bf16.mxu0 0
    %3016 = vmatmul.mubr.bf16.gmra.mxu0 %v2941
    %v3017 = vpop.f32.mrf.mxu0
    %v3018 = vadd.f32 0.0, %v3017
    %v3019 = vpop.f32.mrf.mxu0
    %v3020 = vpop.f32.mrf.mxu0
    %v3021 = vpop.f32.mrf.mxu0
    %3022 = vdwg.mxu0
    %v3023 = vadd.f32 %v2938, %v2977
    %v3024 = vadd.f32 %v2939, %v2979
    %v3025 = vmul.f32 %v3023, 0.5
    %v3026 = vmul.f32 %v3024, 0.5
    %v3027 = vtanh.pop %v3025
    %v3028 = vtanh.pop %v3026
    %v3029 = vmul.f32 %v3027, 0.5
    %v3030 = vmul.f32 %v3028, 0.5
    %v3031 = vadd.f32 %v3029, 0.5
    %v3032 = vadd.f32 %v3030, 0.5
    %v3033 = vadd.f32 %v3018, %v510
    %v3034 = vmul.f32 %v3031, %v3033
    %v3035 = vadd.f32 %v2940, %v3034
    %v3036 = vtanh.pop %v3035
    %v3037 = vsub.f32 %v2735, %v3036
    %v3038 = vmul.f32 %v3032, %v3037
    %v3039 = vadd.f32 %v3036, %v3038
    %v3040 = vpack.c.bf16 %v2836, %v2836
    %3041 = vmatprep.subr.bf16.mxu0 %v1204
    %3042 = vmatpush1.bf16.msra.mxu0 %v1203
    %3043 = vmatprep.subr.bf16.mxu0 %v1200
    %3044 = vmatpush1.bf16.msra.mxu0 %v1199
    %3045 = vmatprep.subr.bf16.mxu0 %v1196
    %3046 = vmatpush1.bf16.msra.mxu0 %v1195
    %3047 = vmatprep.subr.bf16.mxu0 %v1192
    %3048 = vmatpush1.bf16.msra.mxu0 %v1191
    %3049 = vmatprep.subr.bf16.mxu0 %v1188
    %3050 = vmatpush1.bf16.msra.mxu0 %v1187
    %3051 = vmatprep.subr.bf16.mxu0 %v1184
    %3052 = vmatpush1.bf16.msra.mxu0 %v1183
    %3053 = vmatprep.subr.bf16.mxu0 %v1180
    %3054 = vmatpush1.bf16.msra.mxu0 %v1179
    %3055 = vmatprep.subr.bf16.mxu0 %v1176
    %3056 = vmatpush1.bf16.msra.mxu0 %v1175
    %3057 = vmatprep.subr.bf16.mxu0 %v1236
    %3058 = vmatpush2.bf16.msra.mxu0 %v1235
    %3059 = vmatprep.subr.bf16.mxu0 %v1232
    %3060 = vmatpush2.bf16.msra.mxu0 %v1231
    %3061 = vmatprep.subr.bf16.mxu0 %v1228
    %3062 = vmatpush2.bf16.msra.mxu0 %v1227
    %3063 = vmatprep.subr.bf16.mxu0 %v1224
    %3064 = vmatpush2.bf16.msra.mxu0 %v1223
    %3065 = vmatprep.subr.bf16.mxu0 %v1220
    %3066 = vmatpush2.bf16.msra.mxu0 %v1219
    %3067 = vmatprep.subr.bf16.mxu0 %v1216
    %3068 = vmatpush2.bf16.msra.mxu0 %v1215
    %3069 = vmatprep.subr.bf16.mxu0 %v1212
    %3070 = vmatpush2.bf16.msra.mxu0 %v1211
    %3071 = vmatprep.subr.bf16.mxu0 %v1208
    %3072 = vmatpush2.bf16.msra.mxu0 %v1207
    %3073 = vmatprep.mubr.bf16.mxu0 %v3040
    %3074 = vmatmul.mubr.bf16.gmra.mxu0 %v2941
    %v3075 = vpop.f32.mrf.mxu0
    %v3076 = vadd.f32 0.0, %v3075
    %v3077 = vpop.f32.mrf.mxu0
    %v3078 = vadd.f32 0.0, %v3077
    %v3079 = vpop.f32.mrf.mxu0
    %v3080 = vpop.f32.mrf.mxu0
    %3081 = vdwg.mxu0
    %3082 = vmatprep.subr.bf16.mxu0 %v1206
    %3083 = vmatpush1.bf16.msra.mxu0 %v1205
    %3084 = vmatprep.subr.bf16.mxu0 %v1202
    %3085 = vmatpush1.bf16.msra.mxu0 %v1201
    %3086 = vmatprep.subr.bf16.mxu0 %v1198
    %3087 = vmatpush1.bf16.msra.mxu0 %v1197
    %3088 = vmatprep.subr.bf16.mxu0 %v1194
    %3089 = vmatpush1.bf16.msra.mxu0 %v1193
    %3090 = vmatprep.subr.bf16.mxu0 %v1190
    %3091 = vmatpush1.bf16.msra.mxu0 %v1189
    %3092 = vmatprep.subr.bf16.mxu0 %v1186
    %3093 = vmatpush1.bf16.msra.mxu0 %v1185
    %3094 = vmatprep.subr.bf16.mxu0 %v1182
    %3095 = vmatpush1.bf16.msra.mxu0 %v1181
    %3096 = vmatprep.subr.bf16.mxu0 %v1178
    %3097 = vmatpush1.bf16.msra.mxu0 %v1177
    %3098 = vmatprep.subr.bf16.mxu0 %v1238
    %3099 = vmatpush2.bf16.msra.mxu0 %v1237
    %3100 = vmatprep.subr.bf16.mxu0 %v1234
    %3101 = vmatpush2.bf16.msra.mxu0 %v1233
    %3102 = vmatprep.subr.bf16.mxu0 %v1230
    %3103 = vmatpush2.bf16.msra.mxu0 %v1229
    %3104 = vmatprep.subr.bf16.mxu0 %v1226
    %3105 = vmatpush2.bf16.msra.mxu0 %v1225
    %3106 = vmatprep.subr.bf16.mxu0 %v1222
    %3107 = vmatpush2.bf16.msra.mxu0 %v1221
    %3108 = vmatprep.subr.bf16.mxu0 %v1218
    %3109 = vmatpush2.bf16.msra.mxu0 %v1217
    %3110 = vmatprep.subr.bf16.mxu0 %v1214
    %3111 = vmatpush2.bf16.msra.mxu0 %v1213
    %3112 = vmatprep.subr.bf16.mxu0 %v1210
    %3113 = vmatpush2.bf16.msra.mxu0 %v1209
    %3114 = vmatprep.mubr.bf16.mxu0 %v3040
    %3115 = vmatmul.mubr.bf16.gmra.mxu0 %v2941
    %v3116 = vpop.f32.mrf.mxu0
    %v3117 = vadd.f32 0.0, %v3116
    %v3118 = vpop.f32.mrf.mxu0
    %v3119 = vadd.f32 0.0, %v3118
    %v3120 = vpop.f32.mrf.mxu0
    %v3121 = vpop.f32.mrf.mxu0
    %3122 = vdwg.mxu0
    %v3123 = vadd.f32 %v3076, %v640
    %v3124 = vadd.f32 %v3078, %v641
    %v3125 = vmul.f32 %v3123, 0.5
    %v3126 = vmul.f32 %v3124, 0.5
    %v3127 = vtanh.pop %v3125
    %v3128 = vtanh.pop %v3126
    %v3129 = vmul.f32 %v3127, 0.5
    %v3130 = vmul.f32 %v3128, 0.5
    %v3131 = vadd.f32 %v3129, 0.5
    %v3132 = vadd.f32 %v3130, 0.5
    %v3133 = vadd.f32 %v3117, %v645
    %v3134 = vadd.f32 %v3119, %v648
    %v3135 = vmul.f32 %v3131, %v3134
    %v3136 = vadd.f32 %v3133, %v3135
    %v3137 = vtanh.pop %v3136
    %v3138 = vsub.f32 %v2836, %v3137
    %v3139 = vmul.f32 %v3132, %v3138
    %v3140 = vadd.f32 %v3137, %v3139
    %v3141 = vpack.c.bf16 %v2937, %v2937
    %3142 = vmatprep.subr.bf16.mxu0 %v1827
    %3143 = vmatpush1.bf16.msra.mxu0 %v1826
    %3144 = vmatprep.subr.bf16.mxu0 %v1823
    %3145 = vmatpush1.bf16.msra.mxu0 %v1822
    %3146 = vmatprep.subr.bf16.mxu0 %v1819
    %3147 = vmatpush1.bf16.msra.mxu0 %v1818
    %3148 = vmatprep.subr.bf16.mxu0 %v1815
    %3149 = vmatpush1.bf16.msra.mxu0 %v1814
    %3150 = vmatprep.subr.bf16.mxu0 %v1811
    %3151 = vmatpush1.bf16.msra.mxu0 %v1810
    %3152 = vmatprep.subr.bf16.mxu0 %v1807
    %3153 = vmatpush1.bf16.msra.mxu0 %v1806
    %3154 = vmatprep.subr.bf16.mxu0 %v1803
    %3155 = vmatpush1.bf16.msra.mxu0 %v1802
    %3156 = vmatprep.subr.bf16.mxu0 %v1799
    %3157 = vmatpush1.bf16.msra.mxu0 %v1798
    %3158 = vmatprep.subr.bf16.mxu0 %v1859
    %3159 = vmatpush2.bf16.msra.mxu0 %v1858
    %3160 = vmatprep.subr.bf16.mxu0 %v1855
    %3161 = vmatpush2.bf16.msra.mxu0 %v1854
    %3162 = vmatprep.subr.bf16.mxu0 %v1851
    %3163 = vmatpush2.bf16.msra.mxu0 %v1850
    %3164 = vmatprep.subr.bf16.mxu0 %v1847
    %3165 = vmatpush2.bf16.msra.mxu0 %v1846
    %3166 = vmatprep.subr.bf16.mxu0 %v1843
    %3167 = vmatpush2.bf16.msra.mxu0 %v1842
    %3168 = vmatprep.subr.bf16.mxu0 %v1839
    %3169 = vmatpush2.bf16.msra.mxu0 %v1838
    %3170 = vmatprep.subr.bf16.mxu0 %v1835
    %3171 = vmatpush2.bf16.msra.mxu0 %v1834
    %3172 = vmatprep.subr.bf16.mxu0 %v1831
    %3173 = vmatpush2.bf16.msra.mxu0 %v1830
    %3174 = vmatprep.mubr.bf16.mxu0 %v3141
    %3175 = vmatmul.mubr.bf16.gmra.mxu0 %v3040
    %v3176 = vpop.f32.mrf.mxu0
    %v3177 = vadd.f32 0.0, %v3176
    %v3178 = vpop.f32.mrf.mxu0
    %v3179 = vadd.f32 0.0, %v3178
    %v3180 = vpop.f32.mrf.mxu0
    %v3181 = vpop.f32.mrf.mxu0
    %3182 = vdwg.mxu0
    %3183 = vmatprep.subr.bf16.mxu0 %v1829
    %3184 = vmatpush1.bf16.msra.mxu0 %v1828
    %3185 = vmatprep.subr.bf16.mxu0 %v1825
    %3186 = vmatpush1.bf16.msra.mxu0 %v1824
    %3187 = vmatprep.subr.bf16.mxu0 %v1821
    %3188 = vmatpush1.bf16.msra.mxu0 %v1820
    %3189 = vmatprep.subr.bf16.mxu0 %v1817
    %3190 = vmatpush1.bf16.msra.mxu0 %v1816
    %3191 = vmatprep.subr.bf16.mxu0 %v1813
    %3192 = vmatpush1.bf16.msra.mxu0 %v1812
    %3193 = vmatprep.subr.bf16.mxu0 %v1809
    %3194 = vmatpush1.bf16.msra.mxu0 %v1808
    %3195 = vmatprep.subr.bf16.mxu0 %v1805
    %3196 = vmatpush1.bf16.msra.mxu0 %v1804
    %3197 = vmatprep.subr.bf16.mxu0 %v1801
    %3198 = vmatpush1.bf16.msra.mxu0 %v1800
    %3199 = vmatprep.subr.bf16.mxu0 %v1861
    %3200 = vmatpush2.bf16.msra.mxu0 %v1860
    %3201 = vmatprep.subr.bf16.mxu0 %v1857
    %3202 = vmatpush2.bf16.msra.mxu0 %v1856
    %3203 = vmatprep.subr.bf16.mxu0 %v1853
    %3204 = vmatpush2.bf16.msra.mxu0 %v1852
    %3205 = vmatprep.subr.bf16.mxu0 %v1849
    %3206 = vmatpush2.bf16.msra.mxu0 %v1848
    %3207 = vmatprep.subr.bf16.mxu0 %v1845
    %3208 = vmatpush2.bf16.msra.mxu0 %v1844
    %3209 = vmatprep.subr.bf16.mxu0 %v1841
    %3210 = vmatpush2.bf16.msra.mxu0 %v1840
    %3211 = vmatprep.subr.bf16.mxu0 %v1837
    %3212 = vmatpush2.bf16.msra.mxu0 %v1836
    %3213 = vmatprep.subr.bf16.mxu0 %v1833
    %3214 = vmatpush2.bf16.msra.mxu0 %v1832
    %3215 = vmatprep.mubr.bf16.mxu0 %v3141
    %3216 = vmatmul.mubr.bf16.gmra.mxu0 %v3040
    %v3217 = vpop.f32.mrf.mxu0
    %v3218 = vadd.f32 0.0, %v3217
    %v3219 = vpop.f32.mrf.mxu0
    %v3220 = vadd.f32 0.0, %v3219
    %v3221 = vpop.f32.mrf.mxu0
    %v3222 = vpop.f32.mrf.mxu0
    %3223 = vdwg.mxu0
    %v3224 = vadd.f32 %v3177, %v643
    %v3225 = vadd.f32 %v3179, %v644
    %v3226 = vmul.f32 %v3224, 0.5
    %v3227 = vmul.f32 %v3225, 0.5
    %v3228 = vtanh.pop %v3226
    %v3229 = vtanh.pop %v3227
    %v3230 = vmul.f32 %v3228, 0.5
    %v3231 = vmul.f32 %v3229, 0.5
    %v3232 = vadd.f32 %v3230, 0.5
    %v3233 = vadd.f32 %v3231, 0.5
    %v3234 = vadd.f32 %v3218, %v647
    %v3235 = vadd.f32 %v3220, %v650
    %v3236 = vmul.f32 %v3232, %v3235
    %v3237 = vadd.f32 %v3234, %v3236
    %v3238 = vtanh.pop %v3237
    %v3239 = vsub.f32 %v2937, %v3238
    %v3240 = vmul.f32 %v3233, %v3239
    %v3241 = vadd.f32 %v3238, %v3240
    %v3242 = vld [vmem:[#allocation2 + $0xa8] sm:$0xff]
    %v3243 = vld [vmem:[#allocation2 + $0xb0] sm:$0xff]
    %v3244 = vld [vmem:[#allocation2 + $0xb8] sm:$0xff]
    %v3245 = vpack.c.bf16 %v3039, %v3039
    %3246 = vmatprep.subr.bf16.mxu0 %v756
    %3247 = vmatpush1.bf16.msra.mxu0 %v755
    %3248 = vmatprep.subr.bf16.mxu0 %v753
    %3249 = vmatpush1.bf16.msra.mxu0 %v752
    %3250 = vmatprep.subr.bf16.mxu0 %v750
    %3251 = vmatpush1.bf16.msra.mxu0 %v749
    %3252 = vmatprep.subr.bf16.mxu0 %v747
    %3253 = vmatpush1.bf16.msra.mxu0 %v746
    %3254 = vmatprep.subr.bf16.mxu0 %v744
    %3255 = vmatpush1.bf16.msra.mxu0 %v743
    %3256 = vmatprep.subr.bf16.mxu0 %v741
    %3257 = vmatpush1.bf16.msra.mxu0 %v740
    %3258 = vmatprep.subr.bf16.mxu0 %v738
    %3259 = vmatpush1.bf16.msra.mxu0 %v737
    %3260 = vmatprep.subr.bf16.mxu0 %v735
    %3261 = vmatpush1.bf16.msra.mxu0 %v734
    %3262 = vmatprep.subr.bf16.mxu0 0
    %3263 = vmatpush2.bf16.msra.mxu0 0
    %3264 = vmatprep.subr.bf16.mxu0 0
    %3265 = vmatpush2.bf16.msra.mxu0 0
    %3266 = vmatprep.subr.bf16.mxu0 0
    %3267 = vmatpush2.bf16.msra.mxu0 0
    %3268 = vmatprep.subr.bf16.mxu0 0
    %3269 = vmatpush2.bf16.msra.mxu0 0
    %3270 = vmatprep.subr.bf16.mxu0 0
    %3271 = vmatpush2.bf16.msra.mxu0 0
    %3272 = vmatprep.subr.bf16.mxu0 0
    %3273 = vmatpush2.bf16.msra.mxu0 0
    %3274 = vmatprep.subr.bf16.mxu0 0
    %3275 = vmatpush2.bf16.msra.mxu0 0
    %3276 = vmatprep.subr.bf16.mxu0 0
    %3277 = vmatpush2.bf16.msra.mxu0 0
    %3278 = vmatprep.mubr.bf16.mxu0 0
    %3279 = vmatmul.mubr.bf16.gmra.mxu0 %v3245
    %v3280 = vpop.f32.mrf.mxu0
    %v3281 = vadd.f32 0.0, %v3280
    %v3282 = vpop.f32.mrf.mxu0
    %v3283 = vadd.f32 0.0, %v3282
    %v3284 = vpop.f32.mrf.mxu0
    %v3285 = vpop.f32.mrf.mxu0
    %3286 = vdwg.mxu0
    %3287 = vmatprep.subr.bf16.mxu0 0
    %3288 = vmatpush1.bf16.msra.mxu0 %v757
    %3289 = vmatprep.subr.bf16.mxu0 0
    %3290 = vmatpush1.bf16.msra.mxu0 %v754
    %3291 = vmatprep.subr.bf16.mxu0 0
    %3292 = vmatpush1.bf16.msra.mxu0 %v751
    %3293 = vmatprep.subr.bf16.mxu0 0
    %3294 = vmatpush1.bf16.msra.mxu0 %v748
    %3295 = vmatprep.subr.bf16.mxu0 0
    %3296 = vmatpush1.bf16.msra.mxu0 %v745
    %3297 = vmatprep.subr.bf16.mxu0 0
    %3298 = vmatpush1.bf16.msra.mxu0 %v742
    %3299 = vmatprep.subr.bf16.mxu0 0
    %3300 = vmatpush1.bf16.msra.mxu0 %v739
    %3301 = vmatprep.subr.bf16.mxu0 0
    %3302 = vmatpush1.bf16.msra.mxu0 %v736
    %3303 = vmatprep.subr.bf16.mxu0 0
    %3304 = vmatpush2.bf16.msra.mxu0 0
    %3305 = vmatprep.subr.bf16.mxu0 0
    %3306 = vmatpush2.bf16.msra.mxu0 0
    %3307 = vmatprep.subr.bf16.mxu0 0
    %3308 = vmatpush2.bf16.msra.mxu0 0
    %3309 = vmatprep.subr.bf16.mxu0 0
    %3310 = vmatpush2.bf16.msra.mxu0 0
    %3311 = vmatprep.subr.bf16.mxu0 0
    %3312 = vmatpush2.bf16.msra.mxu0 0
    %3313 = vmatprep.subr.bf16.mxu0 0
    %3314 = vmatpush2.bf16.msra.mxu0 0
    %3315 = vmatprep.subr.bf16.mxu0 0
    %3316 = vmatpush2.bf16.msra.mxu0 0
    %3317 = vmatprep.subr.bf16.mxu0 0
    %3318 = vmatpush2.bf16.msra.mxu0 0
    %3319 = vmatprep.mubr.bf16.mxu0 0
    %3320 = vmatmul.mubr.bf16.gmra.mxu0 %v3245
    %v3321 = vpop.f32.mrf.mxu0
    %v3322 = vadd.f32 0.0, %v3321
    %v3323 = vpop.f32.mrf.mxu0
    %v3324 = vpop.f32.mrf.mxu0
    %v3325 = vpop.f32.mrf.mxu0
    %3326 = vdwg.mxu0
    %v3327 = vadd.f32 %v3242, %v3281
    %v3328 = vadd.f32 %v3243, %v3283
    %v3329 = vmul.f32 %v3327, 0.5
    %v3330 = vmul.f32 %v3328, 0.5
    %v3331 = vtanh.pop %v3329
    %v3332 = vtanh.pop %v3330
    %v3333 = vmul.f32 %v3331, 0.5
    %v3334 = vmul.f32 %v3332, 0.5
    %v3335 = vadd.f32 %v3333, 0.5
    %v3336 = vadd.f32 %v3334, 0.5
    %v3337 = vadd.f32 %v3322, %v510
    %v3338 = vmul.f32 %v3335, %v3337
    %v3339 = vadd.f32 %v3244, %v3338
    %v3340 = vtanh.pop %v3339
    %v3341 = vsub.f32 %v3039, %v3340
    %v3342 = vmul.f32 %v3336, %v3341
    %v3343 = vadd.f32 %v3340, %v3342
    %v3344 = vpack.c.bf16 %v3140, %v3140
    %3345 = vmatprep.subr.bf16.mxu0 %v1204
    %3346 = vmatpush1.bf16.msra.mxu0 %v1203
    %3347 = vmatprep.subr.bf16.mxu0 %v1200
    %3348 = vmatpush1.bf16.msra.mxu0 %v1199
    %3349 = vmatprep.subr.bf16.mxu0 %v1196
    %3350 = vmatpush1.bf16.msra.mxu0 %v1195
    %3351 = vmatprep.subr.bf16.mxu0 %v1192
    %3352 = vmatpush1.bf16.msra.mxu0 %v1191
    %3353 = vmatprep.subr.bf16.mxu0 %v1188
    %3354 = vmatpush1.bf16.msra.mxu0 %v1187
    %3355 = vmatprep.subr.bf16.mxu0 %v1184
    %3356 = vmatpush1.bf16.msra.mxu0 %v1183
    %3357 = vmatprep.subr.bf16.mxu0 %v1180
    %3358 = vmatpush1.bf16.msra.mxu0 %v1179
    %3359 = vmatprep.subr.bf16.mxu0 %v1176
    %3360 = vmatpush1.bf16.msra.mxu0 %v1175
    %3361 = vmatprep.subr.bf16.mxu0 %v1236
    %3362 = vmatpush2.bf16.msra.mxu0 %v1235
    %3363 = vmatprep.subr.bf16.mxu0 %v1232
    %3364 = vmatpush2.bf16.msra.mxu0 %v1231
    %3365 = vmatprep.subr.bf16.mxu0 %v1228
    %3366 = vmatpush2.bf16.msra.mxu0 %v1227
    %3367 = vmatprep.subr.bf16.mxu0 %v1224
    %3368 = vmatpush2.bf16.msra.mxu0 %v1223
    %3369 = vmatprep.subr.bf16.mxu0 %v1220
    %3370 = vmatpush2.bf16.msra.mxu0 %v1219
    %3371 = vmatprep.subr.bf16.mxu0 %v1216
    %3372 = vmatpush2.bf16.msra.mxu0 %v1215
    %3373 = vmatprep.subr.bf16.mxu0 %v1212
    %3374 = vmatpush2.bf16.msra.mxu0 %v1211
    %3375 = vmatprep.subr.bf16.mxu0 %v1208
    %3376 = vmatpush2.bf16.msra.mxu0 %v1207
    %3377 = vmatprep.mubr.bf16.mxu0 %v3344
    %3378 = vmatmul.mubr.bf16.gmra.mxu0 %v3245
    %v3379 = vpop.f32.mrf.mxu0
    %v3380 = vadd.f32 0.0, %v3379
    %v3381 = vpop.f32.mrf.mxu0
    %v3382 = vadd.f32 0.0, %v3381
    %v3383 = vpop.f32.mrf.mxu0
    %v3384 = vpop.f32.mrf.mxu0
    %3385 = vdwg.mxu0
    %3386 = vmatprep.subr.bf16.mxu0 %v1206
    %3387 = vmatpush1.bf16.msra.mxu0 %v1205
    %3388 = vmatprep.subr.bf16.mxu0 %v1202
    %3389 = vmatpush1.bf16.msra.mxu0 %v1201
    %3390 = vmatprep.subr.bf16.mxu0 %v1198
    %3391 = vmatpush1.bf16.msra.mxu0 %v1197
    %3392 = vmatprep.subr.bf16.mxu0 %v1194
    %3393 = vmatpush1.bf16.msra.mxu0 %v1193
    %3394 = vmatprep.subr.bf16.mxu0 %v1190
    %3395 = vmatpush1.bf16.msra.mxu0 %v1189
    %3396 = vmatprep.subr.bf16.mxu0 %v1186
    %3397 = vmatpush1.bf16.msra.mxu0 %v1185
    %3398 = vmatprep.subr.bf16.mxu0 %v1182
    %3399 = vmatpush1.bf16.msra.mxu0 %v1181
    %3400 = vmatprep.subr.bf16.mxu0 %v1178
    %3401 = vmatpush1.bf16.msra.mxu0 %v1177
    %3402 = vmatprep.subr.bf16.mxu0 %v1238
    %3403 = vmatpush2.bf16.msra.mxu0 %v1237
    %3404 = vmatprep.subr.bf16.mxu0 %v1234
    %3405 = vmatpush2.bf16.msra.mxu0 %v1233
    %3406 = vmatprep.subr.bf16.mxu0 %v1230
    %3407 = vmatpush2.bf16.msra.mxu0 %v1229
    %3408 = vmatprep.subr.bf16.mxu0 %v1226
    %3409 = vmatpush2.bf16.msra.mxu0 %v1225
    %3410 = vmatprep.subr.bf16.mxu0 %v1222
    %3411 = vmatpush2.bf16.msra.mxu0 %v1221
    %3412 = vmatprep.subr.bf16.mxu0 %v1218
    %3413 = vmatpush2.bf16.msra.mxu0 %v1217
    %3414 = vmatprep.subr.bf16.mxu0 %v1214
    %3415 = vmatpush2.bf16.msra.mxu0 %v1213
    %3416 = vmatprep.subr.bf16.mxu0 %v1210
    %3417 = vmatpush2.bf16.msra.mxu0 %v1209
    %3418 = vmatprep.mubr.bf16.mxu0 %v3344
    %3419 = vmatmul.mubr.bf16.gmra.mxu0 %v3245
    %v3420 = vpop.f32.mrf.mxu0
    %v3421 = vadd.f32 0.0, %v3420
    %v3422 = vpop.f32.mrf.mxu0
    %v3423 = vadd.f32 0.0, %v3422
    %v3424 = vpop.f32.mrf.mxu0
    %v3425 = vpop.f32.mrf.mxu0
    %3426 = vdwg.mxu0
    %v3427 = vadd.f32 %v3380, %v640
    %v3428 = vadd.f32 %v3382, %v641
    %v3429 = vmul.f32 %v3427, 0.5
    %v3430 = vmul.f32 %v3428, 0.5
    %v3431 = vtanh.pop %v3429
    %v3432 = vtanh.pop %v3430
    %v3433 = vmul.f32 %v3431, 0.5
    %v3434 = vmul.f32 %v3432, 0.5
    %v3435 = vadd.f32 %v3433, 0.5
    %v3436 = vadd.f32 %v3434, 0.5
    %v3437 = vadd.f32 %v3421, %v645
    %v3438 = vadd.f32 %v3423, %v648
    %v3439 = vmul.f32 %v3435, %v3438
    %v3440 = vadd.f32 %v3437, %v3439
    %v3441 = vtanh.pop %v3440
    %v3442 = vsub.f32 %v3140, %v3441
    %v3443 = vmul.f32 %v3436, %v3442
    %v3444 = vadd.f32 %v3441, %v3443
    %v3445 = vpack.c.bf16 %v3241, %v3241
    %3446 = vmatprep.subr.bf16.mxu0 %v1827
    %3447 = vmatpush1.bf16.msra.mxu0 %v1826
    %3448 = vmatprep.subr.bf16.mxu0 %v1823
    %3449 = vmatpush1.bf16.msra.mxu0 %v1822
    %3450 = vmatprep.subr.bf16.mxu0 %v1819
    %3451 = vmatpush1.bf16.msra.mxu0 %v1818
    %3452 = vmatprep.subr.bf16.mxu0 %v1815
    %3453 = vmatpush1.bf16.msra.mxu0 %v1814
    %3454 = vmatprep.subr.bf16.mxu0 %v1811
    %3455 = vmatpush1.bf16.msra.mxu0 %v1810
    %3456 = vmatprep.subr.bf16.mxu0 %v1807
    %3457 = vmatpush1.bf16.msra.mxu0 %v1806
    %3458 = vmatprep.subr.bf16.mxu0 %v1803
    %3459 = vmatpush1.bf16.msra.mxu0 %v1802
    %3460 = vmatprep.subr.bf16.mxu0 %v1799
    %3461 = vmatpush1.bf16.msra.mxu0 %v1798
    %3462 = vmatprep.subr.bf16.mxu0 %v1859
    %3463 = vmatpush2.bf16.msra.mxu0 %v1858
    %3464 = vmatprep.subr.bf16.mxu0 %v1855
    %3465 = vmatpush2.bf16.msra.mxu0 %v1854
    %3466 = vmatprep.subr.bf16.mxu0 %v1851
    %3467 = vmatpush2.bf16.msra.mxu0 %v1850
    %3468 = vmatprep.subr.bf16.mxu0 %v1847
    %3469 = vmatpush2.bf16.msra.mxu0 %v1846
    %3470 = vmatprep.subr.bf16.mxu0 %v1843
    %3471 = vmatpush2.bf16.msra.mxu0 %v1842
    %3472 = vmatprep.subr.bf16.mxu0 %v1839
    %3473 = vmatpush2.bf16.msra.mxu0 %v1838
    %3474 = vmatprep.subr.bf16.mxu0 %v1835
    %3475 = vmatpush2.bf16.msra.mxu0 %v1834
    %3476 = vmatprep.subr.bf16.mxu0 %v1831
    %3477 = vmatpush2.bf16.msra.mxu0 %v1830
    %3478 = vmatprep.mubr.bf16.mxu0 %v3445
    %3479 = vmatmul.mubr.bf16.gmra.mxu0 %v3344
    %v3480 = vpop.f32.mrf.mxu0
    %v3481 = vadd.f32 0.0, %v3480
    %v3482 = vpop.f32.mrf.mxu0
    %v3483 = vadd.f32 0.0, %v3482
    %v3484 = vpop.f32.mrf.mxu0
    %v3485 = vpop.f32.mrf.mxu0
    %3486 = vdwg.mxu0
    %3487 = vmatprep.subr.bf16.mxu0 %v1829
    %3488 = vmatpush1.bf16.msra.mxu0 %v1828
    %3489 = vmatprep.subr.bf16.mxu0 %v1825
    %3490 = vmatpush1.bf16.msra.mxu0 %v1824
    %3491 = vmatprep.subr.bf16.mxu0 %v1821
    %3492 = vmatpush1.bf16.msra.mxu0 %v1820
    %3493 = vmatprep.subr.bf16.mxu0 %v1817
    %3494 = vmatpush1.bf16.msra.mxu0 %v1816
    %3495 = vmatprep.subr.bf16.mxu0 %v1813
    %3496 = vmatpush1.bf16.msra.mxu0 %v1812
    %3497 = vmatprep.subr.bf16.mxu0 %v1809
    %3498 = vmatpush1.bf16.msra.mxu0 %v1808
    %3499 = vmatprep.subr.bf16.mxu0 %v1805
    %3500 = vmatpush1.bf16.msra.mxu0 %v1804
    %3501 = vmatprep.subr.bf16.mxu0 %v1801
    %3502 = vmatpush1.bf16.msra.mxu0 %v1800
    %3503 = vmatprep.subr.bf16.mxu0 %v1861
    %3504 = vmatpush2.bf16.msra.mxu0 %v1860
    %3505 = vmatprep.subr.bf16.mxu0 %v1857
    %3506 = vmatpush2.bf16.msra.mxu0 %v1856
    %3507 = vmatprep.subr.bf16.mxu0 %v1853
    %3508 = vmatpush2.bf16.msra.mxu0 %v1852
    %3509 = vmatprep.subr.bf16.mxu0 %v1849
    %3510 = vmatpush2.bf16.msra.mxu0 %v1848
    %3511 = vmatprep.subr.bf16.mxu0 %v1845
    %3512 = vmatpush2.bf16.msra.mxu0 %v1844
    %3513 = vmatprep.subr.bf16.mxu0 %v1841
    %3514 = vmatpush2.bf16.msra.mxu0 %v1840
    %3515 = vmatprep.subr.bf16.mxu0 %v1837
    %3516 = vmatpush2.bf16.msra.mxu0 %v1836
    %3517 = vmatprep.subr.bf16.mxu0 %v1833
    %3518 = vmatpush2.bf16.msra.mxu0 %v1832
    %3519 = vmatprep.mubr.bf16.mxu0 %v3445
    %3520 = vmatmul.mubr.bf16.gmra.mxu0 %v3344
    %v3521 = vpop.f32.mrf.mxu0
    %v3522 = vadd.f32 0.0, %v3521
    %v3523 = vpop.f32.mrf.mxu0
    %v3524 = vadd.f32 0.0, %v3523
    %v3525 = vpop.f32.mrf.mxu0
    %v3526 = vpop.f32.mrf.mxu0
    %3527 = vdwg.mxu0
    %v3528 = vadd.f32 %v3481, %v643
    %v3529 = vadd.f32 %v3483, %v644
    %v3530 = vmul.f32 %v3528, 0.5
    %v3531 = vmul.f32 %v3529, 0.5
    %v3532 = vtanh.pop %v3530
    %v3533 = vtanh.pop %v3531
    %v3534 = vmul.f32 %v3532, 0.5
    %v3535 = vmul.f32 %v3533, 0.5
    %v3536 = vadd.f32 %v3534, 0.5
    %v3537 = vadd.f32 %v3535, 0.5
    %v3538 = vadd.f32 %v3522, %v647
    %v3539 = vadd.f32 %v3524, %v650
    %v3540 = vmul.f32 %v3536, %v3539
    %v3541 = vadd.f32 %v3538, %v3540
    %v3542 = vtanh.pop %v3541
    %v3543 = vsub.f32 %v3241, %v3542
    %v3544 = vmul.f32 %v3537, %v3543
    %v3545 = vadd.f32 %v3542, %v3544
    %v3546 = vpack.c.bf16 %v3343, %v3343
    %v3547 = vpack.c.bf16 %v3444, %v3444
    %3548 = vmatprep.subr.bf16.mxu0 %v1204
    %3549 = vmatpush1.bf16.msra.mxu0 %v1203
    %3550 = vmatprep.subr.bf16.mxu0 %v1200
    %3551 = vmatpush1.bf16.msra.mxu0 %v1199
    %3552 = vmatprep.subr.bf16.mxu0 %v1196
    %3553 = vmatpush1.bf16.msra.mxu0 %v1195
    %3554 = vmatprep.subr.bf16.mxu0 %v1192
    %3555 = vmatpush1.bf16.msra.mxu0 %v1191
    %3556 = vmatprep.subr.bf16.mxu0 %v1188
    %3557 = vmatpush1.bf16.msra.mxu0 %v1187
    %3558 = vmatprep.subr.bf16.mxu0 %v1184
    %3559 = vmatpush1.bf16.msra.mxu0 %v1183
    %3560 = vmatprep.subr.bf16.mxu0 %v1180
    %3561 = vmatpush1.bf16.msra.mxu0 %v1179
    %3562 = vmatprep.subr.bf16.mxu0 %v1176
    %3563 = vmatpush1.bf16.msra.mxu0 %v1175
    %3564 = vmatprep.subr.bf16.mxu0 %v1236
    %3565 = vmatpush2.bf16.msra.mxu0 %v1235
    %3566 = vmatprep.subr.bf16.mxu0 %v1232
    %3567 = vmatpush2.bf16.msra.mxu0 %v1231
    %3568 = vmatprep.subr.bf16.mxu0 %v1228
    %3569 = vmatpush2.bf16.msra.mxu0 %v1227
    %3570 = vmatprep.subr.bf16.mxu0 %v1224
    %3571 = vmatpush2.bf16.msra.mxu0 %v1223
    %3572 = vmatprep.subr.bf16.mxu0 %v1220
    %3573 = vmatpush2.bf16.msra.mxu0 %v1219
    %3574 = vmatprep.subr.bf16.mxu0 %v1216
    %3575 = vmatpush2.bf16.msra.mxu0 %v1215
    %3576 = vmatprep.subr.bf16.mxu0 %v1212
    %3577 = vmatpush2.bf16.msra.mxu0 %v1211
    %3578 = vmatprep.subr.bf16.mxu0 %v1208
    %3579 = vmatpush2.bf16.msra.mxu0 %v1207
    %3580 = vmatprep.mubr.bf16.mxu0 %v3547
    %3581 = vmatmul.mubr.bf16.gmra.mxu0 %v3546
    %v3582 = vpop.f32.mrf.mxu0
    %v3583 = vadd.f32 0.0, %v3582
    %v3584 = vpop.f32.mrf.mxu0
    %v3585 = vadd.f32 0.0, %v3584
    %v3586 = vpop.f32.mrf.mxu0
    %v3587 = vpop.f32.mrf.mxu0
    %3588 = vdwg.mxu0
    %3589 = vmatprep.subr.bf16.mxu0 %v1206
    %3590 = vmatpush1.bf16.msra.mxu0 %v1205
    %3591 = vmatprep.subr.bf16.mxu0 %v1202
    %3592 = vmatpush1.bf16.msra.mxu0 %v1201
    %3593 = vmatprep.subr.bf16.mxu0 %v1198
    %3594 = vmatpush1.bf16.msra.mxu0 %v1197
    %3595 = vmatprep.subr.bf16.mxu0 %v1194
    %3596 = vmatpush1.bf16.msra.mxu0 %v1193
    %3597 = vmatprep.subr.bf16.mxu0 %v1190
    %3598 = vmatpush1.bf16.msra.mxu0 %v1189
    %3599 = vmatprep.subr.bf16.mxu0 %v1186
    %3600 = vmatpush1.bf16.msra.mxu0 %v1185
    %3601 = vmatprep.subr.bf16.mxu0 %v1182
    %3602 = vmatpush1.bf16.msra.mxu0 %v1181
    %3603 = vmatprep.subr.bf16.mxu0 %v1178
    %3604 = vmatpush1.bf16.msra.mxu0 %v1177
    %3605 = vmatprep.subr.bf16.mxu0 %v1238
    %3606 = vmatpush2.bf16.msra.mxu0 %v1237
    %3607 = vmatprep.subr.bf16.mxu0 %v1234
    %3608 = vmatpush2.bf16.msra.mxu0 %v1233
    %3609 = vmatprep.subr.bf16.mxu0 %v1230
    %3610 = vmatpush2.bf16.msra.mxu0 %v1229
    %3611 = vmatprep.subr.bf16.mxu0 %v1226
    %3612 = vmatpush2.bf16.msra.mxu0 %v1225
    %3613 = vmatprep.subr.bf16.mxu0 %v1222
    %3614 = vmatpush2.bf16.msra.mxu0 %v1221
    %3615 = vmatprep.subr.bf16.mxu0 %v1218
    %3616 = vmatpush2.bf16.msra.mxu0 %v1217
    %3617 = vmatprep.subr.bf16.mxu0 %v1214
    %3618 = vmatpush2.bf16.msra.mxu0 %v1213
    %3619 = vmatprep.subr.bf16.mxu0 %v1210
    %3620 = vmatpush2.bf16.msra.mxu0 %v1209
    %3621 = vmatprep.mubr.bf16.mxu0 %v3547
    %3622 = vmatmul.mubr.bf16.gmra.mxu0 %v3546
    %v3623 = vpop.f32.mrf.mxu0
    %v3624 = vadd.f32 0.0, %v3623
    %v3625 = vpop.f32.mrf.mxu0
    %v3626 = vadd.f32 0.0, %v3625
    %v3627 = vpop.f32.mrf.mxu0
    %v3628 = vpop.f32.mrf.mxu0
    %3629 = vdwg.mxu0
    %v3630 = vadd.f32 %v3583, %v640
    %v3631 = vadd.f32 %v3585, %v641
    %v3632 = vmul.f32 %v3630, 0.5
    %v3633 = vmul.f32 %v3631, 0.5
    %v3634 = vtanh.pop %v3632
    %v3635 = vtanh.pop %v3633
    %v3636 = vmul.f32 %v3634, 0.5
    %v3637 = vmul.f32 %v3635, 0.5
    %v3638 = vadd.f32 %v3636, 0.5
    %v3639 = vadd.f32 %v3637, 0.5
    %v3640 = vadd.f32 %v3624, %v645
    %v3641 = vadd.f32 %v3626, %v648
    %v3642 = vmul.f32 %v3638, %v3641
    %v3643 = vadd.f32 %v3640, %v3642
    %v3644 = vtanh.pop %v3643
    %v3645 = vsub.f32 %v3444, %v3644
    %v3646 = vmul.f32 %v3639, %v3645
    %v3647 = vadd.f32 %v3644, %v3646
    %v3648 = vpack.c.bf16 %v3545, %v3545
    %3649 = vmatprep.subr.bf16.mxu0 %v1827
    %3650 = vmatpush1.bf16.msra.mxu0 %v1826
    %3651 = vmatprep.subr.bf16.mxu0 %v1823
    %3652 = vmatpush1.bf16.msra.mxu0 %v1822
    %3653 = vmatprep.subr.bf16.mxu0 %v1819
    %3654 = vmatpush1.bf16.msra.mxu0 %v1818
    %3655 = vmatprep.subr.bf16.mxu0 %v1815
    %3656 = vmatpush1.bf16.msra.mxu0 %v1814
    %3657 = vmatprep.subr.bf16.mxu0 %v1811
    %3658 = vmatpush1.bf16.msra.mxu0 %v1810
    %3659 = vmatprep.subr.bf16.mxu0 %v1807
    %3660 = vmatpush1.bf16.msra.mxu0 %v1806
    %3661 = vmatprep.subr.bf16.mxu0 %v1803
    %3662 = vmatpush1.bf16.msra.mxu0 %v1802
    %3663 = vmatprep.subr.bf16.mxu0 %v1799
    %3664 = vmatpush1.bf16.msra.mxu0 %v1798
    %3665 = vmatprep.subr.bf16.mxu0 %v1859
    %3666 = vmatpush2.bf16.msra.mxu0 %v1858
    %3667 = vmatprep.subr.bf16.mxu0 %v1855
    %3668 = vmatpush2.bf16.msra.mxu0 %v1854
    %3669 = vmatprep.subr.bf16.mxu0 %v1851
    %3670 = vmatpush2.bf16.msra.mxu0 %v1850
    %3671 = vmatprep.subr.bf16.mxu0 %v1847
    %3672 = vmatpush2.bf16.msra.mxu0 %v1846
    %3673 = vmatprep.subr.bf16.mxu0 %v1843
    %3674 = vmatpush2.bf16.msra.mxu0 %v1842
    %3675 = vmatprep.subr.bf16.mxu0 %v1839
    %3676 = vmatpush2.bf16.msra.mxu0 %v1838
    %3677 = vmatprep.subr.bf16.mxu0 %v1835
    %3678 = vmatpush2.bf16.msra.mxu0 %v1834
    %3679 = vmatprep.subr.bf16.mxu0 %v1831
    %3680 = vmatpush2.bf16.msra.mxu0 %v1830
    %3681 = vmatprep.mubr.bf16.mxu0 %v3648
    %3682 = vmatmul.mubr.bf16.gmra.mxu0 %v3547
    %v3683 = vpop.f32.mrf.mxu0
    %v3684 = vadd.f32 0.0, %v3683
    %v3685 = vpop.f32.mrf.mxu0
    %v3686 = vadd.f32 0.0, %v3685
    %v3687 = vpop.f32.mrf.mxu0
    %v3688 = vpop.f32.mrf.mxu0
    %3689 = vdwg.mxu0
    %3690 = vmatprep.subr.bf16.mxu0 %v1829
    %3691 = vmatpush1.bf16.msra.mxu0 %v1828
    %3692 = vmatprep.subr.bf16.mxu0 %v1825
    %3693 = vmatpush1.bf16.msra.mxu0 %v1824
    %3694 = vmatprep.subr.bf16.mxu0 %v1821
    %3695 = vmatpush1.bf16.msra.mxu0 %v1820
    %3696 = vmatprep.subr.bf16.mxu0 %v1817
    %3697 = vmatpush1.bf16.msra.mxu0 %v1816
    %3698 = vmatprep.subr.bf16.mxu0 %v1813
    %3699 = vmatpush1.bf16.msra.mxu0 %v1812
    %3700 = vmatprep.subr.bf16.mxu0 %v1809
    %3701 = vmatpush1.bf16.msra.mxu0 %v1808
    %3702 = vmatprep.subr.bf16.mxu0 %v1805
    %3703 = vmatpush1.bf16.msra.mxu0 %v1804
    %3704 = vmatprep.subr.bf16.mxu0 %v1801
    %3705 = vmatpush1.bf16.msra.mxu0 %v1800
    %3706 = vmatprep.subr.bf16.mxu0 %v1861
    %3707 = vmatpush2.bf16.msra.mxu0 %v1860
    %3708 = vmatprep.subr.bf16.mxu0 %v1857
    %3709 = vmatpush2.bf16.msra.mxu0 %v1856
    %3710 = vmatprep.subr.bf16.mxu0 %v1853
    %3711 = vmatpush2.bf16.msra.mxu0 %v1852
    %3712 = vmatprep.subr.bf16.mxu0 %v1849
    %3713 = vmatpush2.bf16.msra.mxu0 %v1848
    %3714 = vmatprep.subr.bf16.mxu0 %v1845
    %3715 = vmatpush2.bf16.msra.mxu0 %v1844
    %3716 = vmatprep.subr.bf16.mxu0 %v1841
    %3717 = vmatpush2.bf16.msra.mxu0 %v1840
    %3718 = vmatprep.subr.bf16.mxu0 %v1837
    %3719 = vmatpush2.bf16.msra.mxu0 %v1836
    %3720 = vmatprep.subr.bf16.mxu0 %v1833
    %3721 = vmatpush2.bf16.msra.mxu0 %v1832
    %3722 = vmatprep.mubr.bf16.mxu0 %v3648
    %3723 = vmatmul.mubr.bf16.gmra.mxu0 %v3547
    %v3724 = vpop.f32.mrf.mxu0
    %v3725 = vadd.f32 0.0, %v3724
    %v3726 = vpop.f32.mrf.mxu0
    %v3727 = vadd.f32 0.0, %v3726
    %v3728 = vpop.f32.mrf.mxu0
    %v3729 = vpop.f32.mrf.mxu0
    %3730 = vdwg.mxu0
    %v3731 = vadd.f32 %v3684, %v643
    %v3732 = vadd.f32 %v3686, %v644
    %v3733 = vmul.f32 %v3731, 0.5
    %v3734 = vmul.f32 %v3732, 0.5
    %v3735 = vtanh.pop %v3733
    %v3736 = vtanh.pop %v3734
    %v3737 = vmul.f32 %v3735, 0.5
    %v3738 = vmul.f32 %v3736, 0.5
    %v3739 = vadd.f32 %v3737, 0.5
    %v3740 = vadd.f32 %v3738, 0.5
    %v3741 = vadd.f32 %v3725, %v647
    %v3742 = vadd.f32 %v3727, %v650
    %v3743 = vmul.f32 %v3739, %v3742
    %v3744 = vadd.f32 %v3741, %v3743
    %v3745 = vtanh.pop %v3744
    %v3746 = vsub.f32 %v3545, %v3745
    %v3747 = vmul.f32 %v3740, %v3746
    %v3748 = vadd.f32 %v3745, %v3747
    %v3749 = vpack.c.bf16 %v3647, %v3647
    %v3750 = vpack.c.bf16 %v3748, %v3748
    %3751 = vmatprep.subr.bf16.mxu0 %v1827
    %3752 = vmatpush1.bf16.msra.mxu0 %v1826
    %3753 = vmatprep.subr.bf16.mxu0 %v1823
    %3754 = vmatpush1.bf16.msra.mxu0 %v1822
    %3755 = vmatprep.subr.bf16.mxu0 %v1819
    %3756 = vmatpush1.bf16.msra.mxu0 %v1818
    %3757 = vmatprep.subr.bf16.mxu0 %v1815
    %3758 = vmatpush1.bf16.msra.mxu0 %v1814
    %3759 = vmatprep.subr.bf16.mxu0 %v1811
    %3760 = vmatpush1.bf16.msra.mxu0 %v1810
    %3761 = vmatprep.subr.bf16.mxu0 %v1807
    %3762 = vmatpush1.bf16.msra.mxu0 %v1806
    %3763 = vmatprep.subr.bf16.mxu0 %v1803
    %3764 = vmatpush1.bf16.msra.mxu0 %v1802
    %3765 = vmatprep.subr.bf16.mxu0 %v1799
    %3766 = vmatpush1.bf16.msra.mxu0 %v1798
    %3767 = vmatprep.subr.bf16.mxu0 %v1859
    %3768 = vmatpush2.bf16.msra.mxu0 %v1858
    %3769 = vmatprep.subr.bf16.mxu0 %v1855
    %3770 = vmatpush2.bf16.msra.mxu0 %v1854
    %3771 = vmatprep.subr.bf16.mxu0 %v1851
    %3772 = vmatpush2.bf16.msra.mxu0 %v1850
    %3773 = vmatprep.subr.bf16.mxu0 %v1847
    %3774 = vmatpush2.bf16.msra.mxu0 %v1846
    %3775 = vmatprep.subr.bf16.mxu0 %v1843
    %3776 = vmatpush2.bf16.msra.mxu0 %v1842
    %3777 = vmatprep.subr.bf16.mxu0 %v1839
    %3778 = vmatpush2.bf16.msra.mxu0 %v1838
    %3779 = vmatprep.subr.bf16.mxu0 %v1835
    %3780 = vmatpush2.bf16.msra.mxu0 %v1834
    %3781 = vmatprep.subr.bf16.mxu0 %v1831
    %3782 = vmatpush2.bf16.msra.mxu0 %v1830
    %3783 = vmatprep.mubr.bf16.mxu0 %v3750
    %3784 = vmatmul.mubr.bf16.gmra.mxu0 %v3749
    %v3785 = vpop.f32.mrf.mxu0
    %v3786 = vadd.f32 0.0, %v3785
    %v3787 = vpop.f32.mrf.mxu0
    %v3788 = vadd.f32 0.0, %v3787
    %v3789 = vpop.f32.mrf.mxu0
    %v3790 = vpop.f32.mrf.mxu0
    %3791 = vdwg.mxu0
    %3792 = vmatprep.subr.bf16.mxu0 %v1829
    %3793 = vmatpush1.bf16.msra.mxu0 %v1828
    %3794 = vmatprep.subr.bf16.mxu0 %v1825
    %3795 = vmatpush1.bf16.msra.mxu0 %v1824
    %3796 = vmatprep.subr.bf16.mxu0 %v1821
    %3797 = vmatpush1.bf16.msra.mxu0 %v1820
    %3798 = vmatprep.subr.bf16.mxu0 %v1817
    %3799 = vmatpush1.bf16.msra.mxu0 %v1816
    %3800 = vmatprep.subr.bf16.mxu0 %v1813
    %3801 = vmatpush1.bf16.msra.mxu0 %v1812
    %3802 = vmatprep.subr.bf16.mxu0 %v1809
    %3803 = vmatpush1.bf16.msra.mxu0 %v1808
    %3804 = vmatprep.subr.bf16.mxu0 %v1805
    %3805 = vmatpush1.bf16.msra.mxu0 %v1804
    %3806 = vmatprep.subr.bf16.mxu0 %v1801
    %3807 = vmatpush1.bf16.msra.mxu0 %v1800
    %3808 = vmatprep.subr.bf16.mxu0 %v1861
    %3809 = vmatpush2.bf16.msra.mxu0 %v1860
    %3810 = vmatprep.subr.bf16.mxu0 %v1857
    %3811 = vmatpush2.bf16.msra.mxu0 %v1856
    %3812 = vmatprep.subr.bf16.mxu0 %v1853
    %3813 = vmatpush2.bf16.msra.mxu0 %v1852
    %3814 = vmatprep.subr.bf16.mxu0 %v1849
    %3815 = vmatpush2.bf16.msra.mxu0 %v1848
    %3816 = vmatprep.subr.bf16.mxu0 %v1845
    %3817 = vmatpush2.bf16.msra.mxu0 %v1844
    %3818 = vmatprep.subr.bf16.mxu0 %v1841
    %3819 = vmatpush2.bf16.msra.mxu0 %v1840
    %3820 = vmatprep.subr.bf16.mxu0 %v1837
    %3821 = vmatpush2.bf16.msra.mxu0 %v1836
    %3822 = vmatprep.subr.bf16.mxu0 %v1833
    %3823 = vmatpush2.bf16.msra.mxu0 %v1832
    %3824 = vmatprep.mubr.bf16.mxu0 %v3750
    %3825 = vmatmul.mubr.bf16.gmra.mxu0 %v3749
    %v3826 = vpop.f32.mrf.mxu0
    %v3827 = vadd.f32 0.0, %v3826
    %v3828 = vpop.f32.mrf.mxu0
    %v3829 = vadd.f32 0.0, %v3828
    %v3830 = vpop.f32.mrf.mxu0
    %v3831 = vpop.f32.mrf.mxu0
    %3832 = vdwg.mxu0
    %v3833 = vadd.f32 %v3786, %v643
    %v3834 = vadd.f32 %v3788, %v644
    %v3835 = vmul.f32 %v3833, 0.5
    %v3836 = vmul.f32 %v3834, 0.5
    %v3837 = vtanh.pop %v3835
    %v3838 = vtanh.pop %v3836
    %v3839 = vmul.f32 %v3837, 0.5
    %v3840 = vmul.f32 %v3838, 0.5
    %v3841 = vadd.f32 %v3839, 0.5
    %v3842 = vadd.f32 %v3840, 0.5
    %v3843 = vadd.f32 %v3827, %v647
    %v3844 = vadd.f32 %v3829, %v650
    %v3845 = vmul.f32 %v3841, %v3844
    %v3846 = vadd.f32 %v3843, %v3845
    %v3847 = vtanh.pop %v3846
    %v3848 = vsub.f32 %v3748, %v3847
    %v3849 = vmul.f32 %v3842, %v3848
    %v3850 = vadd.f32 %v3847, %v3849
    %v3851 = vpack.c.bf16 %v3850, %v3850
    %v3852 = vld [vmem:[%s9] sm:$0xf]
    %v3853 = vld [vmem:[%s9 + $0x4] sm:$0xf]
    %v3854 = vld [vmem:[%s9 + $0x8] sm:$0xf]
    %v3855 = vld [vmem:[%s9 + $0xc] sm:$0xf]
    %v3856 = vld [vmem:[%s9 + $0x10] sm:$0xf]
    %v3857 = vld [vmem:[%s9 + $0x14] sm:$0xf]
    %v3858 = vld [vmem:[%s9 + $0x18] sm:$0xf]
    %v3859 = vld [vmem:[%s9 + $0x1c] sm:$0xf]
    %v3860 = vld [vmem:[%s9 + $0x20] sm:$0xf]
    %v3861 = vld [vmem:[%s9 + $0x24] sm:$0xf]
    %v3862 = vld [vmem:[%s9 + $0x28] sm:$0xf]
    %v3863 = vld [vmem:[%s9 + $0x2c] sm:$0xf]
    %v3864 = vld [vmem:[%s9 + $0x30] sm:$0xf]
    %v3865 = vld [vmem:[%s9 + $0x34] sm:$0xf]
    %v3866 = vld [vmem:[%s9 + $0x38] sm:$0xf]
    %v3867 = vld [vmem:[%s9 + $0x3c] sm:$0xf]
    %v3868 = vld [vmem:[%s10] sm:$0x1]
    %v3870 = vlaneseq
    %v3871 = vshrl.u32 %v3870, 7
    %v3872 = vsub.s32 0, %v3871
    %v3873 = vrot.slane %v3868, %v3872
    %v3891 = vunpack.c.l.b16 %v3852
    %v3892 = vunpack.c.l.b16 %v3853
    %v3893 = vunpack.c.l.b16 %v3854
    %v3894 = vunpack.c.l.b16 %v3855
    %v3895 = vunpack.c.l.b16 %v3856
    %v3896 = vunpack.c.l.b16 %v3857
    %v3897 = vunpack.c.l.b16 %v3858
    %v3898 = vunpack.c.l.b16 %v3859
    %v3899 = vunpack.c.l.b16 %v3860
    %v3900 = vunpack.c.l.b16 %v3861
    %v3901 = vunpack.c.l.b16 %v3862
    %v3902 = vunpack.c.l.b16 %v3863
    %v3903 = vunpack.c.l.b16 %v3864
    %v3904 = vunpack.c.l.b16 %v3865
    %v3905 = vunpack.c.l.b16 %v3866
    %v3906 = vunpack.c.l.b16 %v3867
    %v3907 = vpack.c.b16 %v3892, %v3891
    %v3908 = vpack.c.b16 %v3894, %v3893
    %v3909 = vpack.c.b16 %v3896, %v3895
    %v3910 = vpack.c.b16 %v3898, %v3897
    %v3911 = vpack.c.b16 %v3900, %v3899
    %v3912 = vpack.c.b16 %v3902, %v3901
    %v3913 = vpack.c.b16 %v3904, %v3903
    %v3914 = vpack.c.b16 %v3906, %v3905
    %3923 = vmatprep.subr.bf16.mxu0 0
    %3924 = vmatpush1.bf16.msra.mxu0 %v3914
    %3925 = vmatprep.subr.bf16.mxu0 0
    %3926 = vmatpush1.bf16.msra.mxu0 %v3913
    %3927 = vmatprep.subr.bf16.mxu0 0
    %3928 = vmatpush1.bf16.msra.mxu0 %v3912
    %3929 = vmatprep.subr.bf16.mxu0 0
    %3930 = vmatpush1.bf16.msra.mxu0 %v3911
    %3931 = vmatprep.subr.bf16.mxu0 0
    %3932 = vmatpush1.bf16.msra.mxu0 %v3910
    %3933 = vmatprep.subr.bf16.mxu0 0
    %3934 = vmatpush1.bf16.msra.mxu0 %v3909
    %3935 = vmatprep.subr.bf16.mxu0 0
    %3936 = vmatpush1.bf16.msra.mxu0 %v3908
    %3937 = vmatprep.subr.bf16.mxu0 0
    %3938 = vmatpush1.bf16.msra.mxu0 %v3907
    %3939 = vmatprep.subr.bf16.mxu0 0
    %3940 = vmatpush2.bf16.msra.mxu0 0
    %3941 = vmatprep.subr.bf16.mxu0 0
    %3942 = vmatpush2.bf16.msra.mxu0 0
    %3943 = vmatprep.subr.bf16.mxu0 0
    %3944 = vmatpush2.bf16.msra.mxu0 0
    %3945 = vmatprep.subr.bf16.mxu0 0
    %3946 = vmatpush2.bf16.msra.mxu0 0
    %3947 = vmatprep.subr.bf16.mxu0 0
    %3948 = vmatpush2.bf16.msra.mxu0 0
    %3949 = vmatprep.subr.bf16.mxu0 0
    %3950 = vmatpush2.bf16.msra.mxu0 0
    %3951 = vmatprep.subr.bf16.mxu0 0
    %3952 = vmatpush2.bf16.msra.mxu0 0
    %3953 = vmatprep.subr.bf16.mxu0 0
    %3954 = vmatpush2.bf16.msra.mxu0 0
    %3955 = vmatprep.mubr.bf16.mxu0 0
    %3956 = vmatmul.mubr.bf16.gmra.mxu0 %v3851
    %v3957 = vpop.f32.mrf.mxu0
    %v3958 = vadd.f32 %v3873, %v3957
    %v3959 = vpop.f32.mrf.mxu0
    %v3960 = vpop.f32.mrf.mxu0
    %v3961 = vpop.f32.mrf.mxu0
    %3962 = vdwg.mxu0
    %v3963 = vmax.f32 %v3958, 0.0
    %3964 = vst [vmem:[%s11] sm:$0xff] %v3963
    // Predicated region
    $region66: #{gru_forward.1} parent=1 // pred_check
      _
    $region67: #{gru_forward.1} parent=1 // pred_check_branch
      %3966 = sbr.rel (0) target = $region69
    $region68: #{gru_forward.1} parent=1 // pred_region
      _
    $region69: #{gru_forward.1} parent=1 // pred_fallthru
      _
    // Predicated region
    $region70: #{gru_forward.1} parent=1 // pred_check
      _
    $region71: #{gru_forward.1} parent=1 // pred_check_branch
      %3968 = sbr.rel (0) target = $region73
    $region72: #{gru_forward.1} parent=1 // pred_region
      _
    $region73: #{gru_forward.1} parent=1 // pred_fallthru
      _
    %3969 = vsyncpa [#allocation4], 1
    %3970 = vsyncpa [#allocation6], 1
    %3971 = vsyncpa [#allocation9], 1

</llo_original>
